<compile_context>
chip_gen: v7x
topology: tpu7x:2x2x1
jax: 0.10.0
libtpu: 0.0.40
codegen_flags: <defaults>
</compile_context>

<pallas_src>
import jax
import jax.numpy as jnp
from jax.experimental import pallas as pl
from jax.experimental.pallas import tpu as pltpu


def _round_up(x, m):
    return (x + m - 1) // m * m


def _choose_row_block(Hp, Wp, p, H, L, block_rows, max_unroll):
    """Pick nh = patch rows per grid step: nh | Hp, rows-per-step = nh*Wp kept
    near block_rows, unrolled loop bounded by max_unroll, and the x / out
    BlockSpec shapes satisfy the Mosaic (8, 128) block-divisibility rule."""
    best = None
    for nh in range(1, Hp + 1):
        if Hp % nh:
            continue
        rows = nh * Wp
        ok_h = (nh * p) % 8 == 0 or nh * p == H
        ok_r = rows % 8 == 0 or rows == L
        if ok_h and ok_r and rows <= block_rows and nh <= max_unroll:
            best = nh
    if best is None:
        best = Hp  # full-height block: block dims equal array dims, always legal
    return best


def prepare_patch_embed_params(weight, bias, compute_dtype=jnp.bfloat16):
    """One-time relayout of the PyTorch Conv2d parameters (hoisted off the
    per-call path).

      weight (D, C, p, p) -> w3 (p, C*p, D_pad), kw-major, compute dtype
      bias   (D,)         -> b2 (1, D_pad) f32

    D is padded to a multiple of 128 for lane-dense output stores; the pad
    columns are zero and sliced off after the kernel."""
    D, C, p, p2 = weight.shape
    assert p == p2
    D_pad = _round_up(D, 128)
    # w3[kw, c*p + kh, d] = weight[d, c, kh, kw]  (PyTorch (C, kh, kw) flatten)
    w3 = jnp.transpose(weight, (3, 1, 2, 0)).reshape(p, C * p, D).astype(compute_dtype)
    b2 = bias.reshape(1, D).astype(jnp.float32)
    if D_pad != D:
        w3 = jnp.pad(w3, ((0, 0), (0, 0), (0, D_pad - D)))
        b2 = jnp.pad(b2, ((0, 0), (0, D_pad - D)))
    return w3, b2


def _make_patch_embed_kernel(C, p, Wp, nh, D_pad):
    CK = C * p
    W = Wp * p

    def kernel(x_ref, w_ref, b_ref, o_ref):
        # x_ref: (1, C, nh*p, W)   input band (nh patch rows of the image)
        # w_ref: (p, C*p, D_pad)   resident flattened conv weight, kw-major
        # b_ref: (1, D_pad)        resident bias (f32)
        # o_ref: (1, nh*Wp, D_pad) output rows for this band
        bias = b_ref[...]
        for hi in range(nh):                      # static unroll (nh <= max_unroll)
            # (C, p, W) f32 band for patch row hi; merge (c, kh) -> rows.
            band = x_ref[0, :, hi * p:(hi + 1) * p, :].astype(jnp.float32)
            band = band.reshape(CK, W)
            # In-VMEM im2col: bring the W lane axis to sublanes so the
            # (wi, kw) interleave separates with plain slicing.
            bandT = jnp.transpose(band).reshape(Wp, p, CK)   # w = wi*p + kw
            acc = jnp.zeros((Wp, D_pad), dtype=jnp.float32)
            for kw in range(p):                   # static unroll (p small)
                xs = bandT[:, kw, :].astype(w_ref.dtype)     # (Wp, C*p)
                acc = acc + jnp.dot(xs, w_ref[kw],
                                    preferred_element_type=jnp.float32)
            o_ref[0, hi * Wp:(hi + 1) * Wp, :] = (acc + bias).astype(o_ref.dtype)

    return kernel


def patch_embed(x, w3, b2, patch_size, embed_dim, *,
                out_dtype=jnp.bfloat16,
                block_rows=256, max_unroll=8,
                vmem_limit_bytes=48 * 1024 * 1024,
                single_buffer_resident=True):
    """Fused PatchEmbed forward.  x: (B, C, H, W) NCHW.  Returns (B, L, D)
    with L = (H//p)*(W//p), matching proj(x).view(B, D, L).transpose(1, 2)."""
    B, C, H, W = x.shape
    p = patch_size
    assert H % p == 0 and W % p == 0
    Hp, Wp = H // p, W // p
    L = Hp * Wp
    CK = C * p
    assert w3.shape[0] == p and w3.shape[1] == CK
    D_pad = w3.shape[2]
    assert D_pad % 128 == 0 and D_pad >= embed_dim and b2.shape == (1, D_pad)

    nh = _choose_row_block(Hp, Wp, p, H, L, block_rows, max_unroll)
    grid = (B, Hp // nh)

    kernel = _make_patch_embed_kernel(C, p, Wp, nh, D_pad)

    def resident_spec(block_shape, index_map):
        if single_buffer_resident:
            # Constant index_map: never re-DMAed; Buffered(1) also reclaims the
            # second VMEM copy (K*D bytes) that default double buffering keeps.
            return pl.BlockSpec(block_shape, index_map,
                                pipeline_mode=pl.Buffered(1))
        return pl.BlockSpec(block_shape, index_map)

    cost = pl.CostEstimate(
        flops=2 * B * L * CK * p * D_pad,
        transcendentals=0,
        bytes_accessed=int(x.size * x.dtype.itemsize
                           + w3.size * w3.dtype.itemsize + b2.size * 4
                           + B * L * D_pad * jnp.dtype(out_dtype).itemsize))

    out = pl.pallas_call(
        kernel,
        out_shape=jax.ShapeDtypeStruct((B, L, D_pad), out_dtype),
        grid_spec=pltpu.PrefetchScalarGridSpec(
            num_scalar_prefetch=0,
            grid=grid,
            in_specs=[
                pl.BlockSpec((1, C, nh * p, W), lambda b, h: (b, 0, h, 0)),
                resident_spec((p, CK, D_pad), lambda b, h: (0, 0, 0)),
                resident_spec((1, D_pad), lambda b, h: (0, 0)),
            ],
            out_specs=pl.BlockSpec((1, nh * Wp, D_pad), lambda b, h: (b, h, 0)),
        ),
        compiler_params=pltpu.CompilerParams(
            dimension_semantics=("parallel", "parallel"),
            vmem_limit_bytes=vmem_limit_bytes,
        ),
        cost_estimate=cost,
    )(x, w3, b2)

    if D_pad != embed_dim:
        out = out[..., :embed_dim]
    return out


def _reference(x, weight, bias, p):
    # Pure-JAX f32 reference of the PyTorch forward (lax conv, NCHW / OIHW).
    y = jax.lax.conv_general_dilated(
        x, weight, window_strides=(p, p), padding="VALID",
        dimension_numbers=("NCHW", "OIHW", "NCHW"))
    y = y + bias.reshape(1, -1, 1, 1)
    B, D, Hp, Wp = y.shape
    return jnp.transpose(y.reshape(B, D, Hp * Wp), (0, 2, 1))


if __name__ == "__main__":
    key = jax.random.PRNGKey(0)
    k1, k2, k3 = jax.random.split(key, 3)

    # Small shapes consistent with the module: B=2, C=4, H=W=16, patch=8, D=32
    B, C, H, W = 2, 4, 16, 16
    patch_size = 8
    embed_dim = 32

    x = jax.random.normal(k1, (B, C, H, W), dtype=jnp.float32)
    weight = jax.random.normal(
        k2, (embed_dim, C, patch_size, patch_size), dtype=jnp.float32) * 0.02
    bias = jax.random.normal(k3, (embed_dim,), dtype=jnp.float32) * 0.02

    # One-time weight/bias relayout (kw-major, D padded to 128, bf16 compute).
    w3, b2 = prepare_patch_embed_params(weight, bias)

    def run(single_buffer):
        f = jax.jit(lambda xx: patch_embed(xx, w3, b2, patch_size, embed_dim,
                                           single_buffer_resident=single_buffer))
        return jax.block_until_ready(f(x))

    try:
        out = run(True)
    except Exception:
        # TODO(synk): this JAX build rejects pl.Buffered(1) single-buffering of
        # the resident weight/bias; fall back to default double buffering.
        out = run(False)

    ref = jax.block_until_ready(_reference(x, weight, bias, patch_size))
    assert out.shape == (B, (H // patch_size) * (W // patch_size), embed_dim)
    # bf16 matmul inputs + bf16 output with f32 accumulation: loosened tolerance.
    err = float(jnp.max(jnp.abs(out.astype(jnp.float32) - ref)))
    assert jnp.allclose(out.astype(jnp.float32), ref, atol=3e-2, rtol=3e-2), err

    print("KERNEL_OK")
</pallas_src>

<mosaic_0001>
module attributes {stable_mosaic.version = 11 : i64} {
  func.func @kernel(%arg0: i32, %arg1: i32, %arg2: memref<1x4x16x16xf32, #tpu.memory_space<vmem>>, %arg3: memref<8x32x128xbf16, #tpu.memory_space<vmem>>, %arg4: memref<1x128xf32, #tpu.memory_space<vmem>>, %arg5: memref<1x4x128xbf16, #tpu.memory_space<vmem>>) attributes {dimension_semantics = [#tpu.dimension_semantics<parallel>, #tpu.dimension_semantics<parallel>], iteration_bounds = array<i64: 2, 1>, scalar_prefetch = 0 : i64, scratch_operands = 0 : i64, tpu.core_type = #tpu.core_type<tc>, window_params = [{transform_indices = @transform_0, window_bounds = array<i64: 1, 4, 16, 16>}, {pipeline_mode = #tpu.pipeline_mode<synchronous>, transform_indices = @transform_1, window_bounds = array<i64: 8, 32, 128>}, {pipeline_mode = #tpu.pipeline_mode<synchronous>, transform_indices = @transform_2, window_bounds = array<i64: 1, 128>}, {transform_indices = @transform_3, window_bounds = array<i64: 1, 4, 128>}]} {
    %c0 = arith.constant 0 : index
    %c0_0 = arith.constant 0 : index
    %0 = vector.load %arg4[%c0, %c0_0] : memref<1x128xf32, #tpu.memory_space<vmem>>, vector<1x128xf32>
    %c0_1 = arith.constant 0 : index
    %c0_2 = arith.constant 0 : index
    %c0_3 = arith.constant 0 : index
    %c0_4 = arith.constant 0 : index
    %1 = vector.load %arg2[%c0_1, %c0_2, %c0_3, %c0_4] : memref<1x4x16x16xf32, #tpu.memory_space<vmem>>, vector<1x4x8x16xf32>
    %2 = vector.shape_cast %1 : vector<1x4x8x16xf32> to vector<4x8x16xf32>
    %3 = vector.shape_cast %2 : vector<4x8x16xf32> to vector<32x16xf32>
    %4 = tpu.transpose %3, [1, 0] : vector<32x16xf32> -> vector<16x32xf32>
    %5 = vector.shape_cast %4 : vector<16x32xf32> to vector<2x8x32xf32>
    %cst = arith.constant 0.000000e+00 : f32
    %6 = vector.broadcast %cst : f32 to vector<2x128xf32>
    %7 = vector.extract_strided_slice %5 {offsets = [0, 0, 0], sizes = [2, 1, 32], strides = [1, 1, 1]} : vector<2x8x32xf32> to vector<2x1x32xf32>
    %8 = vector.shape_cast %7 : vector<2x1x32xf32> to vector<2x32xf32>
    %9 = arith.truncf %8 : vector<2x32xf32> to vector<2x32xbf16>
    %c0_5 = arith.constant 0 : index
    %c0_6 = arith.constant 0 : index
    %c0_7 = arith.constant 0 : index
    %10 = vector.load %arg3[%c0_5, %c0_6, %c0_7] : memref<8x32x128xbf16, #tpu.memory_space<vmem>>, vector<1x32x128xbf16>
    %11 = vector.shape_cast %10 : vector<1x32x128xbf16> to vector<32x128xbf16>
    %cst_8 = arith.constant dense<0.000000e+00> : vector<2x128xf32>
    %12 = tpu.matmul %9, %11, %cst_8 {dimension_numbers = #tpu.dot_dimension_numbers<[1], [0], [0], [1], [0, 0, 1, 1], [], []>} : vector<2x32xbf16>, vector<32x128xbf16>, vector<2x128xf32> -> vector<2x128xf32>
    %13 = arith.addf %6, %12 : vector<2x128xf32>
    %14 = vector.extract_strided_slice %5 {offsets = [0, 1, 0], sizes = [2, 1, 32], strides = [1, 1, 1]} : vector<2x8x32xf32> to vector<2x1x32xf32>
    %15 = vector.shape_cast %14 : vector<2x1x32xf32> to vector<2x32xf32>
    %16 = arith.truncf %15 : vector<2x32xf32> to vector<2x32xbf16>
    %c1 = arith.constant 1 : index
    %c0_9 = arith.constant 0 : index
    %c0_10 = arith.constant 0 : index
    %17 = vector.load %arg3[%c1, %c0_9, %c0_10] : memref<8x32x128xbf16, #tpu.memory_space<vmem>>, vector<1x32x128xbf16>
    %18 = vector.shape_cast %17 : vector<1x32x128xbf16> to vector<32x128xbf16>
    %cst_11 = arith.constant dense<0.000000e+00> : vector<2x128xf32>
    %19 = tpu.matmul %16, %18, %cst_11 {dimension_numbers = #tpu.dot_dimension_numbers<[1], [0], [0], [1], [0, 0, 1, 1], [], []>} : vector<2x32xbf16>, vector<32x128xbf16>, vector<2x128xf32> -> vector<2x128xf32>
    %20 = arith.addf %13, %19 : vector<2x128xf32>
    %21 = vector.extract_strided_slice %5 {offsets = [0, 2, 0], sizes = [2, 1, 32], strides = [1, 1, 1]} : vector<2x8x32xf32> to vector<2x1x32xf32>
    %22 = vector.shape_cast %21 : vector<2x1x32xf32> to vector<2x32xf32>
    %23 = arith.truncf %22 : vector<2x32xf32> to vector<2x32xbf16>
    %c2 = arith.constant 2 : index
    %c0_12 = arith.constant 0 : index
    %c0_13 = arith.constant 0 : index
    %24 = vector.load %arg3[%c2, %c0_12, %c0_13] : memref<8x32x128xbf16, #tpu.memory_space<vmem>>, vector<1x32x128xbf16>
    %25 = vector.shape_cast %24 : vector<1x32x128xbf16> to vector<32x128xbf16>
    %cst_14 = arith.constant dense<0.000000e+00> : vector<2x128xf32>
    %26 = tpu.matmul %23, %25, %cst_14 {dimension_numbers = #tpu.dot_dimension_numbers<[1], [0], [0], [1], [0, 0, 1, 1], [], []>} : vector<2x32xbf16>, vector<32x128xbf16>, vector<2x128xf32> -> vector<2x128xf32>
    %27 = arith.addf %20, %26 : vector<2x128xf32>
    %28 = vector.extract_strided_slice %5 {offsets = [0, 3, 0], sizes = [2, 1, 32], strides = [1, 1, 1]} : vector<2x8x32xf32> to vector<2x1x32xf32>
    %29 = vector.shape_cast %28 : vector<2x1x32xf32> to vector<2x32xf32>
    %30 = arith.truncf %29 : vector<2x32xf32> to vector<2x32xbf16>
    %c3 = arith.constant 3 : index
    %c0_15 = arith.constant 0 : index
    %c0_16 = arith.constant 0 : index
    %31 = vector.load %arg3[%c3, %c0_15, %c0_16] : memref<8x32x128xbf16, #tpu.memory_space<vmem>>, vector<1x32x128xbf16>
    %32 = vector.shape_cast %31 : vector<1x32x128xbf16> to vector<32x128xbf16>
    %cst_17 = arith.constant dense<0.000000e+00> : vector<2x128xf32>
    %33 = tpu.matmul %30, %32, %cst_17 {dimension_numbers = #tpu.dot_dimension_numbers<[1], [0], [0], [1], [0, 0, 1, 1], [], []>} : vector<2x32xbf16>, vector<32x128xbf16>, vector<2x128xf32> -> vector<2x128xf32>
    %34 = arith.addf %27, %33 : vector<2x128xf32>
    %35 = vector.extract_strided_slice %5 {offsets = [0, 4, 0], sizes = [2, 1, 32], strides = [1, 1, 1]} : vector<2x8x32xf32> to vector<2x1x32xf32>
    %36 = vector.shape_cast %35 : vector<2x1x32xf32> to vector<2x32xf32>
    %37 = arith.truncf %36 : vector<2x32xf32> to vector<2x32xbf16>
    %c4 = arith.constant 4 : index
    %c0_18 = arith.constant 0 : index
    %c0_19 = arith.constant 0 : index
    %38 = vector.load %arg3[%c4, %c0_18, %c0_19] : memref<8x32x128xbf16, #tpu.memory_space<vmem>>, vector<1x32x128xbf16>
    %39 = vector.shape_cast %38 : vector<1x32x128xbf16> to vector<32x128xbf16>
    %cst_20 = arith.constant dense<0.000000e+00> : vector<2x128xf32>
    %40 = tpu.matmul %37, %39, %cst_20 {dimension_numbers = #tpu.dot_dimension_numbers<[1], [0], [0], [1], [0, 0, 1, 1], [], []>} : vector<2x32xbf16>, vector<32x128xbf16>, vector<2x128xf32> -> vector<2x128xf32>
    %41 = arith.addf %34, %40 : vector<2x128xf32>
    %42 = vector.extract_strided_slice %5 {offsets = [0, 5, 0], sizes = [2, 1, 32], strides = [1, 1, 1]} : vector<2x8x32xf32> to vector<2x1x32xf32>
    %43 = vector.shape_cast %42 : vector<2x1x32xf32> to vector<2x32xf32>
    %44 = arith.truncf %43 : vector<2x32xf32> to vector<2x32xbf16>
    %c5 = arith.constant 5 : index
    %c0_21 = arith.constant 0 : index
    %c0_22 = arith.constant 0 : index
    %45 = vector.load %arg3[%c5, %c0_21, %c0_22] : memref<8x32x128xbf16, #tpu.memory_space<vmem>>, vector<1x32x128xbf16>
    %46 = vector.shape_cast %45 : vector<1x32x128xbf16> to vector<32x128xbf16>
    %cst_23 = arith.constant dense<0.000000e+00> : vector<2x128xf32>
    %47 = tpu.matmul %44, %46, %cst_23 {dimension_numbers = #tpu.dot_dimension_numbers<[1], [0], [0], [1], [0, 0, 1, 1], [], []>} : vector<2x32xbf16>, vector<32x128xbf16>, vector<2x128xf32> -> vector<2x128xf32>
    %48 = arith.addf %41, %47 : vector<2x128xf32>
    %49 = vector.extract_strided_slice %5 {offsets = [0, 6, 0], sizes = [2, 1, 32], strides = [1, 1, 1]} : vector<2x8x32xf32> to vector<2x1x32xf32>
    %50 = vector.shape_cast %49 : vector<2x1x32xf32> to vector<2x32xf32>
    %51 = arith.truncf %50 : vector<2x32xf32> to vector<2x32xbf16>
    %c6 = arith.constant 6 : index
    %c0_24 = arith.constant 0 : index
    %c0_25 = arith.constant 0 : index
    %52 = vector.load %arg3[%c6, %c0_24, %c0_25] : memref<8x32x128xbf16, #tpu.memory_space<vmem>>, vector<1x32x128xbf16>
    %53 = vector.shape_cast %52 : vector<1x32x128xbf16> to vector<32x128xbf16>
    %cst_26 = arith.constant dense<0.000000e+00> : vector<2x128xf32>
    %54 = tpu.matmul %51, %53, %cst_26 {dimension_numbers = #tpu.dot_dimension_numbers<[1], [0], [0], [1], [0, 0, 1, 1], [], []>} : vector<2x32xbf16>, vector<32x128xbf16>, vector<2x128xf32> -> vector<2x128xf32>
    %55 = arith.addf %48, %54 : vector<2x128xf32>
    %56 = vector.extract_strided_slice %5 {offsets = [0, 7, 0], sizes = [2, 1, 32], strides = [1, 1, 1]} : vector<2x8x32xf32> to vector<2x1x32xf32>
    %57 = vector.shape_cast %56 : vector<2x1x32xf32> to vector<2x32xf32>
    %58 = arith.truncf %57 : vector<2x32xf32> to vector<2x32xbf16>
    %c7 = arith.constant 7 : index
    %c0_27 = arith.constant 0 : index
    %c0_28 = arith.constant 0 : index
    %59 = vector.load %arg3[%c7, %c0_27, %c0_28] : memref<8x32x128xbf16, #tpu.memory_space<vmem>>, vector<1x32x128xbf16>
    %60 = vector.shape_cast %59 : vector<1x32x128xbf16> to vector<32x128xbf16>
    %cst_29 = arith.constant dense<0.000000e+00> : vector<2x128xf32>
    %61 = tpu.matmul %58, %60, %cst_29 {dimension_numbers = #tpu.dot_dimension_numbers<[1], [0], [0], [1], [0, 0, 1, 1], [], []>} : vector<2x32xbf16>, vector<32x128xbf16>, vector<2x128xf32> -> vector<2x128xf32>
    %62 = arith.addf %55, %61 : vector<2x128xf32>
    %63 = vector.broadcast %0 : vector<1x128xf32> to vector<2x128xf32>
    %64 = arith.addf %62, %63 : vector<2x128xf32>
    %65 = arith.truncf %64 : vector<2x128xf32> to vector<2x128xbf16>
    %c0_30 = arith.constant 0 : index
    %c0_31 = arith.constant 0 : index
    %c0_32 = arith.constant 0 : index
    %66 = vector.load %arg5[%c0_30, %c0_31, %c0_32] : memref<1x4x128xbf16, #tpu.memory_space<vmem>>, vector<1x2x128xbf16>
    %67 = vector.shape_cast %66 : vector<1x2x128xbf16> to vector<2x128xbf16>
    %68 = vector.shape_cast %65 : vector<2x128xbf16> to vector<1x2x128xbf16>
    tpu.vector_store %arg5[%c0_30, %c0_31, %c0_32], %68 {strides = array<i32>} : memref<1x4x128xbf16, #tpu.memory_space<vmem>>, vector<1x2x128xbf16>,
    %c0_33 = arith.constant 0 : index
    %c0_34 = arith.constant 0 : index
    %c8 = arith.constant 8 : index
    %c0_35 = arith.constant 0 : index
    %69 = vector.load %arg2[%c0_33, %c0_34, %c8, %c0_35] : memref<1x4x16x16xf32, #tpu.memory_space<vmem>>, vector<1x4x8x16xf32>
    %70 = vector.shape_cast %69 : vector<1x4x8x16xf32> to vector<4x8x16xf32>
    %71 = vector.shape_cast %70 : vector<4x8x16xf32> to vector<32x16xf32>
    %72 = tpu.transpose %71, [1, 0] : vector<32x16xf32> -> vector<16x32xf32>
    %73 = vector.shape_cast %72 : vector<16x32xf32> to vector<2x8x32xf32>
    %cst_36 = arith.constant 0.000000e+00 : f32
    %74 = vector.broadcast %cst_36 : f32 to vector<2x128xf32>
    %75 = vector.extract_strided_slice %73 {offsets = [0, 0, 0], sizes = [2, 1, 32], strides = [1, 1, 1]} : vector<2x8x32xf32> to vector<2x1x32xf32>
    %76 = vector.shape_cast %75 : vector<2x1x32xf32> to vector<2x32xf32>
    %77 = arith.truncf %76 : vector<2x32xf32> to vector<2x32xbf16>
    %c0_37 = arith.constant 0 : index
    %c0_38 = arith.constant 0 : index
    %c0_39 = arith.constant 0 : index
    %78 = vector.load %arg3[%c0_37, %c0_38, %c0_39] : memref<8x32x128xbf16, #tpu.memory_space<vmem>>, vector<1x32x128xbf16>
    %79 = vector.shape_cast %78 : vector<1x32x128xbf16> to vector<32x128xbf16>
    %cst_40 = arith.constant dense<0.000000e+00> : vector<2x128xf32>
    %80 = tpu.matmul %77, %79, %cst_40 {dimension_numbers = #tpu.dot_dimension_numbers<[1], [0], [0], [1], [0, 0, 1, 1], [], []>} : vector<2x32xbf16>, vector<32x128xbf16>, vector<2x128xf32> -> vector<2x128xf32>
    %81 = arith.addf %74, %80 : vector<2x128xf32>
    %82 = vector.extract_strided_slice %73 {offsets = [0, 1, 0], sizes = [2, 1, 32], strides = [1, 1, 1]} : vector<2x8x32xf32> to vector<2x1x32xf32>
    %83 = vector.shape_cast %82 : vector<2x1x32xf32> to vector<2x32xf32>
    %84 = arith.truncf %83 : vector<2x32xf32> to vector<2x32xbf16>
    %c1_41 = arith.constant 1 : index
    %c0_42 = arith.constant 0 : index
    %c0_43 = arith.constant 0 : index
    %85 = vector.load %arg3[%c1_41, %c0_42, %c0_43] : memref<8x32x128xbf16, #tpu.memory_space<vmem>>, vector<1x32x128xbf16>
    %86 = vector.shape_cast %85 : vector<1x32x128xbf16> to vector<32x128xbf16>
    %cst_44 = arith.constant dense<0.000000e+00> : vector<2x128xf32>
    %87 = tpu.matmul %84, %86, %cst_44 {dimension_numbers = #tpu.dot_dimension_numbers<[1], [0], [0], [1], [0, 0, 1, 1], [], []>} : vector<2x32xbf16>, vector<32x128xbf16>, vector<2x128xf32> -> vector<2x128xf32>
    %88 = arith.addf %81, %87 : vector<2x128xf32>
    %89 = vector.extract_strided_slice %73 {offsets = [0, 2, 0], sizes = [2, 1, 32], strides = [1, 1, 1]} : vector<2x8x32xf32> to vector<2x1x32xf32>
    %90 = vector.shape_cast %89 : vector<2x1x32xf32> to vector<2x32xf32>
    %91 = arith.truncf %90 : vector<2x32xf32> to vector<2x32xbf16>
    %c2_45 = arith.constant 2 : index
    %c0_46 = arith.constant 0 : index
    %c0_47 = arith.constant 0 : index
    %92 = vector.load %arg3[%c2_45, %c0_46, %c0_47] : memref<8x32x128xbf16, #tpu.memory_space<vmem>>, vector<1x32x128xbf16>
    %93 = vector.shape_cast %92 : vector<1x32x128xbf16> to vector<32x128xbf16>
    %cst_48 = arith.constant dense<0.000000e+00> : vector<2x128xf32>
    %94 = tpu.matmul %91, %93, %cst_48 {dimension_numbers = #tpu.dot_dimension_numbers<[1], [0], [0], [1], [0, 0, 1, 1], [], []>} : vector<2x32xbf16>, vector<32x128xbf16>, vector<2x128xf32> -> vector<2x128xf32>
    %95 = arith.addf %88, %94 : vector<2x128xf32>
    %96 = vector.extract_strided_slice %73 {offsets = [0, 3, 0], sizes = [2, 1, 32], strides = [1, 1, 1]} : vector<2x8x32xf32> to vector<2x1x32xf32>
    %97 = vector.shape_cast %96 : vector<2x1x32xf32> to vector<2x32xf32>
    %98 = arith.truncf %97 : vector<2x32xf32> to vector<2x32xbf16>
    %c3_49 = arith.constant 3 : index
    %c0_50 = arith.constant 0 : index
    %c0_51 = arith.constant 0 : index
    %99 = vector.load %arg3[%c3_49, %c0_50, %c0_51] : memref<8x32x128xbf16, #tpu.memory_space<vmem>>, vector<1x32x128xbf16>
    %100 = vector.shape_cast %99 : vector<1x32x128xbf16> to vector<32x128xbf16>
    %cst_52 = arith.constant dense<0.000000e+00> : vector<2x128xf32>
    %101 = tpu.matmul %98, %100, %cst_52 {dimension_numbers = #tpu.dot_dimension_numbers<[1], [0], [0], [1], [0, 0, 1, 1], [], []>} : vector<2x32xbf16>, vector<32x128xbf16>, vector<2x128xf32> -> vector<2x128xf32>
    %102 = arith.addf %95, %101 : vector<2x128xf32>
    %103 = vector.extract_strided_slice %73 {offsets = [0, 4, 0], sizes = [2, 1, 32], strides = [1, 1, 1]} : vector<2x8x32xf32> to vector<2x1x32xf32>
    %104 = vector.shape_cast %103 : vector<2x1x32xf32> to vector<2x32xf32>
    %105 = arith.truncf %104 : vector<2x32xf32> to vector<2x32xbf16>
    %c4_53 = arith.constant 4 : index
    %c0_54 = arith.constant 0 : index
    %c0_55 = arith.constant 0 : index
    %106 = vector.load %arg3[%c4_53, %c0_54, %c0_55] : memref<8x32x128xbf16, #tpu.memory_space<vmem>>, vector<1x32x128xbf16>
    %107 = vector.shape_cast %106 : vector<1x32x128xbf16> to vector<32x128xbf16>
    %cst_56 = arith.constant dense<0.000000e+00> : vector<2x128xf32>
    %108 = tpu.matmul %105, %107, %cst_56 {dimension_numbers = #tpu.dot_dimension_numbers<[1], [0], [0], [1], [0, 0, 1, 1], [], []>} : vector<2x32xbf16>, vector<32x128xbf16>, vector<2x128xf32> -> vector<2x128xf32>
    %109 = arith.addf %102, %108 : vector<2x128xf32>
    %110 = vector.extract_strided_slice %73 {offsets = [0, 5, 0], sizes = [2, 1, 32], strides = [1, 1, 1]} : vector<2x8x32xf32> to vector<2x1x32xf32>
    %111 = vector.shape_cast %110 : vector<2x1x32xf32> to vector<2x32xf32>
    %112 = arith.truncf %111 : vector<2x32xf32> to vector<2x32xbf16>
    %c5_57 = arith.constant 5 : index
    %c0_58 = arith.constant 0 : index
    %c0_59 = arith.constant 0 : index
    %113 = vector.load %arg3[%c5_57, %c0_58, %c0_59] : memref<8x32x128xbf16, #tpu.memory_space<vmem>>, vector<1x32x128xbf16>
    %114 = vector.shape_cast %113 : vector<1x32x128xbf16> to vector<32x128xbf16>
    %cst_60 = arith.constant dense<0.000000e+00> : vector<2x128xf32>
    %115 = tpu.matmul %112, %114, %cst_60 {dimension_numbers = #tpu.dot_dimension_numbers<[1], [0], [0], [1], [0, 0, 1, 1], [], []>} : vector<2x32xbf16>, vector<32x128xbf16>, vector<2x128xf32> -> vector<2x128xf32>
    %116 = arith.addf %109, %115 : vector<2x128xf32>
    %117 = vector.extract_strided_slice %73 {offsets = [0, 6, 0], sizes = [2, 1, 32], strides = [1, 1, 1]} : vector<2x8x32xf32> to vector<2x1x32xf32>
    %118 = vector.shape_cast %117 : vector<2x1x32xf32> to vector<2x32xf32>
    %119 = arith.truncf %118 : vector<2x32xf32> to vector<2x32xbf16>
    %c6_61 = arith.constant 6 : index
    %c0_62 = arith.constant 0 : index
    %c0_63 = arith.constant 0 : index
    %120 = vector.load %arg3[%c6_61, %c0_62, %c0_63] : memref<8x32x128xbf16, #tpu.memory_space<vmem>>, vector<1x32x128xbf16>
    %121 = vector.shape_cast %120 : vector<1x32x128xbf16> to vector<32x128xbf16>
    %cst_64 = arith.constant dense<0.000000e+00> : vector<2x128xf32>
    %122 = tpu.matmul %119, %121, %cst_64 {dimension_numbers = #tpu.dot_dimension_numbers<[1], [0], [0], [1], [0, 0, 1, 1], [], []>} : vector<2x32xbf16>, vector<32x128xbf16>, vector<2x128xf32> -> vector<2x128xf32>
    %123 = arith.addf %116, %122 : vector<2x128xf32>
    %124 = vector.extract_strided_slice %73 {offsets = [0, 7, 0], sizes = [2, 1, 32], strides = [1, 1, 1]} : vector<2x8x32xf32> to vector<2x1x32xf32>
    %125 = vector.shape_cast %124 : vector<2x1x32xf32> to vector<2x32xf32>
    %126 = arith.truncf %125 : vector<2x32xf32> to vector<2x32xbf16>
    %c7_65 = arith.constant 7 : index
    %c0_66 = arith.constant 0 : index
    %c0_67 = arith.constant 0 : index
    %127 = vector.load %arg3[%c7_65, %c0_66, %c0_67] : memref<8x32x128xbf16, #tpu.memory_space<vmem>>, vector<1x32x128xbf16>
    %128 = vector.shape_cast %127 : vector<1x32x128xbf16> to vector<32x128xbf16>
    %cst_68 = arith.constant dense<0.000000e+00> : vector<2x128xf32>
    %129 = tpu.matmul %126, %128, %cst_68 {dimension_numbers = #tpu.dot_dimension_numbers<[1], [0], [0], [1], [0, 0, 1, 1], [], []>} : vector<2x32xbf16>, vector<32x128xbf16>, vector<2x128xf32> -> vector<2x128xf32>
    %130 = arith.addf %123, %129 : vector<2x128xf32>
    %131 = vector.broadcast %0 : vector<1x128xf32> to vector<2x128xf32>
    %132 = arith.addf %130, %131 : vector<2x128xf32>
    %133 = arith.truncf %132 : vector<2x128xf32> to vector<2x128xbf16>
    %c0_69 = arith.constant 0 : index
    %c2_70 = arith.constant 2 : index
    %c0_71 = arith.constant 0 : index
    %134 = vector.load %arg5[%c0_69, %c2_70, %c0_71] : memref<1x4x128xbf16, #tpu.memory_space<vmem>>, vector<1x2x128xbf16>
    %135 = vector.shape_cast %134 : vector<1x2x128xbf16> to vector<2x128xbf16>
    %136 = vector.shape_cast %133 : vector<2x128xbf16> to vector<1x2x128xbf16>
    tpu.vector_store %arg5[%c0_69, %c2_70, %c0_71], %136 {strides = array<i32>} : memref<1x4x128xbf16, #tpu.memory_space<vmem>>, vector<1x2x128xbf16>,
    return
  }
  func.func @transform_0(%arg0: i32, %arg1: i32) -> (i32, i32, i32, i32) {
    %c0_i32 = arith.constant 0 : i32
    %c0_i32_0 = arith.constant 0 : i32
    %c0_i32_1 = arith.constant 0 : i32
    return %arg0, %c0_i32, %arg1, %c0_i32_0 : i32, i32, i32, i32
  }
  func.func @transform_1(%arg0: i32, %arg1: i32) -> (i32, i32, i32) {
    %c0_i32 = arith.constant 0 : i32
    %c0_i32_0 = arith.constant 0 : i32
    %c0_i32_1 = arith.constant 0 : i32
    %c0_i32_2 = arith.constant 0 : i32
    return %c0_i32, %c0_i32_0, %c0_i32_1 : i32, i32, i32
  }
  func.func @transform_2(%arg0: i32, %arg1: i32) -> (i32, i32) {
    %c0_i32 = arith.constant 0 : i32
    %c0_i32_0 = arith.constant 0 : i32
    %c0_i32_1 = arith.constant 0 : i32
    return %c0_i32, %c0_i32_0 : i32, i32
  }
  func.func @transform_3(%arg0: i32, %arg1: i32) -> (i32, i32, i32) {
    %c0_i32 = arith.constant 0 : i32
    %c0_i32_0 = arith.constant 0 : i32
    return %arg0, %arg1, %c0_i32 : i32, i32, i32
  }
}

module attributes {stable_mosaic.version = 11 : i64} {
  func.func @kernel(%arg0: i32, %arg1: i32, %arg2: memref<1x4x16x16xf32, #tpu.memory_space<vmem>>, %arg3: memref<8x32x128xbf16, #tpu.memory_space<vmem>>, %arg4: memref<1x128xf32, #tpu.memory_space<vmem>>, %arg5: memref<1x4x128xbf16, #tpu.memory_space<vmem>>) attributes {dimension_semantics = [#tpu.dimension_semantics<parallel>, #tpu.dimension_semantics<parallel>], iteration_bounds = array<i64: 2, 1>, scalar_prefetch = 0 : i64, scratch_operands = 0 : i64, tpu.core_type = #tpu.core_type<tc>, window_params = [{transform_indices = @transform_0, window_bounds = array<i64: 1, 4, 16, 16>}, {pipeline_mode = #tpu.pipeline_mode<synchronous>, transform_indices = @transform_1, window_bounds = array<i64: 8, 32, 128>}, {pipeline_mode = #tpu.pipeline_mode<synchronous>, transform_indices = @transform_2, window_bounds = array<i64: 1, 128>}, {transform_indices = @transform_3, window_bounds = array<i64: 1, 4, 128>}]} {
    %c0 = arith.constant 0 : index
    %c0_0 = arith.constant 0 : index
    %0 = vector.load %arg4[%c0, %c0_0] : memref<1x128xf32, #tpu.memory_space<vmem>>, vector<1x128xf32>
    %c0_1 = arith.constant 0 : index
    %c0_2 = arith.constant 0 : index
    %c0_3 = arith.constant 0 : index
    %c0_4 = arith.constant 0 : index
    %1 = vector.load %arg2[%c0_1, %c0_2, %c0_3, %c0_4] : memref<1x4x16x16xf32, #tpu.memory_space<vmem>>, vector<1x4x8x16xf32>
    %2 = vector.shape_cast %1 : vector<1x4x8x16xf32> to vector<4x8x16xf32>
    %3 = vector.shape_cast %2 : vector<4x8x16xf32> to vector<32x16xf32>
    %4 = tpu.transpose %3, [1, 0] : vector<32x16xf32> -> vector<16x32xf32>
    %5 = vector.shape_cast %4 : vector<16x32xf32> to vector<2x8x32xf32>
    %cst = arith.constant 0.000000e+00 : f32
    %6 = vector.broadcast %cst : f32 to vector<2x128xf32>
    %7 = vector.extract_strided_slice %5 {offsets = [0, 0, 0], sizes = [2, 1, 32], strides = [1, 1, 1]} : vector<2x8x32xf32> to vector<2x1x32xf32>
    %8 = vector.shape_cast %7 : vector<2x1x32xf32> to vector<2x32xf32>
    %9 = arith.truncf %8 : vector<2x32xf32> to vector<2x32xbf16>
    %c0_5 = arith.constant 0 : index
    %c0_6 = arith.constant 0 : index
    %c0_7 = arith.constant 0 : index
    %10 = vector.load %arg3[%c0_5, %c0_6, %c0_7] : memref<8x32x128xbf16, #tpu.memory_space<vmem>>, vector<1x32x128xbf16>
    %11 = vector.shape_cast %10 : vector<1x32x128xbf16> to vector<32x128xbf16>
    %cst_8 = arith.constant dense<0.000000e+00> : vector<2x128xf32>
    %12 = tpu.matmul %9, %11, %cst_8 {dimension_numbers = #tpu.dot_dimension_numbers<[1], [0], [0], [1], [0, 0, 1, 1], [], []>} : vector<2x32xbf16>, vector<32x128xbf16>, vector<2x128xf32> -> vector<2x128xf32>
    %13 = arith.addf %6, %12 : vector<2x128xf32>
    %14 = vector.extract_strided_slice %5 {offsets = [0, 1, 0], sizes = [2, 1, 32], strides = [1, 1, 1]} : vector<2x8x32xf32> to vector<2x1x32xf32>
    %15 = vector.shape_cast %14 : vector<2x1x32xf32> to vector<2x32xf32>
    %16 = arith.truncf %15 : vector<2x32xf32> to vector<2x32xbf16>
    %c1 = arith.constant 1 : index
    %c0_9 = arith.constant 0 : index
    %c0_10 = arith.constant 0 : index
    %17 = vector.load %arg3[%c1, %c0_9, %c0_10] : memref<8x32x128xbf16, #tpu.memory_space<vmem>>, vector<1x32x128xbf16>
    %18 = vector.shape_cast %17 : vector<1x32x128xbf16> to vector<32x128xbf16>
    %cst_11 = arith.constant dense<0.000000e+00> : vector<2x128xf32>
    %19 = tpu.matmul %16, %18, %cst_11 {dimension_numbers = #tpu.dot_dimension_numbers<[1], [0], [0], [1], [0, 0, 1, 1], [], []>} : vector<2x32xbf16>, vector<32x128xbf16>, vector<2x128xf32> -> vector<2x128xf32>
    %20 = arith.addf %13, %19 : vector<2x128xf32>
    %21 = vector.extract_strided_slice %5 {offsets = [0, 2, 0], sizes = [2, 1, 32], strides = [1, 1, 1]} : vector<2x8x32xf32> to vector<2x1x32xf32>
    %22 = vector.shape_cast %21 : vector<2x1x32xf32> to vector<2x32xf32>
    %23 = arith.truncf %22 : vector<2x32xf32> to vector<2x32xbf16>
    %c2 = arith.constant 2 : index
    %c0_12 = arith.constant 0 : index
    %c0_13 = arith.constant 0 : index
    %24 = vector.load %arg3[%c2, %c0_12, %c0_13] : memref<8x32x128xbf16, #tpu.memory_space<vmem>>, vector<1x32x128xbf16>
    %25 = vector.shape_cast %24 : vector<1x32x128xbf16> to vector<32x128xbf16>
    %cst_14 = arith.constant dense<0.000000e+00> : vector<2x128xf32>
    %26 = tpu.matmul %23, %25, %cst_14 {dimension_numbers = #tpu.dot_dimension_numbers<[1], [0], [0], [1], [0, 0, 1, 1], [], []>} : vector<2x32xbf16>, vector<32x128xbf16>, vector<2x128xf32> -> vector<2x128xf32>
    %27 = arith.addf %20, %26 : vector<2x128xf32>
    %28 = vector.extract_strided_slice %5 {offsets = [0, 3, 0], sizes = [2, 1, 32], strides = [1, 1, 1]} : vector<2x8x32xf32> to vector<2x1x32xf32>
    %29 = vector.shape_cast %28 : vector<2x1x32xf32> to vector<2x32xf32>
    %30 = arith.truncf %29 : vector<2x32xf32> to vector<2x32xbf16>
    %c3 = arith.constant 3 : index
    %c0_15 = arith.constant 0 : index
    %c0_16 = arith.constant 0 : index
    %31 = vector.load %arg3[%c3, %c0_15, %c0_16] : memref<8x32x128xbf16, #tpu.memory_space<vmem>>, vector<1x32x128xbf16>
    %32 = vector.shape_cast %31 : vector<1x32x128xbf16> to vector<32x128xbf16>
    %cst_17 = arith.constant dense<0.000000e+00> : vector<2x128xf32>
    %33 = tpu.matmul %30, %32, %cst_17 {dimension_numbers = #tpu.dot_dimension_numbers<[1], [0], [0], [1], [0, 0, 1, 1], [], []>} : vector<2x32xbf16>, vector<32x128xbf16>, vector<2x128xf32> -> vector<2x128xf32>
    %34 = arith.addf %27, %33 : vector<2x128xf32>
    %35 = vector.extract_strided_slice %5 {offsets = [0, 4, 0], sizes = [2, 1, 32], strides = [1, 1, 1]} : vector<2x8x32xf32> to vector<2x1x32xf32>
    %36 = vector.shape_cast %35 : vector<2x1x32xf32> to vector<2x32xf32>
    %37 = arith.truncf %36 : vector<2x32xf32> to vector<2x32xbf16>
    %c4 = arith.constant 4 : index
    %c0_18 = arith.constant 0 : index
    %c0_19 = arith.constant 0 : index
    %38 = vector.load %arg3[%c4, %c0_18, %c0_19] : memref<8x32x128xbf16, #tpu.memory_space<vmem>>, vector<1x32x128xbf16>
    %39 = vector.shape_cast %38 : vector<1x32x128xbf16> to vector<32x128xbf16>
    %cst_20 = arith.constant dense<0.000000e+00> : vector<2x128xf32>
    %40 = tpu.matmul %37, %39, %cst_20 {dimension_numbers = #tpu.dot_dimension_numbers<[1], [0], [0], [1], [0, 0, 1, 1], [], []>} : vector<2x32xbf16>, vector<32x128xbf16>, vector<2x128xf32> -> vector<2x128xf32>
    %41 = arith.addf %34, %40 : vector<2x128xf32>
    %42 = vector.extract_strided_slice %5 {offsets = [0, 5, 0], sizes = [2, 1, 32], strides = [1, 1, 1]} : vector<2x8x32xf32> to vector<2x1x32xf32>
    %43 = vector.shape_cast %42 : vector<2x1x32xf32> to vector<2x32xf32>
    %44 = arith.truncf %43 : vector<2x32xf32> to vector<2x32xbf16>
    %c5 = arith.constant 5 : index
    %c0_21 = arith.constant 0 : index
    %c0_22 = arith.constant 0 : index
    %45 = vector.load %arg3[%c5, %c0_21, %c0_22] : memref<8x32x128xbf16, #tpu.memory_space<vmem>>, vector<1x32x128xbf16>
    %46 = vector.shape_cast %45 : vector<1x32x128xbf16> to vector<32x128xbf16>
    %cst_23 = arith.constant dense<0.000000e+00> : vector<2x128xf32>
    %47 = tpu.matmul %44, %46, %cst_23 {dimension_numbers = #tpu.dot_dimension_numbers<[1], [0], [0], [1], [0, 0, 1, 1], [], []>} : vector<2x32xbf16>, vector<32x128xbf16>, vector<2x128xf32> -> vector<2x128xf32>
    %48 = arith.addf %41, %47 : vector<2x128xf32>
    %49 = vector.extract_strided_slice %5 {offsets = [0, 6, 0], sizes = [2, 1, 32], strides = [1, 1, 1]} : vector<2x8x32xf32> to vector<2x1x32xf32>
    %50 = vector.shape_cast %49 : vector<2x1x32xf32> to vector<2x32xf32>
    %51 = arith.truncf %50 : vector<2x32xf32> to vector<2x32xbf16>
    %c6 = arith.constant 6 : index
    %c0_24 = arith.constant 0 : index
    %c0_25 = arith.constant 0 : index
    %52 = vector.load %arg3[%c6, %c0_24, %c0_25] : memref<8x32x128xbf16, #tpu.memory_space<vmem>>, vector<1x32x128xbf16>
    %53 = vector.shape_cast %52 : vector<1x32x128xbf16> to vector<32x128xbf16>
    %cst_26 = arith.constant dense<0.000000e+00> : vector<2x128xf32>
    %54 = tpu.matmul %51, %53, %cst_26 {dimension_numbers = #tpu.dot_dimension_numbers<[1], [0], [0], [1], [0, 0, 1, 1], [], []>} : vector<2x32xbf16>, vector<32x128xbf16>, vector<2x128xf32> -> vector<2x128xf32>
    %55 = arith.addf %48, %54 : vector<2x128xf32>
    %56 = vector.extract_strided_slice %5 {offsets = [0, 7, 0], sizes = [2, 1, 32], strides = [1, 1, 1]} : vector<2x8x32xf32> to vector<2x1x32xf32>
    %57 = vector.shape_cast %56 : vector<2x1x32xf32> to vector<2x32xf32>
    %58 = arith.truncf %57 : vector<2x32xf32> to vector<2x32xbf16>
    %c7 = arith.constant 7 : index
    %c0_27 = arith.constant 0 : index
    %c0_28 = arith.constant 0 : index
    %59 = vector.load %arg3[%c7, %c0_27, %c0_28] : memref<8x32x128xbf16, #tpu.memory_space<vmem>>, vector<1x32x128xbf16>
    %60 = vector.shape_cast %59 : vector<1x32x128xbf16> to vector<32x128xbf16>
    %cst_29 = arith.constant dense<0.000000e+00> : vector<2x128xf32>
    %61 = tpu.matmul %58, %60, %cst_29 {dimension_numbers = #tpu.dot_dimension_numbers<[1], [0], [0], [1], [0, 0, 1, 1], [], []>} : vector<2x32xbf16>, vector<32x128xbf16>, vector<2x128xf32> -> vector<2x128xf32>
    %62 = arith.addf %55, %61 : vector<2x128xf32>
    %63 = vector.broadcast %0 : vector<1x128xf32> to vector<2x128xf32>
    %64 = arith.addf %62, %63 : vector<2x128xf32>
    %65 = arith.truncf %64 : vector<2x128xf32> to vector<2x128xbf16>
    %c0_30 = arith.constant 0 : index
    %c0_31 = arith.constant 0 : index
    %c0_32 = arith.constant 0 : index
    %66 = vector.load %arg5[%c0_30, %c0_31, %c0_32] : memref<1x4x128xbf16, #tpu.memory_space<vmem>>, vector<1x2x128xbf16>
    %67 = vector.shape_cast %66 : vector<1x2x128xbf16> to vector<2x128xbf16>
    %68 = vector.shape_cast %65 : vector<2x128xbf16> to vector<1x2x128xbf16>
    tpu.vector_store %arg5[%c0_30, %c0_31, %c0_32], %68 {strides = array<i32>} : memref<1x4x128xbf16, #tpu.memory_space<vmem>>, vector<1x2x128xbf16>,
    %c0_33 = arith.constant 0 : index
    %c0_34 = arith.constant 0 : index
    %c8 = arith.constant 8 : index
    %c0_35 = arith.constant 0 : index
    %69 = vector.load %arg2[%c0_33, %c0_34, %c8, %c0_35] : memref<1x4x16x16xf32, #tpu.memory_space<vmem>>, vector<1x4x8x16xf32>
    %70 = vector.shape_cast %69 : vector<1x4x8x16xf32> to vector<4x8x16xf32>
    %71 = vector.shape_cast %70 : vector<4x8x16xf32> to vector<32x16xf32>
    %72 = tpu.transpose %71, [1, 0] : vector<32x16xf32> -> vector<16x32xf32>
    %73 = vector.shape_cast %72 : vector<16x32xf32> to vector<2x8x32xf32>
    %cst_36 = arith.constant 0.000000e+00 : f32
    %74 = vector.broadcast %cst_36 : f32 to vector<2x128xf32>
    %75 = vector.extract_strided_slice %73 {offsets = [0, 0, 0], sizes = [2, 1, 32], strides = [1, 1, 1]} : vector<2x8x32xf32> to vector<2x1x32xf32>
    %76 = vector.shape_cast %75 : vector<2x1x32xf32> to vector<2x32xf32>
    %77 = arith.truncf %76 : vector<2x32xf32> to vector<2x32xbf16>
    %c0_37 = arith.constant 0 : index
    %c0_38 = arith.constant 0 : index
    %c0_39 = arith.constant 0 : index
    %78 = vector.load %arg3[%c0_37, %c0_38, %c0_39] : memref<8x32x128xbf16, #tpu.memory_space<vmem>>, vector<1x32x128xbf16>
    %79 = vector.shape_cast %78 : vector<1x32x128xbf16> to vector<32x128xbf16>
    %cst_40 = arith.constant dense<0.000000e+00> : vector<2x128xf32>
    %80 = tpu.matmul %77, %79, %cst_40 {dimension_numbers = #tpu.dot_dimension_numbers<[1], [0], [0], [1], [0, 0, 1, 1], [], []>} : vector<2x32xbf16>, vector<32x128xbf16>, vector<2x128xf32> -> vector<2x128xf32>
    %81 = arith.addf %74, %80 : vector<2x128xf32>
    %82 = vector.extract_strided_slice %73 {offsets = [0, 1, 0], sizes = [2, 1, 32], strides = [1, 1, 1]} : vector<2x8x32xf32> to vector<2x1x32xf32>
    %83 = vector.shape_cast %82 : vector<2x1x32xf32> to vector<2x32xf32>
    %84 = arith.truncf %83 : vector<2x32xf32> to vector<2x32xbf16>
    %c1_41 = arith.constant 1 : index
    %c0_42 = arith.constant 0 : index
    %c0_43 = arith.constant 0 : index
    %85 = vector.load %arg3[%c1_41, %c0_42, %c0_43] : memref<8x32x128xbf16, #tpu.memory_space<vmem>>, vector<1x32x128xbf16>
    %86 = vector.shape_cast %85 : vector<1x32x128xbf16> to vector<32x128xbf16>
    %cst_44 = arith.constant dense<0.000000e+00> : vector<2x128xf32>
    %87 = tpu.matmul %84, %86, %cst_44 {dimension_numbers = #tpu.dot_dimension_numbers<[1], [0], [0], [1], [0, 0, 1, 1], [], []>} : vector<2x32xbf16>, vector<32x128xbf16>, vector<2x128xf32> -> vector<2x128xf32>
    %88 = arith.addf %81, %87 : vector<2x128xf32>
    %89 = vector.extract_strided_slice %73 {offsets = [0, 2, 0], sizes = [2, 1, 32], strides = [1, 1, 1]} : vector<2x8x32xf32> to vector<2x1x32xf32>
    %90 = vector.shape_cast %89 : vector<2x1x32xf32> to vector<2x32xf32>
    %91 = arith.truncf %90 : vector<2x32xf32> to vector<2x32xbf16>
    %c2_45 = arith.constant 2 : index
    %c0_46 = arith.constant 0 : index
    %c0_47 = arith.constant 0 : index
    %92 = vector.load %arg3[%c2_45, %c0_46, %c0_47] : memref<8x32x128xbf16, #tpu.memory_space<vmem>>, vector<1x32x128xbf16>
    %93 = vector.shape_cast %92 : vector<1x32x128xbf16> to vector<32x128xbf16>
    %cst_48 = arith.constant dense<0.000000e+00> : vector<2x128xf32>
    %94 = tpu.matmul %91, %93, %cst_48 {dimension_numbers = #tpu.dot_dimension_numbers<[1], [0], [0], [1], [0, 0, 1, 1], [], []>} : vector<2x32xbf16>, vector<32x128xbf16>, vector<2x128xf32> -> vector<2x128xf32>
    %95 = arith.addf %88, %94 : vector<2x128xf32>
    %96 = vector.extract_strided_slice %73 {offsets = [0, 3, 0], sizes = [2, 1, 32], strides = [1, 1, 1]} : vector<2x8x32xf32> to vector<2x1x32xf32>
    %97 = vector.shape_cast %96 : vector<2x1x32xf32> to vector<2x32xf32>
    %98 = arith.truncf %97 : vector<2x32xf32> to vector<2x32xbf16>
    %c3_49 = arith.constant 3 : index
    %c0_50 = arith.constant 0 : index
    %c0_51 = arith.constant 0 : index
    %99 = vector.load %arg3[%c3_49, %c0_50, %c0_51] : memref<8x32x128xbf16, #tpu.memory_space<vmem>>, vector<1x32x128xbf16>
    %100 = vector.shape_cast %99 : vector<1x32x128xbf16> to vector<32x128xbf16>
    %cst_52 = arith.constant dense<0.000000e+00> : vector<2x128xf32>
    %101 = tpu.matmul %98, %100, %cst_52 {dimension_numbers = #tpu.dot_dimension_numbers<[1], [0], [0], [1], [0, 0, 1, 1], [], []>} : vector<2x32xbf16>, vector<32x128xbf16>, vector<2x128xf32> -> vector<2x128xf32>
    %102 = arith.addf %95, %101 : vector<2x128xf32>
    %103 = vector.extract_strided_slice %73 {offsets = [0, 4, 0], sizes = [2, 1, 32], strides = [1, 1, 1]} : vector<2x8x32xf32> to vector<2x1x32xf32>
    %104 = vector.shape_cast %103 : vector<2x1x32xf32> to vector<2x32xf32>
    %105 = arith.truncf %104 : vector<2x32xf32> to vector<2x32xbf16>
    %c4_53 = arith.constant 4 : index
    %c0_54 = arith.constant 0 : index
    %c0_55 = arith.constant 0 : index
    %106 = vector.load %arg3[%c4_53, %c0_54, %c0_55] : memref<8x32x128xbf16, #tpu.memory_space<vmem>>, vector<1x32x128xbf16>
    %107 = vector.shape_cast %106 : vector<1x32x128xbf16> to vector<32x128xbf16>
    %cst_56 = arith.constant dense<0.000000e+00> : vector<2x128xf32>
    %108 = tpu.matmul %105, %107, %cst_56 {dimension_numbers = #tpu.dot_dimension_numbers<[1], [0], [0], [1], [0, 0, 1, 1], [], []>} : vector<2x32xbf16>, vector<32x128xbf16>, vector<2x128xf32> -> vector<2x128xf32>
    %109 = arith.addf %102, %108 : vector<2x128xf32>
    %110 = vector.extract_strided_slice %73 {offsets = [0, 5, 0], sizes = [2, 1, 32], strides = [1, 1, 1]} : vector<2x8x32xf32> to vector<2x1x32xf32>
    %111 = vector.shape_cast %110 : vector<2x1x32xf32> to vector<2x32xf32>
    %112 = arith.truncf %111 : vector<2x32xf32> to vector<2x32xbf16>
    %c5_57 = arith.constant 5 : index
    %c0_58 = arith.constant 0 : index
    %c0_59 = arith.constant 0 : index
    %113 = vector.load %arg3[%c5_57, %c0_58, %c0_59] : memref<8x32x128xbf16, #tpu.memory_space<vmem>>, vector<1x32x128xbf16>
    %114 = vector.shape_cast %113 : vector<1x32x128xbf16> to vector<32x128xbf16>
    %cst_60 = arith.constant dense<0.000000e+00> : vector<2x128xf32>
    %115 = tpu.matmul %112, %114, %cst_60 {dimension_numbers = #tpu.dot_dimension_numbers<[1], [0], [0], [1], [0, 0, 1, 1], [], []>} : vector<2x32xbf16>, vector<32x128xbf16>, vector<2x128xf32> -> vector<2x128xf32>
    %116 = arith.addf %109, %115 : vector<2x128xf32>
    %117 = vector.extract_strided_slice %73 {offsets = [0, 6, 0], sizes = [2, 1, 32], strides = [1, 1, 1]} : vector<2x8x32xf32> to vector<2x1x32xf32>
    %118 = vector.shape_cast %117 : vector<2x1x32xf32> to vector<2x32xf32>
    %119 = arith.truncf %118 : vector<2x32xf32> to vector<2x32xbf16>
    %c6_61 = arith.constant 6 : index
    %c0_62 = arith.constant 0 : index
    %c0_63 = arith.constant 0 : index
    %120 = vector.load %arg3[%c6_61, %c0_62, %c0_63] : memref<8x32x128xbf16, #tpu.memory_space<vmem>>, vector<1x32x128xbf16>
    %121 = vector.shape_cast %120 : vector<1x32x128xbf16> to vector<32x128xbf16>
    %cst_64 = arith.constant dense<0.000000e+00> : vector<2x128xf32>
    %122 = tpu.matmul %119, %121, %cst_64 {dimension_numbers = #tpu.dot_dimension_numbers<[1], [0], [0], [1], [0, 0, 1, 1], [], []>} : vector<2x32xbf16>, vector<32x128xbf16>, vector<2x128xf32> -> vector<2x128xf32>
    %123 = arith.addf %116, %122 : vector<2x128xf32>
    %124 = vector.extract_strided_slice %73 {offsets = [0, 7, 0], sizes = [2, 1, 32], strides = [1, 1, 1]} : vector<2x8x32xf32> to vector<2x1x32xf32>
    %125 = vector.shape_cast %124 : vector<2x1x32xf32> to vector<2x32xf32>
    %126 = arith.truncf %125 : vector<2x32xf32> to vector<2x32xbf16>
    %c7_65 = arith.constant 7 : index
    %c0_66 = arith.constant 0 : index
    %c0_67 = arith.constant 0 : index
    %127 = vector.load %arg3[%c7_65, %c0_66, %c0_67] : memref<8x32x128xbf16, #tpu.memory_space<vmem>>, vector<1x32x128xbf16>
    %128 = vector.shape_cast %127 : vector<1x32x128xbf16> to vector<32x128xbf16>
    %cst_68 = arith.constant dense<0.000000e+00> : vector<2x128xf32>
    %129 = tpu.matmul %126, %128, %cst_68 {dimension_numbers = #tpu.dot_dimension_numbers<[1], [0], [0], [1], [0, 0, 1, 1], [], []>} : vector<2x32xbf16>, vector<32x128xbf16>, vector<2x128xf32> -> vector<2x128xf32>
    %130 = arith.addf %123, %129 : vector<2x128xf32>
    %131 = vector.broadcast %0 : vector<1x128xf32> to vector<2x128xf32>
    %132 = arith.addf %130, %131 : vector<2x128xf32>
    %133 = arith.truncf %132 : vector<2x128xf32> to vector<2x128xbf16>
    %c0_69 = arith.constant 0 : index
    %c2_70 = arith.constant 2 : index
    %c0_71 = arith.constant 0 : index
    %134 = vector.load %arg5[%c0_69, %c2_70, %c0_71] : memref<1x4x128xbf16, #tpu.memory_space<vmem>>, vector<1x2x128xbf16>
    %135 = vector.shape_cast %134 : vector<1x2x128xbf16> to vector<2x128xbf16>
    %136 = vector.shape_cast %133 : vector<2x128xbf16> to vector<1x2x128xbf16>
    tpu.vector_store %arg5[%c0_69, %c2_70, %c0_71], %136 {strides = array<i32>} : memref<1x4x128xbf16, #tpu.memory_space<vmem>>, vector<1x2x128xbf16>,
    return
  }
  func.func @transform_0(%arg0: i32, %arg1: i32) -> (i32, i32, i32, i32) {
    %c0_i32 = arith.constant 0 : i32
    %c0_i32_0 = arith.constant 0 : i32
    %c0_i32_1 = arith.constant 0 : i32
    return %arg0, %c0_i32, %arg1, %c0_i32_0 : i32, i32, i32, i32
  }
  func.func @transform_1(%arg0: i32, %arg1: i32) -> (i32, i32, i32) {
    %c0_i32 = arith.constant 0 : i32
    %c0_i32_0 = arith.constant 0 : i32
    %c0_i32_1 = arith.constant 0 : i32
    %c0_i32_2 = arith.constant 0 : i32
    return %c0_i32, %c0_i32_0, %c0_i32_1 : i32, i32, i32
  }
  func.func @transform_2(%arg0: i32, %arg1: i32) -> (i32, i32) {
    %c0_i32 = arith.constant 0 : i32
    %c0_i32_0 = arith.constant 0 : i32
    %c0_i32_1 = arith.constant 0 : i32
    return %c0_i32, %c0_i32_0 : i32, i32
  }
  func.func @transform_3(%arg0: i32, %arg1: i32) -> (i32, i32, i32) {
    %c0_i32 = arith.constant 0 : i32
    %c0_i32_0 = arith.constant 0 : i32
    return %arg0, %arg1, %c0_i32 : i32, i32, i32
  }
}

</mosaic_0001>

<llo_original>
// kernel: _lambda_.1
$region0: #{_lambda_.1}
  #allocation0 [shape = 'u32[]', space=smem, size = 0x4, offset = 0x4, fixed_abs, tag = 'smem constant byte address 0x4 - core index']
  #allocation1 [shape = 'u32[144,128]{1,0:T(1,128)}', space=vmem, size = 0x12000, scoped, tag = 'internal scratch']
  %s0 = inlined_call_operand.hbm [shape: f32[2,4,16,16], index: 0, kind: input, shape index: {}]
  %s1 = inlined_call_operand.hbm [shape: bf16[8,32,128], index: 1, kind: input, shape index: {}]
  %s2 = inlined_call_operand.vmem [shape: f32[1,128], index: 2, kind: input, shape index: {}]
  %s3 = inlined_call_operand.hbm [shape: bf16[2,4,128], index: 3, kind: output, shape index: {}]
  %s4 = sld [smem:[#allocation0]]
  $region53: #{_lambda_.1} parent=0
    _
  %s6 = ssub.s32 1, %s4
  %s7 = scalar_select 0, %s6, %s4
  $region1: #{_lambda_.1} parent=0
    #allocation2 [shape = 'u8[65536]{0}', space=vmem, size = 0x10000, scoped, tag = 'input window, operand 0']
    #allocation3 [shape = 's32[2]{0}', space=sflag, size = 0x8, scoped, tag = 'scoped memory for _lambda_.1']
    #allocation4 [shape = 's32[2]{0}', space=sflag, size = 0x8, scoped, tag = 'scoped memory for _lambda_.1']
    #allocation5 [shape = 'u8[65536]{0}', space=vmem, size = 0x10000, scoped, tag = 'input window, operand 1, single buffered']
    #allocation6 [shape = 's32[1]{0}', space=sflag, size = 0x4, scoped, tag = 'scoped memory for _lambda_.1']
    #allocation7 [shape = 'u8[2048]{0}', space=vmem, size = 0x800, scoped, tag = 'output window, operand 0']
    %8 = vsyncpa [#allocation3], 0
    %s9 = scalar_lea.sflag [#allocation3], 1
    %10 = vsyncpa %s9, 0
    %11 = vsyncpa [#allocation6], 0
    %12 = vsyncpa [#allocation4], 0
    %s13 = scalar_lea.sflag [#allocation4], 1
    %14 = vsyncpa %s13, 0
    loop: start=0, step=1, limit=4
    $region2: #{_lambda_.1} parent=1 // loop_pre_header
      _
    $region3: #{_lambda_.1} parent=1 // loop_header
      %s16 = sphi 0, %s20
      %p17 = scmp.ge.s32.totalorder %s16, 4
      %s23 = sphi 0, %s35
      %s24 = sphi 0, %s31
      %s25 = sphi 0, %s23
      %s26 = sphi 0, %s24
      %s27 = sphi 0, %s25
      %s28 = sphi 0, %s26
      %s40 = sphi 0, %s42
      %s43 = sphi 0, %s40
      %s44 = sphi 0, %s43
      %s60 = sphi 0, %s44
      %s64 = sphi 0, %s64
      %s66 = sphi 0, %s64
      %s67 = sphi 0, %s66
      %s81 = sphi 0, %s67
      %s85 = sphi 0, %s85
      %s87 = sphi 0, %s85
      %s88 = sphi 0, %s87
      %s102 = sphi 0, %s88
      %s110 = sphi 0, %s112
      %s113 = sphi 0, %s110
      %s114 = sphi 0, %s113
      %s130 = sphi 0, %s114
    $region4: #{_lambda_.1} parent=1 // loop_header_branch
      %19 = sbr.rel (%p17) target = $region8
    $region5: #{_lambda_.1} parent=1 // loop_body
      %s21 = ssub.s32 %s16, 1
      %s22 = ssub.s32 %s16, 2
      %s29 = sadd.s32 1, %s24
      %p30 = scmp.ge.s32.totalorder %s29, 1
      %s31 = scalar_select %p30, 0, %s29
      %s32 = sadd.s32 1, %s23
      %s33 = scalar_select %p30, %s32, %s23
      %p34 = scmp.ge.s32.totalorder %s33, 2
      %s35 = scalar_select %p34, 0, %s33
      %s36 = ssub.s32 %s23, %s35
      %s37 = ssub.s32 %s24, %s31
      %s38 = sor.u32 %s36, %s37
      %p39 = scmp.eq.s32.totalorder %s38, 0
      %s41 = sadd.s32 %s40, 1
      %s42 = scalar_select %p39, %s40, %s41
      %p45 = pneg %p39
      %p46 = scmp.eq.s32.totalorder %s16, 1
      %p47 = por %p45, %p46
      %p48 = scmp.ne.s32.totalorder %s40, %s43
      %p49 = scmp.eq.s32.totalorder %s16, 0
      %p50 = por %p48, %p49
      %p51 = scmp.ne.s32.totalorder %s40, %s43
      %p52 = scmp.eq.s32.totalorder %s21, 1
      %p53 = por %p51, %p52
      %p54 = scmp.ne.s32.totalorder %s43, %s44
      %p55 = scmp.eq.s32.totalorder %s21, 0
      %p56 = por %p54, %p55
      %p57 = scmp.ne.s32.totalorder %s43, %s44
      %p58 = scmp.eq.s32.totalorder %s22, 1
      %p59 = por %p57, %p58
      %p61 = scmp.ne.s32.totalorder %s44, %s60
      %p62 = scmp.eq.s32.totalorder %s22, 0
      %p63 = por %p61, %p62
      %s65 = sadd.s32 %s64, 1
      %p68 = scmp.eq.s32.totalorder %s16, 1
      %p69 = scmp.ne.s32.totalorder %s64, %s66
      %p70 = scmp.eq.s32.totalorder %s16, 0
      %p71 = por %p69, %p70
      %p72 = scmp.ne.s32.totalorder %s64, %s66
      %p73 = scmp.eq.s32.totalorder %s21, 1
      %p74 = por %p72, %p73
      %p75 = scmp.ne.s32.totalorder %s66, %s67
      %p76 = scmp.eq.s32.totalorder %s21, 0
      %p77 = por %p75, %p76
      %p78 = scmp.ne.s32.totalorder %s66, %s67
      %p79 = scmp.eq.s32.totalorder %s22, 1
      %p80 = por %p78, %p79
      %p82 = scmp.ne.s32.totalorder %s67, %s81
      %p83 = scmp.eq.s32.totalorder %s22, 0
      %p84 = por %p82, %p83
      %s86 = sadd.s32 %s85, 1
      %p89 = scmp.eq.s32.totalorder %s16, 1
      %p90 = scmp.ne.s32.totalorder %s85, %s87
      %p91 = scmp.eq.s32.totalorder %s16, 0
      %p92 = por %p90, %p91
      %p93 = scmp.ne.s32.totalorder %s85, %s87
      %p94 = scmp.eq.s32.totalorder %s21, 1
      %p95 = por %p93, %p94
      %p96 = scmp.ne.s32.totalorder %s87, %s88
      %p97 = scmp.eq.s32.totalorder %s21, 0
      %p98 = por %p96, %p97
      %p99 = scmp.ne.s32.totalorder %s87, %s88
      %p100 = scmp.eq.s32.totalorder %s22, 1
      %p101 = por %p99, %p100
      %p103 = scmp.ne.s32.totalorder %s88, %s102
      %p104 = scmp.eq.s32.totalorder %s22, 0
      %p105 = por %p103, %p104
      %s106 = ssub.s32 %s23, %s35
      %s107 = ssub.s32 %s24, %s31
      %s108 = sor.u32 %s106, %s107
      %p109 = scmp.eq.s32.totalorder %s108, 0
      %s111 = sadd.s32 %s110, 1
      %s112 = scalar_select %p109, %s110, %s111
      %p115 = pneg %p109
      %p116 = scmp.eq.s32.totalorder %s16, 1
      %p117 = por %p115, %p116
      %p118 = scmp.ne.s32.totalorder %s110, %s113
      %p119 = scmp.eq.s32.totalorder %s16, 0
      %p120 = por %p118, %p119
      %p121 = scmp.ne.s32.totalorder %s110, %s113
      %p122 = scmp.eq.s32.totalorder %s21, 1
      %p123 = por %p121, %p122
      %p124 = scmp.ne.s32.totalorder %s113, %s114
      %p125 = scmp.eq.s32.totalorder %s21, 0
      %p126 = por %p124, %p125
      %p127 = scmp.ne.s32.totalorder %s113, %s114
      %p128 = scmp.eq.s32.totalorder %s22, 1
      %p129 = por %p127, %p128
      %p131 = scmp.ne.s32.totalorder %s114, %s130
      %p132 = scmp.eq.s32.totalorder %s22, 0
      %p133 = por %p131, %p132
      %p134 = scmp.le.s32.totalorder 1, %s16
      %p135 = scmp.lt.s32.totalorder %s16, 3
      %p136 = pnand %p134, %p135
      %p137 = pneg %p136
      // Predicated region
      $region9: #{_lambda_.1} parent=5 // pred_check
        _
      $region10: #{_lambda_.1} parent=5 // pred_check_branch
        %139 = sbr.rel (%p136) target = $region12
      $region11: #{_lambda_.1} parent=5 // pred_region
        %s140 = ssub.s32 %s16, 1
        // Predicated region
        $region13: #{_lambda_.1} parent=11 // pred_check
          %p141 = pneg %p77
        $region14: #{_lambda_.1} parent=11 // pred_check_branch
          %143 = sbr.rel (%p141) target = $region16
        $region15: #{_lambda_.1} parent=11 // pred_region
          %s145 = ssub.s32 2048, 2048
          %146 = vsyncadd [#allocation6], %s145
          %s147 = sshll.u32 [#allocation5], 4
          %s148 = int_to_ptr.vmem [resolvable:$true] %s147
          %153 = dma.hbm_to_vmem [thread:$0]  %s1, 2048, %s148, [#allocation6], 64, 64, 4
        $region16: #{_lambda_.1} parent=11 // pred_fallthru
          _
        // Predicated region
        $region17: #{_lambda_.1} parent=11 // pred_check
          %p154 = pneg %p98
        $region18: #{_lambda_.1} parent=11 // pred_check_branch
          %156 = sbr.rel (%p154) target = $region20
        $region19: #{_lambda_.1} parent=11 // pred_region
          _
        $region20: #{_lambda_.1} parent=11 // pred_fallthru
          _
      $region12: #{_lambda_.1} parent=5 // pred_fallthru
        _
      %p157 = scmp.lt.s32.totalorder %s16, 2
      // Predicated region
      $region21: #{_lambda_.1} parent=5 // pred_check
        %p158 = pneg %p157
      $region22: #{_lambda_.1} parent=5 // pred_check_branch
        %160 = sbr.rel (%p158) target = $region24
      $region23: #{_lambda_.1} parent=5 // pred_region
        // Predicated region
        $region25: #{_lambda_.1} parent=23 // pred_check
          %p161 = pneg %p50
        $region26: #{_lambda_.1} parent=23 // pred_check_branch
          %163 = sbr.rel (%p161) target = $region28
        $region27: #{_lambda_.1} parent=23 // pred_region
          %s164 = sand.u32 %s40, 1
          %s165 = scalar_lea.sflag [#allocation3], %s164
          %s166 = sand.u32 %s40, 1
          %s167 = smul.addr %s166, 64
          %s168 = scalar_lea.vmem [#allocation2], %s167
          %s169 = smul.u32 2, %s24
          %s171 = ssub.s32 1024, 1024
          %172 = vsyncadd %s165, %s171
          %s173 = smul.addr %s23, 8
          %s174 = sadd.s32 %s169, %s173
          %s175 = smul.addr %s174, 128
          %s176 = scalar_lea.hbm %s0, %s175
          %s177 = sshll.u32 %s168, 4
          %s178 = int_to_ptr.vmem [resolvable:$true] %s177
          %183 = dma.hbm_to_vmem [thread:$0]  %s176, 1024, %s178, %s165, 128, 128, 8
        $region28: #{_lambda_.1} parent=23 // pred_fallthru
          _
      $region24: #{_lambda_.1} parent=5 // pred_fallthru
        _
      %p184 = scmp.le.s32.totalorder 1, %s16
      %p185 = scmp.lt.s32.totalorder %s16, 3
      %p186 = pnand %p184, %p185
      %p187 = pneg %p186
      // Predicated region
      $region29: #{_lambda_.1} parent=5 // pred_check
        _
      $region30: #{_lambda_.1} parent=5 // pred_check_branch
        %189 = sbr.rel (%p186) target = $region32
      $region31: #{_lambda_.1} parent=5 // pred_region
        %s190 = ssub.s32 %s16, 1
        %s191 = sand.u32 %s43, 1
        %s192 = scalar_lea.sflag [#allocation3], %s191
        %s193 = sand.u32 %s43, 1
        %s194 = smul.addr %s193, 64
        %s195 = scalar_lea.vmem [#allocation2], %s194
        // Predicated region
        $region33: #{_lambda_.1} parent=31 // pred_check
          %p196 = pneg %p56
        $region34: #{_lambda_.1} parent=31 // pred_check_branch
          %198 = sbr.rel (%p196) target = $region36
        $region35: #{_lambda_.1} parent=31 // pred_region
          %199 = dma.done %s192, 1024
        $region36: #{_lambda_.1} parent=31 // pred_fallthru
          _
        // Predicated region
        $region37: #{_lambda_.1} parent=31 // pred_check
          %p200 = pneg %p77
        $region38: #{_lambda_.1} parent=31 // pred_check_branch
          %202 = sbr.rel (%p200) target = $region40
        $region39: #{_lambda_.1} parent=31 // pred_region
          %203 = dma.done [#allocation6], 2048
        $region40: #{_lambda_.1} parent=31 // pred_fallthru
          _
        %s204 = sand.u32 %s43, 1
        %s205 = scalar_lea.sflag [#allocation3], %s204
        %s206 = sand.u32 %s43, 1
        %s207 = smul.addr %s206, 64
        %s208 = scalar_lea.vmem [#allocation2], %s207
        %p209 = pneg %p56
        %p210 = pneg %p53
        %p211 = pneg %p77
        %p212 = pneg %p74
        %p213 = pneg %p98
        %p214 = pneg %p95
        %p215 = pneg %p126
        %p216 = pneg %p123
        %s217 = sand.u32 %s113, 1
        %s218 = scalar_lea.sflag [#allocation4], %s217
        %s219 = sand.u32 %s113, 1
        %s220 = smul.addr %s219, 2
        %s221 = scalar_lea.vmem [#allocation7], %s220
        %s222 = smul.u32 2, %s26
        %v224 = vld [vmem:[%s2] sm:$0x1]
        %v225 = vld [vmem:[%s195] sm:$0xff]
        %v226 = vld [vmem:[%s195 + $0x10] sm:$0xff]
        %v227 = vld [vmem:[%s195 + $0x20] sm:$0xff]
        %v228 = vld [vmem:[%s195 + $0x30] sm:$0xff]
        %229 = vxpose.xlu0.b32.start [1/16] %v225, 128
        %230 = vxpose.xlu0.b32.cont [2/16] %v226, 128
        %231 = vxpose.xlu0.b32.cont [3/16] %v227, 128
        %232 = vxpose.xlu0.b32.cont [4/16] %v228, 128
        %233 = vxpose.xlu0.b32.cont [5/16] 0.0, 128
        %234 = vxpose.xlu0.b32.cont [6/16] 0.0, 128
        %235 = vxpose.xlu0.b32.cont [7/16] 0.0, 128
        %236 = vxpose.xlu0.b32.cont [8/16] 0.0, 128
        %237 = vxpose.xlu0.b32.cont [9/16] 0.0, 128
        %238 = vxpose.xlu0.b32.cont [10/16] 0.0, 128
        %239 = vxpose.xlu0.b32.cont [11/16] 0.0, 128
        %240 = vxpose.xlu0.b32.cont [12/16] 0.0, 128
        %241 = vxpose.xlu0.b32.cont [13/16] 0.0, 128
        %242 = vxpose.xlu0.b32.cont [14/16] 0.0, 128
        %243 = vxpose.xlu0.b32.cont [15/16] 0.0, 128
        %244 = vxpose.xlu0.b32.end [16/16] 0.0, 128
        %v245 = vpop.trf.xlu0
        %v246 = vpop.trf.xlu0
        %v247 = vpop.trf.xlu0
        %v248 = vpop.trf.xlu0
        %v249 = vpop.trf.xlu0
        %v250 = vpop.trf.xlu0
        %v251 = vpop.trf.xlu0
        %v252 = vpop.trf.xlu0
        %v253 = vpop.trf.xlu0
        %v254 = vpop.trf.xlu0
        %v255 = vpop.trf.xlu0
        %v256 = vpop.trf.xlu0
        %v257 = vpop.trf.xlu0
        %v258 = vpop.trf.xlu0
        %v259 = vpop.trf.xlu0
        %v260 = vpop.trf.xlu0
        %v261 = vpack.c.bf16 %v245, %v245
        %v262 = vpack.c.bf16 %v246, %v246
        %v263 = vld [vmem:[#allocation5] sm:$0xf]
        %v264 = vld [vmem:[#allocation5 + $0x4] sm:$0xf]
        %v265 = vld [vmem:[#allocation5 + $0x8] sm:$0xf]
        %v266 = vld [vmem:[#allocation5 + $0xc] sm:$0xf]
        %s267 = scalar_lea.vmem [#allocation5], 16
        %v268 = vld [vmem:[%s267] sm:$0xf]
        %v269 = vld [vmem:[%s267 + $0x4] sm:$0xf]
        %v270 = vld [vmem:[%s267 + $0x8] sm:$0xf]
        %v271 = vld [vmem:[%s267 + $0xc] sm:$0xf]
        %v274 = vunpack.c.l.b16 %v261
        %v275 = vunpack.c.l.b16 %v262
        %v276 = vrot.slane %v274, 1
        %vm277 = vcmask 1041409
        %v278 = vsel %vm277, %v275, %v276
        %v279 = vpack.c.b16 %v278, %v278
        %v284 = vunpack.c.l.b16 %v268
        %v285 = vunpack.c.l.b16 %v269
        %v286 = vunpack.c.l.b16 %v270
        %v287 = vunpack.c.l.b16 %v271
        %v288 = vpack.c.b16 %v285, %v284
        %v289 = vpack.c.b16 %v287, %v286
        %vm292 = vcmask 261120
        %v294 = vsel %vm292, %v279, 0
        %296 = vmatprep.subr.bf16.mxu0 0
        %297 = vmatpush1.bf16.msra.mxu0 %v288
        %298 = vmatprep.subr.bf16.mxu0 0
        %299 = vmatpush1.bf16.msra.mxu0 %v289
        %300 = vmatprep.subr.bf16.mxu0 0
        %301 = vmatpush1.bf16.msra.mxu0 0
        %302 = vmatprep.subr.bf16.mxu0 0
        %303 = vmatpush1.bf16.msra.mxu0 0
        %304 = vmatprep.subr.bf16.mxu0 0
        %305 = vmatpush1.bf16.msra.mxu0 0
        %306 = vmatprep.subr.bf16.mxu0 0
        %307 = vmatpush1.bf16.msra.mxu0 0
        %308 = vmatprep.subr.bf16.mxu0 0
        %309 = vmatpush1.bf16.msra.mxu0 0
        %310 = vmatprep.subr.bf16.mxu0 0
        %311 = vmatpush1.bf16.msra.mxu0 0
        %312 = vmatprep.subr.bf16.mxu0 0
        %313 = vmatpush1.bf16.msra.mxu0 0
        %314 = vmatprep.subr.bf16.mxu0 0
        %315 = vmatpush1.bf16.msra.mxu0 0
        %316 = vmatprep.subr.bf16.mxu0 0
        %317 = vmatpush1.bf16.msra.mxu0 0
        %318 = vmatprep.subr.bf16.mxu0 0
        %319 = vmatpush1.bf16.msra.mxu0 0
        %320 = vmatprep.subr.bf16.mxu0 0
        %321 = vmatpush1.bf16.msra.mxu0 0
        %322 = vmatprep.subr.bf16.mxu0 0
        %323 = vmatpush1.bf16.msra.mxu0 0
        %324 = vmatprep.subr.bf16.mxu0 0
        %325 = vmatpush1.bf16.msra.mxu0 0
        %326 = vmatprep.subr.bf16.mxu0 0
        %327 = vmatpush1.bf16.msra.mxu0 0
        %328 = vmatprep.mubr.bf16.mxu0 0
        %329 = vmatmul.mubr.bf16.gmra.mrb[0].mxu0 %v294
        %v330 = vpop.f32.mrb[0].mxu0
        %v331 = vadd.f32 0.0, %v330
        %v332 = vpop.f32.mrb[0].mxu0
        %v333 = vpop.f32.mrb[0].mxu0
        %v334 = vpop.f32.mrb[0].mxu0
        %335 = vdwg.mxu0
        %v336 = vrot.slane %v275, 7
        %v337 = vsel %vm277, %v336, %v274
        %v338 = vpack.c.b16 %v337, %v337
        %v343 = vunpack.c.l.b16 %v263
        %v344 = vunpack.c.l.b16 %v264
        %v345 = vunpack.c.l.b16 %v265
        %v346 = vunpack.c.l.b16 %v266
        %v347 = vpack.c.b16 %v344, %v343
        %v348 = vpack.c.b16 %v346, %v345
        %v352 = vsel %vm292, %v338, 0
        %354 = vmatprep.subr.bf16.mxu0 0
        %355 = vmatpush1.bf16.msra.mxu0 %v347
        %356 = vmatprep.subr.bf16.mxu0 0
        %357 = vmatpush1.bf16.msra.mxu0 %v348
        %358 = vmatprep.subr.bf16.mxu0 0
        %359 = vmatpush1.bf16.msra.mxu0 0
        %360 = vmatprep.subr.bf16.mxu0 0
        %361 = vmatpush1.bf16.msra.mxu0 0
        %362 = vmatprep.subr.bf16.mxu0 0
        %363 = vmatpush1.bf16.msra.mxu0 0
        %364 = vmatprep.subr.bf16.mxu0 0
        %365 = vmatpush1.bf16.msra.mxu0 0
        %366 = vmatprep.subr.bf16.mxu0 0
        %367 = vmatpush1.bf16.msra.mxu0 0
        %368 = vmatprep.subr.bf16.mxu0 0
        %369 = vmatpush1.bf16.msra.mxu0 0
        %370 = vmatprep.subr.bf16.mxu0 0
        %371 = vmatpush1.bf16.msra.mxu0 0
        %372 = vmatprep.subr.bf16.mxu0 0
        %373 = vmatpush1.bf16.msra.mxu0 0
        %374 = vmatprep.subr.bf16.mxu0 0
        %375 = vmatpush1.bf16.msra.mxu0 0
        %376 = vmatprep.subr.bf16.mxu0 0
        %377 = vmatpush1.bf16.msra.mxu0 0
        %378 = vmatprep.subr.bf16.mxu0 0
        %379 = vmatpush1.bf16.msra.mxu0 0
        %380 = vmatprep.subr.bf16.mxu0 0
        %381 = vmatpush1.bf16.msra.mxu0 0
        %382 = vmatprep.subr.bf16.mxu0 0
        %383 = vmatpush1.bf16.msra.mxu0 0
        %384 = vmatprep.subr.bf16.mxu0 0
        %385 = vmatpush1.bf16.msra.mxu0 0
        %386 = vmatprep.mubr.bf16.mxu0 0
        %387 = vmatmul.mubr.bf16.gmra.mrb[0].mxu0 %v352
        %v388 = vpop.f32.mrb[0].mxu0
        %v389 = vadd.f32 %v331, %v388
        %v390 = vpop.f32.mrb[0].mxu0
        %v391 = vpop.f32.mrb[0].mxu0
        %v392 = vpop.f32.mrb[0].mxu0
        %393 = vdwg.mxu0
        %s394 = scalar_lea.vmem [#allocation5], 32
        %v395 = vld [vmem:[%s394] sm:$0xf]
        %v396 = vld [vmem:[%s394 + $0x4] sm:$0xf]
        %v397 = vld [vmem:[%s394 + $0x8] sm:$0xf]
        %v398 = vld [vmem:[%s394 + $0xc] sm:$0xf]
        %v399 = vrot.slane %v274, 2
        %v400 = vrot.slane %v275, 1
        %v401 = vsel %vm277, %v400, %v399
        %v402 = vpack.c.b16 %v401, %v401
        %v407 = vunpack.c.l.b16 %v395
        %v408 = vunpack.c.l.b16 %v396
        %v409 = vunpack.c.l.b16 %v397
        %v410 = vunpack.c.l.b16 %v398
        %v411 = vpack.c.b16 %v408, %v407
        %v412 = vpack.c.b16 %v410, %v409
        %v416 = vsel %vm292, %v402, 0
        %418 = vmatprep.subr.bf16.mxu0 0
        %419 = vmatpush1.bf16.msra.mxu0 %v411
        %420 = vmatprep.subr.bf16.mxu0 0
        %421 = vmatpush1.bf16.msra.mxu0 %v412
        %422 = vmatprep.subr.bf16.mxu0 0
        %423 = vmatpush1.bf16.msra.mxu0 0
        %424 = vmatprep.subr.bf16.mxu0 0
        %425 = vmatpush1.bf16.msra.mxu0 0
        %426 = vmatprep.subr.bf16.mxu0 0
        %427 = vmatpush1.bf16.msra.mxu0 0
        %428 = vmatprep.subr.bf16.mxu0 0
        %429 = vmatpush1.bf16.msra.mxu0 0
        %430 = vmatprep.subr.bf16.mxu0 0
        %431 = vmatpush1.bf16.msra.mxu0 0
        %432 = vmatprep.subr.bf16.mxu0 0
        %433 = vmatpush1.bf16.msra.mxu0 0
        %434 = vmatprep.subr.bf16.mxu0 0
        %435 = vmatpush1.bf16.msra.mxu0 0
        %436 = vmatprep.subr.bf16.mxu0 0
        %437 = vmatpush1.bf16.msra.mxu0 0
        %438 = vmatprep.subr.bf16.mxu0 0
        %439 = vmatpush1.bf16.msra.mxu0 0
        %440 = vmatprep.subr.bf16.mxu0 0
        %441 = vmatpush1.bf16.msra.mxu0 0
        %442 = vmatprep.subr.bf16.mxu0 0
        %443 = vmatpush1.bf16.msra.mxu0 0
        %444 = vmatprep.subr.bf16.mxu0 0
        %445 = vmatpush1.bf16.msra.mxu0 0
        %446 = vmatprep.subr.bf16.mxu0 0
        %447 = vmatpush1.bf16.msra.mxu0 0
        %448 = vmatprep.subr.bf16.mxu0 0
        %449 = vmatpush1.bf16.msra.mxu0 0
        %450 = vmatprep.mubr.bf16.mxu0 0
        %451 = vmatmul.mubr.bf16.gmra.mrb[0].mxu0 %v416
        %v452 = vpop.f32.mrb[0].mxu0
        %v453 = vadd.f32 0.0, %v452
        %v454 = vpop.f32.mrb[0].mxu0
        %v455 = vpop.f32.mrb[0].mxu0
        %v456 = vpop.f32.mrb[0].mxu0
        %457 = vdwg.mxu0
        %v458 = vadd.f32 %v389, %v453
        %s459 = scalar_lea.vmem [#allocation5], 48
        %v460 = vld [vmem:[%s459] sm:$0xf]
        %v461 = vld [vmem:[%s459 + $0x4] sm:$0xf]
        %v462 = vld [vmem:[%s459 + $0x8] sm:$0xf]
        %v463 = vld [vmem:[%s459 + $0xc] sm:$0xf]
        %v464 = vrot.slane %v274, 3
        %v465 = vrot.slane %v275, 2
        %v466 = vsel %vm277, %v465, %v464
        %v467 = vpack.c.b16 %v466, %v466
        %v472 = vunpack.c.l.b16 %v460
        %v473 = vunpack.c.l.b16 %v461
        %v474 = vunpack.c.l.b16 %v462
        %v475 = vunpack.c.l.b16 %v463
        %v476 = vpack.c.b16 %v473, %v472
        %v477 = vpack.c.b16 %v475, %v474
        %v481 = vsel %vm292, %v467, 0
        %483 = vmatprep.subr.bf16.mxu0 0
        %484 = vmatpush1.bf16.msra.mxu0 %v476
        %485 = vmatprep.subr.bf16.mxu0 0
        %486 = vmatpush1.bf16.msra.mxu0 %v477
        %487 = vmatprep.subr.bf16.mxu0 0
        %488 = vmatpush1.bf16.msra.mxu0 0
        %489 = vmatprep.subr.bf16.mxu0 0
        %490 = vmatpush1.bf16.msra.mxu0 0
        %491 = vmatprep.subr.bf16.mxu0 0
        %492 = vmatpush1.bf16.msra.mxu0 0
        %493 = vmatprep.subr.bf16.mxu0 0
        %494 = vmatpush1.bf16.msra.mxu0 0
        %495 = vmatprep.subr.bf16.mxu0 0
        %496 = vmatpush1.bf16.msra.mxu0 0
        %497 = vmatprep.subr.bf16.mxu0 0
        %498 = vmatpush1.bf16.msra.mxu0 0
        %499 = vmatprep.subr.bf16.mxu0 0
        %500 = vmatpush1.bf16.msra.mxu0 0
        %501 = vmatprep.subr.bf16.mxu0 0
        %502 = vmatpush1.bf16.msra.mxu0 0
        %503 = vmatprep.subr.bf16.mxu0 0
        %504 = vmatpush1.bf16.msra.mxu0 0
        %505 = vmatprep.subr.bf16.mxu0 0
        %506 = vmatpush1.bf16.msra.mxu0 0
        %507 = vmatprep.subr.bf16.mxu0 0
        %508 = vmatpush1.bf16.msra.mxu0 0
        %509 = vmatprep.subr.bf16.mxu0 0
        %510 = vmatpush1.bf16.msra.mxu0 0
        %511 = vmatprep.subr.bf16.mxu0 0
        %512 = vmatpush1.bf16.msra.mxu0 0
        %513 = vmatprep.subr.bf16.mxu0 0
        %514 = vmatpush1.bf16.msra.mxu0 0
        %515 = vmatprep.mubr.bf16.mxu0 0
        %516 = vmatmul.mubr.bf16.gmra.mrb[0].mxu0 %v481
        %v517 = vpop.f32.mrb[0].mxu0
        %v518 = vadd.f32 0.0, %v517
        %v519 = vpop.f32.mrb[0].mxu0
        %v520 = vpop.f32.mrb[0].mxu0
        %v521 = vpop.f32.mrb[0].mxu0
        %522 = vdwg.mxu0
        %v523 = vadd.f32 %v458, %v518
        %s524 = scalar_lea.vmem [#allocation5], 64
        %v525 = vld [vmem:[%s524] sm:$0xf]
        %v526 = vld [vmem:[%s524 + $0x4] sm:$0xf]
        %v527 = vld [vmem:[%s524 + $0x8] sm:$0xf]
        %v528 = vld [vmem:[%s524 + $0xc] sm:$0xf]
        %v529 = vrot.slane %v274, 4
        %v530 = vrot.slane %v275, 3
        %v531 = vsel %vm277, %v530, %v529
        %v532 = vpack.c.b16 %v531, %v531
        %v537 = vunpack.c.l.b16 %v525
        %v538 = vunpack.c.l.b16 %v526
        %v539 = vunpack.c.l.b16 %v527
        %v540 = vunpack.c.l.b16 %v528
        %v541 = vpack.c.b16 %v538, %v537
        %v542 = vpack.c.b16 %v540, %v539
        %v546 = vsel %vm292, %v532, 0
        %548 = vmatprep.subr.bf16.mxu0 0
        %549 = vmatpush1.bf16.msra.mxu0 %v541
        %550 = vmatprep.subr.bf16.mxu0 0
        %551 = vmatpush1.bf16.msra.mxu0 %v542
        %552 = vmatprep.subr.bf16.mxu0 0
        %553 = vmatpush1.bf16.msra.mxu0 0
        %554 = vmatprep.subr.bf16.mxu0 0
        %555 = vmatpush1.bf16.msra.mxu0 0
        %556 = vmatprep.subr.bf16.mxu0 0
        %557 = vmatpush1.bf16.msra.mxu0 0
        %558 = vmatprep.subr.bf16.mxu0 0
        %559 = vmatpush1.bf16.msra.mxu0 0
        %560 = vmatprep.subr.bf16.mxu0 0
        %561 = vmatpush1.bf16.msra.mxu0 0
        %562 = vmatprep.subr.bf16.mxu0 0
        %563 = vmatpush1.bf16.msra.mxu0 0
        %564 = vmatprep.subr.bf16.mxu0 0
        %565 = vmatpush1.bf16.msra.mxu0 0
        %566 = vmatprep.subr.bf16.mxu0 0
        %567 = vmatpush1.bf16.msra.mxu0 0
        %568 = vmatprep.subr.bf16.mxu0 0
        %569 = vmatpush1.bf16.msra.mxu0 0
        %570 = vmatprep.subr.bf16.mxu0 0
        %571 = vmatpush1.bf16.msra.mxu0 0
        %572 = vmatprep.subr.bf16.mxu0 0
        %573 = vmatpush1.bf16.msra.mxu0 0
        %574 = vmatprep.subr.bf16.mxu0 0
        %575 = vmatpush1.bf16.msra.mxu0 0
        %576 = vmatprep.subr.bf16.mxu0 0
        %577 = vmatpush1.bf16.msra.mxu0 0
        %578 = vmatprep.subr.bf16.mxu0 0
        %579 = vmatpush1.bf16.msra.mxu0 0
        %580 = vmatprep.mubr.bf16.mxu0 0
        %581 = vmatmul.mubr.bf16.gmra.mrb[0].mxu0 %v546
        %v582 = vpop.f32.mrb[0].mxu0
        %v583 = vadd.f32 0.0, %v582
        %v584 = vpop.f32.mrb[0].mxu0
        %v585 = vpop.f32.mrb[0].mxu0
        %v586 = vpop.f32.mrb[0].mxu0
        %587 = vdwg.mxu0
        %v588 = vadd.f32 %v523, %v583
        %s589 = scalar_lea.vmem [#allocation5], 80
        %v590 = vld [vmem:[%s589] sm:$0xf]
        %v591 = vld [vmem:[%s589 + $0x4] sm:$0xf]
        %v592 = vld [vmem:[%s589 + $0x8] sm:$0xf]
        %v593 = vld [vmem:[%s589 + $0xc] sm:$0xf]
        %v594 = vrot.slane %v274, 5
        %v595 = vrot.slane %v275, 4
        %v596 = vsel %vm277, %v595, %v594
        %v597 = vpack.c.b16 %v596, %v596
        %v602 = vunpack.c.l.b16 %v590
        %v603 = vunpack.c.l.b16 %v591
        %v604 = vunpack.c.l.b16 %v592
        %v605 = vunpack.c.l.b16 %v593
        %v606 = vpack.c.b16 %v603, %v602
        %v607 = vpack.c.b16 %v605, %v604
        %v611 = vsel %vm292, %v597, 0
        %613 = vmatprep.subr.bf16.mxu0 0
        %614 = vmatpush1.bf16.msra.mxu0 %v606
        %615 = vmatprep.subr.bf16.mxu0 0
        %616 = vmatpush1.bf16.msra.mxu0 %v607
        %617 = vmatprep.subr.bf16.mxu0 0
        %618 = vmatpush1.bf16.msra.mxu0 0
        %619 = vmatprep.subr.bf16.mxu0 0
        %620 = vmatpush1.bf16.msra.mxu0 0
        %621 = vmatprep.subr.bf16.mxu0 0
        %622 = vmatpush1.bf16.msra.mxu0 0
        %623 = vmatprep.subr.bf16.mxu0 0
        %624 = vmatpush1.bf16.msra.mxu0 0
        %625 = vmatprep.subr.bf16.mxu0 0
        %626 = vmatpush1.bf16.msra.mxu0 0
        %627 = vmatprep.subr.bf16.mxu0 0
        %628 = vmatpush1.bf16.msra.mxu0 0
        %629 = vmatprep.subr.bf16.mxu0 0
        %630 = vmatpush1.bf16.msra.mxu0 0
        %631 = vmatprep.subr.bf16.mxu0 0
        %632 = vmatpush1.bf16.msra.mxu0 0
        %633 = vmatprep.subr.bf16.mxu0 0
        %634 = vmatpush1.bf16.msra.mxu0 0
        %635 = vmatprep.subr.bf16.mxu0 0
        %636 = vmatpush1.bf16.msra.mxu0 0
        %637 = vmatprep.subr.bf16.mxu0 0
        %638 = vmatpush1.bf16.msra.mxu0 0
        %639 = vmatprep.subr.bf16.mxu0 0
        %640 = vmatpush1.bf16.msra.mxu0 0
        %641 = vmatprep.subr.bf16.mxu0 0
        %642 = vmatpush1.bf16.msra.mxu0 0
        %643 = vmatprep.subr.bf16.mxu0 0
        %644 = vmatpush1.bf16.msra.mxu0 0
        %645 = vmatprep.mubr.bf16.mxu0 0
        %646 = vmatmul.mubr.bf16.gmra.mrb[0].mxu0 %v611
        %v647 = vpop.f32.mrb[0].mxu0
        %v648 = vadd.f32 0.0, %v647
        %v649 = vpop.f32.mrb[0].mxu0
        %v650 = vpop.f32.mrb[0].mxu0
        %v651 = vpop.f32.mrb[0].mxu0
        %652 = vdwg.mxu0
        %v653 = vadd.f32 %v588, %v648
        %s654 = scalar_lea.vmem [#allocation5], 96
        %v655 = vld [vmem:[%s654] sm:$0xf]
        %v656 = vld [vmem:[%s654 + $0x4] sm:$0xf]
        %v657 = vld [vmem:[%s654 + $0x8] sm:$0xf]
        %v658 = vld [vmem:[%s654 + $0xc] sm:$0xf]
        %v659 = vrot.slane %v274, 6
        %v660 = vrot.slane %v275, 5
        %v661 = vsel %vm277, %v660, %v659
        %v662 = vpack.c.b16 %v661, %v661
        %v667 = vunpack.c.l.b16 %v655
        %v668 = vunpack.c.l.b16 %v656
        %v669 = vunpack.c.l.b16 %v657
        %v670 = vunpack.c.l.b16 %v658
        %v671 = vpack.c.b16 %v668, %v667
        %v672 = vpack.c.b16 %v670, %v669
        %v676 = vsel %vm292, %v662, 0
        %678 = vmatprep.subr.bf16.mxu0 0
        %679 = vmatpush1.bf16.msra.mxu0 %v671
        %680 = vmatprep.subr.bf16.mxu0 0
        %681 = vmatpush1.bf16.msra.mxu0 %v672
        %682 = vmatprep.subr.bf16.mxu0 0
        %683 = vmatpush1.bf16.msra.mxu0 0
        %684 = vmatprep.subr.bf16.mxu0 0
        %685 = vmatpush1.bf16.msra.mxu0 0
        %686 = vmatprep.subr.bf16.mxu0 0
        %687 = vmatpush1.bf16.msra.mxu0 0
        %688 = vmatprep.subr.bf16.mxu0 0
        %689 = vmatpush1.bf16.msra.mxu0 0
        %690 = vmatprep.subr.bf16.mxu0 0
        %691 = vmatpush1.bf16.msra.mxu0 0
        %692 = vmatprep.subr.bf16.mxu0 0
        %693 = vmatpush1.bf16.msra.mxu0 0
        %694 = vmatprep.subr.bf16.mxu0 0
        %695 = vmatpush1.bf16.msra.mxu0 0
        %696 = vmatprep.subr.bf16.mxu0 0
        %697 = vmatpush1.bf16.msra.mxu0 0
        %698 = vmatprep.subr.bf16.mxu0 0
        %699 = vmatpush1.bf16.msra.mxu0 0
        %700 = vmatprep.subr.bf16.mxu0 0
        %701 = vmatpush1.bf16.msra.mxu0 0
        %702 = vmatprep.subr.bf16.mxu0 0
        %703 = vmatpush1.bf16.msra.mxu0 0
        %704 = vmatprep.subr.bf16.mxu0 0
        %705 = vmatpush1.bf16.msra.mxu0 0
        %706 = vmatprep.subr.bf16.mxu0 0
        %707 = vmatpush1.bf16.msra.mxu0 0
        %708 = vmatprep.subr.bf16.mxu0 0
        %709 = vmatpush1.bf16.msra.mxu0 0
        %710 = vmatprep.mubr.bf16.mxu0 0
        %711 = vmatmul.mubr.bf16.gmra.mrb[0].mxu0 %v676
        %v712 = vpop.f32.mrb[0].mxu0
        %v713 = vadd.f32 0.0, %v712
        %v714 = vpop.f32.mrb[0].mxu0
        %v715 = vpop.f32.mrb[0].mxu0
        %v716 = vpop.f32.mrb[0].mxu0
        %717 = vdwg.mxu0
        %v718 = vadd.f32 %v653, %v713
        %s719 = scalar_lea.vmem [#allocation5], 112
        %v720 = vld [vmem:[%s719] sm:$0xf]
        %v721 = vld [vmem:[%s719 + $0x4] sm:$0xf]
        %v722 = vld [vmem:[%s719 + $0x8] sm:$0xf]
        %v723 = vld [vmem:[%s719 + $0xc] sm:$0xf]
        %v724 = vrot.slane %v274, 7
        %v725 = vrot.slane %v275, 6
        %v726 = vsel %vm277, %v725, %v724
        %v727 = vpack.c.b16 %v726, %v726
        %v732 = vunpack.c.l.b16 %v720
        %v733 = vunpack.c.l.b16 %v721
        %v734 = vunpack.c.l.b16 %v722
        %v735 = vunpack.c.l.b16 %v723
        %v736 = vpack.c.b16 %v733, %v732
        %v737 = vpack.c.b16 %v735, %v734
        %v741 = vsel %vm292, %v727, 0
        %743 = vmatprep.subr.bf16.mxu0 0
        %744 = vmatpush1.bf16.msra.mxu0 %v736
        %745 = vmatprep.subr.bf16.mxu0 0
        %746 = vmatpush1.bf16.msra.mxu0 %v737
        %747 = vmatprep.subr.bf16.mxu0 0
        %748 = vmatpush1.bf16.msra.mxu0 0
        %749 = vmatprep.subr.bf16.mxu0 0
        %750 = vmatpush1.bf16.msra.mxu0 0
        %751 = vmatprep.subr.bf16.mxu0 0
        %752 = vmatpush1.bf16.msra.mxu0 0
        %753 = vmatprep.subr.bf16.mxu0 0
        %754 = vmatpush1.bf16.msra.mxu0 0
        %755 = vmatprep.subr.bf16.mxu0 0
        %756 = vmatpush1.bf16.msra.mxu0 0
        %757 = vmatprep.subr.bf16.mxu0 0
        %758 = vmatpush1.bf16.msra.mxu0 0
        %759 = vmatprep.subr.bf16.mxu0 0
        %760 = vmatpush1.bf16.msra.mxu0 0
        %761 = vmatprep.subr.bf16.mxu0 0
        %762 = vmatpush1.bf16.msra.mxu0 0
        %763 = vmatprep.subr.bf16.mxu0 0
        %764 = vmatpush1.bf16.msra.mxu0 0
        %765 = vmatprep.subr.bf16.mxu0 0
        %766 = vmatpush1.bf16.msra.mxu0 0
        %767 = vmatprep.subr.bf16.mxu0 0
        %768 = vmatpush1.bf16.msra.mxu0 0
        %769 = vmatprep.subr.bf16.mxu0 0
        %770 = vmatpush1.bf16.msra.mxu0 0
        %771 = vmatprep.subr.bf16.mxu0 0
        %772 = vmatpush1.bf16.msra.mxu0 0
        %773 = vmatprep.subr.bf16.mxu0 0
        %774 = vmatpush1.bf16.msra.mxu0 0
        %775 = vmatprep.mubr.bf16.mxu0 0
        %776 = vmatmul.mubr.bf16.gmra.mrb[0].mxu0 %v741
        %v777 = vpop.f32.mrb[0].mxu0
        %v778 = vadd.f32 0.0, %v777
        %v779 = vpop.f32.mrb[0].mxu0
        %v780 = vpop.f32.mrb[0].mxu0
        %v781 = vpop.f32.mrb[0].mxu0
        %782 = vdwg.mxu0
        %v783 = vadd.f32 %v718, %v778
        %v785 = vlaneseq
        %v786 = vshrl.u32 %v785, 7
        %v787 = vsub.s32 0, %v786
        %v788 = vrot.slane %v224, %v787
        %v790 = vadd.f32 %v783, %v788
        %v791 = vpack.c.bf16 %v790, %v790
        %792 = vst [vmem:[%s221] sm:$0x1] %v791
        %v793 = vld [vmem:[%s195 + $0x8] sm:$0xff]
        %v794 = vld [vmem:[%s195 + $0x18] sm:$0xff]
        %v795 = vld [vmem:[%s195 + $0x28] sm:$0xff]
        %v796 = vld [vmem:[%s195 + $0x38] sm:$0xff]
        %797 = vxpose.xlu0.b32.start [1/16] %v793, 128
        %798 = vxpose.xlu0.b32.cont [2/16] %v794, 128
        %799 = vxpose.xlu0.b32.cont [3/16] %v795, 128
        %800 = vxpose.xlu0.b32.cont [4/16] %v796, 128
        %801 = vxpose.xlu0.b32.cont [5/16] 0.0, 128
        %802 = vxpose.xlu0.b32.cont [6/16] 0.0, 128
        %803 = vxpose.xlu0.b32.cont [7/16] 0.0, 128
        %804 = vxpose.xlu0.b32.cont [8/16] 0.0, 128
        %805 = vxpose.xlu0.b32.cont [9/16] 0.0, 128
        %806 = vxpose.xlu0.b32.cont [10/16] 0.0, 128
        %807 = vxpose.xlu0.b32.cont [11/16] 0.0, 128
        %808 = vxpose.xlu0.b32.cont [12/16] 0.0, 128
        %809 = vxpose.xlu0.b32.cont [13/16] 0.0, 128
        %810 = vxpose.xlu0.b32.cont [14/16] 0.0, 128
        %811 = vxpose.xlu0.b32.cont [15/16] 0.0, 128
        %812 = vxpose.xlu0.b32.end [16/16] 0.0, 128
        %v813 = vpop.trf.xlu0
        %v814 = vpop.trf.xlu0
        %v815 = vpop.trf.xlu0
        %v816 = vpop.trf.xlu0
        %v817 = vpop.trf.xlu0
        %v818 = vpop.trf.xlu0
        %v819 = vpop.trf.xlu0
        %v820 = vpop.trf.xlu0
        %v821 = vpop.trf.xlu0
        %v822 = vpop.trf.xlu0
        %v823 = vpop.trf.xlu0
        %v824 = vpop.trf.xlu0
        %v825 = vpop.trf.xlu0
        %v826 = vpop.trf.xlu0
        %v827 = vpop.trf.xlu0
        %v828 = vpop.trf.xlu0
        %v829 = vpack.c.bf16 %v813, %v813
        %v830 = vpack.c.bf16 %v814, %v814
        %v831 = vld [vmem:[#allocation5] sm:$0xf]
        %v832 = vld [vmem:[#allocation5 + $0x4] sm:$0xf]
        %v833 = vld [vmem:[#allocation5 + $0x8] sm:$0xf]
        %v834 = vld [vmem:[#allocation5 + $0xc] sm:$0xf]
        %v835 = vld [vmem:[%s267] sm:$0xf]
        %v836 = vld [vmem:[%s267 + $0x4] sm:$0xf]
        %v837 = vld [vmem:[%s267 + $0x8] sm:$0xf]
        %v838 = vld [vmem:[%s267 + $0xc] sm:$0xf]
        %v841 = vunpack.c.l.b16 %v829
        %v842 = vunpack.c.l.b16 %v830
        %v843 = vrot.slane %v841, 1
        %v844 = vsel %vm277, %v842, %v843
        %v845 = vpack.c.b16 %v844, %v844
        %v850 = vunpack.c.l.b16 %v835
        %v851 = vunpack.c.l.b16 %v836
        %v852 = vunpack.c.l.b16 %v837
        %v853 = vunpack.c.l.b16 %v838
        %v854 = vpack.c.b16 %v851, %v850
        %v855 = vpack.c.b16 %v853, %v852
        %v859 = vsel %vm292, %v845, 0
        %861 = vmatprep.subr.bf16.mxu0 0
        %862 = vmatpush1.bf16.msra.mxu0 %v854
        %863 = vmatprep.subr.bf16.mxu0 0
        %864 = vmatpush1.bf16.msra.mxu0 %v855
        %865 = vmatprep.subr.bf16.mxu0 0
        %866 = vmatpush1.bf16.msra.mxu0 0
        %867 = vmatprep.subr.bf16.mxu0 0
        %868 = vmatpush1.bf16.msra.mxu0 0
        %869 = vmatprep.subr.bf16.mxu0 0
        %870 = vmatpush1.bf16.msra.mxu0 0
        %871 = vmatprep.subr.bf16.mxu0 0
        %872 = vmatpush1.bf16.msra.mxu0 0
        %873 = vmatprep.subr.bf16.mxu0 0
        %874 = vmatpush1.bf16.msra.mxu0 0
        %875 = vmatprep.subr.bf16.mxu0 0
        %876 = vmatpush1.bf16.msra.mxu0 0
        %877 = vmatprep.subr.bf16.mxu0 0
        %878 = vmatpush1.bf16.msra.mxu0 0
        %879 = vmatprep.subr.bf16.mxu0 0
        %880 = vmatpush1.bf16.msra.mxu0 0
        %881 = vmatprep.subr.bf16.mxu0 0
        %882 = vmatpush1.bf16.msra.mxu0 0
        %883 = vmatprep.subr.bf16.mxu0 0
        %884 = vmatpush1.bf16.msra.mxu0 0
        %885 = vmatprep.subr.bf16.mxu0 0
        %886 = vmatpush1.bf16.msra.mxu0 0
        %887 = vmatprep.subr.bf16.mxu0 0
        %888 = vmatpush1.bf16.msra.mxu0 0
        %889 = vmatprep.subr.bf16.mxu0 0
        %890 = vmatpush1.bf16.msra.mxu0 0
        %891 = vmatprep.subr.bf16.mxu0 0
        %892 = vmatpush1.bf16.msra.mxu0 0
        %893 = vmatprep.mubr.bf16.mxu0 0
        %894 = vmatmul.mubr.bf16.gmra.mrb[0].mxu0 %v859
        %v895 = vpop.f32.mrb[0].mxu0
        %v896 = vadd.f32 0.0, %v895
        %v897 = vpop.f32.mrb[0].mxu0
        %v898 = vpop.f32.mrb[0].mxu0
        %v899 = vpop.f32.mrb[0].mxu0
        %900 = vdwg.mxu0
        %v901 = vrot.slane %v842, 7
        %v902 = vsel %vm277, %v901, %v841
        %v903 = vpack.c.b16 %v902, %v902
        %v908 = vunpack.c.l.b16 %v831
        %v909 = vunpack.c.l.b16 %v832
        %v910 = vunpack.c.l.b16 %v833
        %v911 = vunpack.c.l.b16 %v834
        %v912 = vpack.c.b16 %v909, %v908
        %v913 = vpack.c.b16 %v911, %v910
        %v917 = vsel %vm292, %v903, 0
        %919 = vmatprep.subr.bf16.mxu0 0
        %920 = vmatpush1.bf16.msra.mxu0 %v912
        %921 = vmatprep.subr.bf16.mxu0 0
        %922 = vmatpush1.bf16.msra.mxu0 %v913
        %923 = vmatprep.subr.bf16.mxu0 0
        %924 = vmatpush1.bf16.msra.mxu0 0
        %925 = vmatprep.subr.bf16.mxu0 0
        %926 = vmatpush1.bf16.msra.mxu0 0
        %927 = vmatprep.subr.bf16.mxu0 0
        %928 = vmatpush1.bf16.msra.mxu0 0
        %929 = vmatprep.subr.bf16.mxu0 0
        %930 = vmatpush1.bf16.msra.mxu0 0
        %931 = vmatprep.subr.bf16.mxu0 0
        %932 = vmatpush1.bf16.msra.mxu0 0
        %933 = vmatprep.subr.bf16.mxu0 0
        %934 = vmatpush1.bf16.msra.mxu0 0
        %935 = vmatprep.subr.bf16.mxu0 0
        %936 = vmatpush1.bf16.msra.mxu0 0
        %937 = vmatprep.subr.bf16.mxu0 0
        %938 = vmatpush1.bf16.msra.mxu0 0
        %939 = vmatprep.subr.bf16.mxu0 0
        %940 = vmatpush1.bf16.msra.mxu0 0
        %941 = vmatprep.subr.bf16.mxu0 0
        %942 = vmatpush1.bf16.msra.mxu0 0
        %943 = vmatprep.subr.bf16.mxu0 0
        %944 = vmatpush1.bf16.msra.mxu0 0
        %945 = vmatprep.subr.bf16.mxu0 0
        %946 = vmatpush1.bf16.msra.mxu0 0
        %947 = vmatprep.subr.bf16.mxu0 0
        %948 = vmatpush1.bf16.msra.mxu0 0
        %949 = vmatprep.subr.bf16.mxu0 0
        %950 = vmatpush1.bf16.msra.mxu0 0
        %951 = vmatprep.mubr.bf16.mxu0 0
        %952 = vmatmul.mubr.bf16.gmra.mrb[0].mxu0 %v917
        %v953 = vpop.f32.mrb[0].mxu0
        %v954 = vadd.f32 %v896, %v953
        %v955 = vpop.f32.mrb[0].mxu0
        %v956 = vpop.f32.mrb[0].mxu0
        %v957 = vpop.f32.mrb[0].mxu0
        %958 = vdwg.mxu0
        %v959 = vld [vmem:[%s394] sm:$0xf]
        %v960 = vld [vmem:[%s394 + $0x4] sm:$0xf]
        %v961 = vld [vmem:[%s394 + $0x8] sm:$0xf]
        %v962 = vld [vmem:[%s394 + $0xc] sm:$0xf]
        %v963 = vrot.slane %v841, 2
        %v964 = vrot.slane %v842, 1
        %v965 = vsel %vm277, %v964, %v963
        %v966 = vpack.c.b16 %v965, %v965
        %v971 = vunpack.c.l.b16 %v959
        %v972 = vunpack.c.l.b16 %v960
        %v973 = vunpack.c.l.b16 %v961
        %v974 = vunpack.c.l.b16 %v962
        %v975 = vpack.c.b16 %v972, %v971
        %v976 = vpack.c.b16 %v974, %v973
        %v980 = vsel %vm292, %v966, 0
        %982 = vmatprep.subr.bf16.mxu0 0
        %983 = vmatpush1.bf16.msra.mxu0 %v975
        %984 = vmatprep.subr.bf16.mxu0 0
        %985 = vmatpush1.bf16.msra.mxu0 %v976
        %986 = vmatprep.subr.bf16.mxu0 0
        %987 = vmatpush1.bf16.msra.mxu0 0
        %988 = vmatprep.subr.bf16.mxu0 0
        %989 = vmatpush1.bf16.msra.mxu0 0
        %990 = vmatprep.subr.bf16.mxu0 0
        %991 = vmatpush1.bf16.msra.mxu0 0
        %992 = vmatprep.subr.bf16.mxu0 0
        %993 = vmatpush1.bf16.msra.mxu0 0
        %994 = vmatprep.subr.bf16.mxu0 0
        %995 = vmatpush1.bf16.msra.mxu0 0
        %996 = vmatprep.subr.bf16.mxu0 0
        %997 = vmatpush1.bf16.msra.mxu0 0
        %998 = vmatprep.subr.bf16.mxu0 0
        %999 = vmatpush1.bf16.msra.mxu0 0
        %1000 = vmatprep.subr.bf16.mxu0 0
        %1001 = vmatpush1.bf16.msra.mxu0 0
        %1002 = vmatprep.subr.bf16.mxu0 0
        %1003 = vmatpush1.bf16.msra.mxu0 0
        %1004 = vmatprep.subr.bf16.mxu0 0
        %1005 = vmatpush1.bf16.msra.mxu0 0
        %1006 = vmatprep.subr.bf16.mxu0 0
        %1007 = vmatpush1.bf16.msra.mxu0 0
        %1008 = vmatprep.subr.bf16.mxu0 0
        %1009 = vmatpush1.bf16.msra.mxu0 0
        %1010 = vmatprep.subr.bf16.mxu0 0
        %1011 = vmatpush1.bf16.msra.mxu0 0
        %1012 = vmatprep.subr.bf16.mxu0 0
        %1013 = vmatpush1.bf16.msra.mxu0 0
        %1014 = vmatprep.mubr.bf16.mxu0 0
        %1015 = vmatmul.mubr.bf16.gmra.mrb[0].mxu0 %v980
        %v1016 = vpop.f32.mrb[0].mxu0
        %v1017 = vadd.f32 0.0, %v1016
        %v1018 = vpop.f32.mrb[0].mxu0
        %v1019 = vpop.f32.mrb[0].mxu0
        %v1020 = vpop.f32.mrb[0].mxu0
        %1021 = vdwg.mxu0
        %v1022 = vadd.f32 %v954, %v1017
        %v1023 = vld [vmem:[%s459] sm:$0xf]
        %v1024 = vld [vmem:[%s459 + $0x4] sm:$0xf]
        %v1025 = vld [vmem:[%s459 + $0x8] sm:$0xf]
        %v1026 = vld [vmem:[%s459 + $0xc] sm:$0xf]
        %v1027 = vrot.slane %v841, 3
        %v1028 = vrot.slane %v842, 2
        %v1029 = vsel %vm277, %v1028, %v1027
        %v1030 = vpack.c.b16 %v1029, %v1029
        %v1035 = vunpack.c.l.b16 %v1023
        %v1036 = vunpack.c.l.b16 %v1024
        %v1037 = vunpack.c.l.b16 %v1025
        %v1038 = vunpack.c.l.b16 %v1026
        %v1039 = vpack.c.b16 %v1036, %v1035
        %v1040 = vpack.c.b16 %v1038, %v1037
        %v1044 = vsel %vm292, %v1030, 0
        %1046 = vmatprep.subr.bf16.mxu0 0
        %1047 = vmatpush1.bf16.msra.mxu0 %v1039
        %1048 = vmatprep.subr.bf16.mxu0 0
        %1049 = vmatpush1.bf16.msra.mxu0 %v1040
        %1050 = vmatprep.subr.bf16.mxu0 0
        %1051 = vmatpush1.bf16.msra.mxu0 0
        %1052 = vmatprep.subr.bf16.mxu0 0
        %1053 = vmatpush1.bf16.msra.mxu0 0
        %1054 = vmatprep.subr.bf16.mxu0 0
        %1055 = vmatpush1.bf16.msra.mxu0 0
        %1056 = vmatprep.subr.bf16.mxu0 0
        %1057 = vmatpush1.bf16.msra.mxu0 0
        %1058 = vmatprep.subr.bf16.mxu0 0
        %1059 = vmatpush1.bf16.msra.mxu0 0
        %1060 = vmatprep.subr.bf16.mxu0 0
        %1061 = vmatpush1.bf16.msra.mxu0 0
        %1062 = vmatprep.subr.bf16.mxu0 0
        %1063 = vmatpush1.bf16.msra.mxu0 0
        %1064 = vmatprep.subr.bf16.mxu0 0
        %1065 = vmatpush1.bf16.msra.mxu0 0
        %1066 = vmatprep.subr.bf16.mxu0 0
        %1067 = vmatpush1.bf16.msra.mxu0 0
        %1068 = vmatprep.subr.bf16.mxu0 0
        %1069 = vmatpush1.bf16.msra.mxu0 0
        %1070 = vmatprep.subr.bf16.mxu0 0
        %1071 = vmatpush1.bf16.msra.mxu0 0
        %1072 = vmatprep.subr.bf16.mxu0 0
        %1073 = vmatpush1.bf16.msra.mxu0 0
        %1074 = vmatprep.subr.bf16.mxu0 0
        %1075 = vmatpush1.bf16.msra.mxu0 0
        %1076 = vmatprep.subr.bf16.mxu0 0
        %1077 = vmatpush1.bf16.msra.mxu0 0
        %1078 = vmatprep.mubr.bf16.mxu0 0
        %1079 = vmatmul.mubr.bf16.gmra.mrb[0].mxu0 %v1044
        %v1080 = vpop.f32.mrb[0].mxu0
        %v1081 = vadd.f32 0.0, %v1080
        %v1082 = vpop.f32.mrb[0].mxu0
        %v1083 = vpop.f32.mrb[0].mxu0
        %v1084 = vpop.f32.mrb[0].mxu0
        %1085 = vdwg.mxu0
        %v1086 = vadd.f32 %v1022, %v1081
        %v1087 = vld [vmem:[%s524] sm:$0xf]
        %v1088 = vld [vmem:[%s524 + $0x4] sm:$0xf]
        %v1089 = vld [vmem:[%s524 + $0x8] sm:$0xf]
        %v1090 = vld [vmem:[%s524 + $0xc] sm:$0xf]
        %v1091 = vrot.slane %v841, 4
        %v1092 = vrot.slane %v842, 3
        %v1093 = vsel %vm277, %v1092, %v1091
        %v1094 = vpack.c.b16 %v1093, %v1093
        %v1099 = vunpack.c.l.b16 %v1087
        %v1100 = vunpack.c.l.b16 %v1088
        %v1101 = vunpack.c.l.b16 %v1089
        %v1102 = vunpack.c.l.b16 %v1090
        %v1103 = vpack.c.b16 %v1100, %v1099
        %v1104 = vpack.c.b16 %v1102, %v1101
        %v1108 = vsel %vm292, %v1094, 0
        %1110 = vmatprep.subr.bf16.mxu0 0
        %1111 = vmatpush1.bf16.msra.mxu0 %v1103
        %1112 = vmatprep.subr.bf16.mxu0 0
        %1113 = vmatpush1.bf16.msra.mxu0 %v1104
        %1114 = vmatprep.subr.bf16.mxu0 0
        %1115 = vmatpush1.bf16.msra.mxu0 0
        %1116 = vmatprep.subr.bf16.mxu0 0
        %1117 = vmatpush1.bf16.msra.mxu0 0
        %1118 = vmatprep.subr.bf16.mxu0 0
        %1119 = vmatpush1.bf16.msra.mxu0 0
        %1120 = vmatprep.subr.bf16.mxu0 0
        %1121 = vmatpush1.bf16.msra.mxu0 0
        %1122 = vmatprep.subr.bf16.mxu0 0
        %1123 = vmatpush1.bf16.msra.mxu0 0
        %1124 = vmatprep.subr.bf16.mxu0 0
        %1125 = vmatpush1.bf16.msra.mxu0 0
        %1126 = vmatprep.subr.bf16.mxu0 0
        %1127 = vmatpush1.bf16.msra.mxu0 0
        %1128 = vmatprep.subr.bf16.mxu0 0
        %1129 = vmatpush1.bf16.msra.mxu0 0
        %1130 = vmatprep.subr.bf16.mxu0 0
        %1131 = vmatpush1.bf16.msra.mxu0 0
        %1132 = vmatprep.subr.bf16.mxu0 0
        %1133 = vmatpush1.bf16.msra.mxu0 0
        %1134 = vmatprep.subr.bf16.mxu0 0
        %1135 = vmatpush1.bf16.msra.mxu0 0
        %1136 = vmatprep.subr.bf16.mxu0 0
        %1137 = vmatpush1.bf16.msra.mxu0 0
        %1138 = vmatprep.subr.bf16.mxu0 0
        %1139 = vmatpush1.bf16.msra.mxu0 0
        %1140 = vmatprep.subr.bf16.mxu0 0
        %1141 = vmatpush1.bf16.msra.mxu0 0
        %1142 = vmatprep.mubr.bf16.mxu0 0
        %1143 = vmatmul.mubr.bf16.gmra.mrb[0].mxu0 %v1108
        %v1144 = vpop.f32.mrb[0].mxu0
        %v1145 = vadd.f32 0.0, %v1144
        %v1146 = vpop.f32.mrb[0].mxu0
        %v1147 = vpop.f32.mrb[0].mxu0
        %v1148 = vpop.f32.mrb[0].mxu0
        %1149 = vdwg.mxu0
        %v1150 = vadd.f32 %v1086, %v1145
        %v1151 = vld [vmem:[%s589] sm:$0xf]
        %v1152 = vld [vmem:[%s589 + $0x4] sm:$0xf]
        %v1153 = vld [vmem:[%s589 + $0x8] sm:$0xf]
        %v1154 = vld [vmem:[%s589 + $0xc] sm:$0xf]
        %v1155 = vrot.slane %v841, 5
        %v1156 = vrot.slane %v842, 4
        %v1157 = vsel %vm277, %v1156, %v1155
        %v1158 = vpack.c.b16 %v1157, %v1157
        %v1163 = vunpack.c.l.b16 %v1151
        %v1164 = vunpack.c.l.b16 %v1152
        %v1165 = vunpack.c.l.b16 %v1153
        %v1166 = vunpack.c.l.b16 %v1154
        %v1167 = vpack.c.b16 %v1164, %v1163
        %v1168 = vpack.c.b16 %v1166, %v1165
        %v1172 = vsel %vm292, %v1158, 0
        %1174 = vmatprep.subr.bf16.mxu0 0
        %1175 = vmatpush1.bf16.msra.mxu0 %v1167
        %1176 = vmatprep.subr.bf16.mxu0 0
        %1177 = vmatpush1.bf16.msra.mxu0 %v1168
        %1178 = vmatprep.subr.bf16.mxu0 0
        %1179 = vmatpush1.bf16.msra.mxu0 0
        %1180 = vmatprep.subr.bf16.mxu0 0
        %1181 = vmatpush1.bf16.msra.mxu0 0
        %1182 = vmatprep.subr.bf16.mxu0 0
        %1183 = vmatpush1.bf16.msra.mxu0 0
        %1184 = vmatprep.subr.bf16.mxu0 0
        %1185 = vmatpush1.bf16.msra.mxu0 0
        %1186 = vmatprep.subr.bf16.mxu0 0
        %1187 = vmatpush1.bf16.msra.mxu0 0
        %1188 = vmatprep.subr.bf16.mxu0 0
        %1189 = vmatpush1.bf16.msra.mxu0 0
        %1190 = vmatprep.subr.bf16.mxu0 0
        %1191 = vmatpush1.bf16.msra.mxu0 0
        %1192 = vmatprep.subr.bf16.mxu0 0
        %1193 = vmatpush1.bf16.msra.mxu0 0
        %1194 = vmatprep.subr.bf16.mxu0 0
        %1195 = vmatpush1.bf16.msra.mxu0 0
        %1196 = vmatprep.subr.bf16.mxu0 0
        %1197 = vmatpush1.bf16.msra.mxu0 0
        %1198 = vmatprep.subr.bf16.mxu0 0
        %1199 = vmatpush1.bf16.msra.mxu0 0
        %1200 = vmatprep.subr.bf16.mxu0 0
        %1201 = vmatpush1.bf16.msra.mxu0 0
        %1202 = vmatprep.subr.bf16.mxu0 0
        %1203 = vmatpush1.bf16.msra.mxu0 0
        %1204 = vmatprep.subr.bf16.mxu0 0
        %1205 = vmatpush1.bf16.msra.mxu0 0
        %1206 = vmatprep.mubr.bf16.mxu0 0
        %1207 = vmatmul.mubr.bf16.gmra.mrb[0].mxu0 %v1172
        %v1208 = vpop.f32.mrb[0].mxu0
        %v1209 = vadd.f32 0.0, %v1208
        %v1210 = vpop.f32.mrb[0].mxu0
        %v1211 = vpop.f32.mrb[0].mxu0
        %v1212 = vpop.f32.mrb[0].mxu0
        %1213 = vdwg.mxu0
        %v1214 = vadd.f32 %v1150, %v1209
        %v1215 = vld [vmem:[%s654] sm:$0xf]
        %v1216 = vld [vmem:[%s654 + $0x4] sm:$0xf]
        %v1217 = vld [vmem:[%s654 + $0x8] sm:$0xf]
        %v1218 = vld [vmem:[%s654 + $0xc] sm:$0xf]
        %v1219 = vrot.slane %v841, 6
        %v1220 = vrot.slane %v842, 5
        %v1221 = vsel %vm277, %v1220, %v1219
        %v1222 = vpack.c.b16 %v1221, %v1221
        %v1227 = vunpack.c.l.b16 %v1215
        %v1228 = vunpack.c.l.b16 %v1216
        %v1229 = vunpack.c.l.b16 %v1217
        %v1230 = vunpack.c.l.b16 %v1218
        %v1231 = vpack.c.b16 %v1228, %v1227
        %v1232 = vpack.c.b16 %v1230, %v1229
        %v1236 = vsel %vm292, %v1222, 0
        %1238 = vmatprep.subr.bf16.mxu0 0
        %1239 = vmatpush1.bf16.msra.mxu0 %v1231
        %1240 = vmatprep.subr.bf16.mxu0 0
        %1241 = vmatpush1.bf16.msra.mxu0 %v1232
        %1242 = vmatprep.subr.bf16.mxu0 0
        %1243 = vmatpush1.bf16.msra.mxu0 0
        %1244 = vmatprep.subr.bf16.mxu0 0
        %1245 = vmatpush1.bf16.msra.mxu0 0
        %1246 = vmatprep.subr.bf16.mxu0 0
        %1247 = vmatpush1.bf16.msra.mxu0 0
        %1248 = vmatprep.subr.bf16.mxu0 0
        %1249 = vmatpush1.bf16.msra.mxu0 0
        %1250 = vmatprep.subr.bf16.mxu0 0
        %1251 = vmatpush1.bf16.msra.mxu0 0
        %1252 = vmatprep.subr.bf16.mxu0 0
        %1253 = vmatpush1.bf16.msra.mxu0 0
        %1254 = vmatprep.subr.bf16.mxu0 0
        %1255 = vmatpush1.bf16.msra.mxu0 0
        %1256 = vmatprep.subr.bf16.mxu0 0
        %1257 = vmatpush1.bf16.msra.mxu0 0
        %1258 = vmatprep.subr.bf16.mxu0 0
        %1259 = vmatpush1.bf16.msra.mxu0 0
        %1260 = vmatprep.subr.bf16.mxu0 0
        %1261 = vmatpush1.bf16.msra.mxu0 0
        %1262 = vmatprep.subr.bf16.mxu0 0
        %1263 = vmatpush1.bf16.msra.mxu0 0
        %1264 = vmatprep.subr.bf16.mxu0 0
        %1265 = vmatpush1.bf16.msra.mxu0 0
        %1266 = vmatprep.subr.bf16.mxu0 0
        %1267 = vmatpush1.bf16.msra.mxu0 0
        %1268 = vmatprep.subr.bf16.mxu0 0
        %1269 = vmatpush1.bf16.msra.mxu0 0
        %1270 = vmatprep.mubr.bf16.mxu0 0
        %1271 = vmatmul.mubr.bf16.gmra.mrb[0].mxu0 %v1236
        %v1272 = vpop.f32.mrb[0].mxu0
        %v1273 = vadd.f32 0.0, %v1272
        %v1274 = vpop.f32.mrb[0].mxu0
        %v1275 = vpop.f32.mrb[0].mxu0
        %v1276 = vpop.f32.mrb[0].mxu0
        %1277 = vdwg.mxu0
        %v1278 = vadd.f32 %v1214, %v1273
        %v1279 = vld [vmem:[%s719] sm:$0xf]
        %v1280 = vld [vmem:[%s719 + $0x4] sm:$0xf]
        %v1281 = vld [vmem:[%s719 + $0x8] sm:$0xf]
        %v1282 = vld [vmem:[%s719 + $0xc] sm:$0xf]
        %v1283 = vrot.slane %v841, 7
        %v1284 = vrot.slane %v842, 6
        %v1285 = vsel %vm277, %v1284, %v1283
        %v1286 = vpack.c.b16 %v1285, %v1285
        %v1291 = vunpack.c.l.b16 %v1279
        %v1292 = vunpack.c.l.b16 %v1280
        %v1293 = vunpack.c.l.b16 %v1281
        %v1294 = vunpack.c.l.b16 %v1282
        %v1295 = vpack.c.b16 %v1292, %v1291
        %v1296 = vpack.c.b16 %v1294, %v1293
        %v1300 = vsel %vm292, %v1286, 0
        %1302 = vmatprep.subr.bf16.mxu0 0
        %1303 = vmatpush1.bf16.msra.mxu0 %v1295
        %1304 = vmatprep.subr.bf16.mxu0 0
        %1305 = vmatpush1.bf16.msra.mxu0 %v1296
        %1306 = vmatprep.subr.bf16.mxu0 0
        %1307 = vmatpush1.bf16.msra.mxu0 0
        %1308 = vmatprep.subr.bf16.mxu0 0
        %1309 = vmatpush1.bf16.msra.mxu0 0
        %1310 = vmatprep.subr.bf16.mxu0 0
        %1311 = vmatpush1.bf16.msra.mxu0 0
        %1312 = vmatprep.subr.bf16.mxu0 0
        %1313 = vmatpush1.bf16.msra.mxu0 0
        %1314 = vmatprep.subr.bf16.mxu0 0
        %1315 = vmatpush1.bf16.msra.mxu0 0
        %1316 = vmatprep.subr.bf16.mxu0 0
        %1317 = vmatpush1.bf16.msra.mxu0 0
        %1318 = vmatprep.subr.bf16.mxu0 0
        %1319 = vmatpush1.bf16.msra.mxu0 0
        %1320 = vmatprep.subr.bf16.mxu0 0
        %1321 = vmatpush1.bf16.msra.mxu0 0
        %1322 = vmatprep.subr.bf16.mxu0 0
        %1323 = vmatpush1.bf16.msra.mxu0 0
        %1324 = vmatprep.subr.bf16.mxu0 0
        %1325 = vmatpush1.bf16.msra.mxu0 0
        %1326 = vmatprep.subr.bf16.mxu0 0
        %1327 = vmatpush1.bf16.msra.mxu0 0
        %1328 = vmatprep.subr.bf16.mxu0 0
        %1329 = vmatpush1.bf16.msra.mxu0 0
        %1330 = vmatprep.subr.bf16.mxu0 0
        %1331 = vmatpush1.bf16.msra.mxu0 0
        %1332 = vmatprep.subr.bf16.mxu0 0
        %1333 = vmatpush1.bf16.msra.mxu0 0
        %1334 = vmatprep.mubr.bf16.mxu0 0
        %1335 = vmatmul.mubr.bf16.gmra.mrb[0].mxu0 %v1300
        %v1336 = vpop.f32.mrb[0].mxu0
        %v1337 = vadd.f32 0.0, %v1336
        %v1338 = vpop.f32.mrb[0].mxu0
        %v1339 = vpop.f32.mrb[0].mxu0
        %v1340 = vpop.f32.mrb[0].mxu0
        %1341 = vdwg.mxu0
        %v1342 = vadd.f32 %v1278, %v1337
        %v1343 = vadd.f32 %v1342, %v788
        %v1344 = vpack.c.bf16 %v1343, %v1343
        %v1347 = vunpack.c.l.s4 1983009808
        %v1348 = vunpack.c.0.s8 %v1347
        %v1349 = vlaneseq
        %v1350 = vshrl.u32 %v1349, 7
        %v1351 = vsub.s32 %v1348, %v1350
        %v1352 = vrot.slane %v1344, %v1351
        %v1353 = vrot.slane %v1352, 7
        %1355 = vst [vmem:[%s221] sm:$0x2] %v1353
        %s1356 = sand.u32 %s113, 1
        %s1357 = scalar_lea.sflag [#allocation4], %s1356
        %s1358 = sand.u32 %s113, 1
        %s1359 = smul.addr %s1358, 2
        %s1360 = scalar_lea.vmem [#allocation7], %s1359
        // Predicated region
        $region41: #{_lambda_.1} parent=31 // pred_check
          %p1361 = pneg %p123
        $region42: #{_lambda_.1} parent=31 // pred_check_branch
          %1363 = sbr.rel (%p1361) target = $region44
        $region43: #{_lambda_.1} parent=31 // pred_region
          %s1365 = ssub.s32 32, 32
          %1366 = vsyncadd %s1357, %s1365
          %s1367 = sadd.s32 %s26, %s25
          %s1368 = smul.addr %s1367, 32
          %s1369 = scalar_lea.hbm %s3, %s1368
          %s1371 = sshll.u32 %s1360, 4
          %s1372 = int_to_ptr.vmem [resolvable:$true] %s1371
          %1374 = dma.vmem_to_hbm [thread:$0]  %s1372, 32, %s1369, %s1357
        $region44: #{_lambda_.1} parent=31 // pred_fallthru
          _
      $region32: #{_lambda_.1} parent=5 // pred_fallthru
        _
      %p1375 = scmp.le.s32.totalorder 2, %s16
      // Predicated region
      $region45: #{_lambda_.1} parent=5 // pred_check
        %p1376 = pneg %p1375
      $region46: #{_lambda_.1} parent=5 // pred_check_branch
        %1378 = sbr.rel (%p1376) target = $region48
      $region47: #{_lambda_.1} parent=5 // pred_region
        %s1379 = ssub.s32 %s16, 2
        // Predicated region
        $region49: #{_lambda_.1} parent=47 // pred_check
          %p1380 = pneg %p129
        $region50: #{_lambda_.1} parent=47 // pred_check_branch
          %1382 = sbr.rel (%p1380) target = $region52
        $region51: #{_lambda_.1} parent=47 // pred_region
          %s1383 = sand.u32 %s114, 1
          %s1384 = scalar_lea.sflag [#allocation4], %s1383
          %s1385 = sand.u32 %s114, 1
          %s1386 = smul.addr %s1385, 2
          %s1387 = scalar_lea.vmem [#allocation7], %s1386
          %1388 = dma.done %s1384, 32
        $region52: #{_lambda_.1} parent=47 // pred_fallthru
          _
      $region48: #{_lambda_.1} parent=5 // pred_fallthru
        _
    $region6: #{_lambda_.1} parent=1 // loop_footer
      %s20 = sadd.s32 1, %s16
    $region7: #{_lambda_.1} parent=1 // loop_footer_branch
      %15 = sbr.rel target = $region3
    $region8: #{_lambda_.1} parent=1 // loop_exit
      _
    %1389 = vsyncpa [#allocation3], 1
    %s1390 = scalar_lea.sflag [#allocation3], 1
    %1391 = vsyncpa %s1390, 1
    %1392 = vsyncpa [#allocation6], 1
    %1393 = vsyncpa [#allocation4], 1
    %s1394 = scalar_lea.sflag [#allocation4], 1
    %1395 = vsyncpa %s1394, 1

// kernel: _lambda_.1
$region0: #{_lambda_.1}
  #allocation0 [shape = 'u32[]', space=smem, size = 0x4, offset = 0x4, fixed_abs, tag = 'smem constant byte address 0x4 - core index']
  #allocation1 [shape = 'u32[144,128]{1,0:T(1,128)}', space=vmem, size = 0x12000, scoped, tag = 'internal scratch']
  %s0 = inlined_call_operand.hbm [shape: f32[2,4,16,16], index: 0, kind: input, shape index: {}]
  %s1 = inlined_call_operand.hbm [shape: bf16[8,32,128], index: 1, kind: input, shape index: {}]
  %s2 = inlined_call_operand.vmem [shape: f32[1,128], index: 2, kind: input, shape index: {}]
  %s3 = inlined_call_operand.hbm [shape: bf16[2,4,128], index: 3, kind: output, shape index: {}]
  %s4 = sld [smem:[#allocation0]]
  $region53: #{_lambda_.1} parent=0
    _
  %s6 = ssub.s32 1, %s4
  %s7 = scalar_select 0, %s6, %s4
  $region1: #{_lambda_.1} parent=0
    #allocation2 [shape = 'u8[65536]{0}', space=vmem, size = 0x10000, scoped, tag = 'input window, operand 0']
    #allocation3 [shape = 's32[2]{0}', space=sflag, size = 0x8, scoped, tag = 'scoped memory for _lambda_.1']
    #allocation4 [shape = 's32[2]{0}', space=sflag, size = 0x8, scoped, tag = 'scoped memory for _lambda_.1']
    #allocation5 [shape = 'u8[65536]{0}', space=vmem, size = 0x10000, scoped, tag = 'input window, operand 1, single buffered']
    #allocation6 [shape = 's32[1]{0}', space=sflag, size = 0x4, scoped, tag = 'scoped memory for _lambda_.1']
    #allocation7 [shape = 'u8[2048]{0}', space=vmem, size = 0x800, scoped, tag = 'output window, operand 0']
    %8 = vsyncpa [#allocation3], 0
    %s9 = scalar_lea.sflag [#allocation3], 1
    %10 = vsyncpa %s9, 0
    %11 = vsyncpa [#allocation6], 0
    %12 = vsyncpa [#allocation4], 0
    %s13 = scalar_lea.sflag [#allocation4], 1
    %14 = vsyncpa %s13, 0
    loop: start=0, step=1, limit=4
    $region2: #{_lambda_.1} parent=1 // loop_pre_header
      _
    $region3: #{_lambda_.1} parent=1 // loop_header
      %s16 = sphi 0, %s20
      %p17 = scmp.ge.s32.totalorder %s16, 4
      %s23 = sphi 0, %s35
      %s24 = sphi 0, %s31
      %s25 = sphi 0, %s23
      %s26 = sphi 0, %s24
      %s27 = sphi 0, %s25
      %s28 = sphi 0, %s26
      %s40 = sphi 0, %s42
      %s43 = sphi 0, %s40
      %s44 = sphi 0, %s43
      %s60 = sphi 0, %s44
      %s64 = sphi 0, %s64
      %s66 = sphi 0, %s64
      %s67 = sphi 0, %s66
      %s81 = sphi 0, %s67
      %s85 = sphi 0, %s85
      %s87 = sphi 0, %s85
      %s88 = sphi 0, %s87
      %s102 = sphi 0, %s88
      %s110 = sphi 0, %s112
      %s113 = sphi 0, %s110
      %s114 = sphi 0, %s113
      %s130 = sphi 0, %s114
    $region4: #{_lambda_.1} parent=1 // loop_header_branch
      %19 = sbr.rel (%p17) target = $region8
    $region5: #{_lambda_.1} parent=1 // loop_body
      %s21 = ssub.s32 %s16, 1
      %s22 = ssub.s32 %s16, 2
      %s29 = sadd.s32 1, %s24
      %p30 = scmp.ge.s32.totalorder %s29, 1
      %s31 = scalar_select %p30, 0, %s29
      %s32 = sadd.s32 1, %s23
      %s33 = scalar_select %p30, %s32, %s23
      %p34 = scmp.ge.s32.totalorder %s33, 2
      %s35 = scalar_select %p34, 0, %s33
      %s36 = ssub.s32 %s23, %s35
      %s37 = ssub.s32 %s24, %s31
      %s38 = sor.u32 %s36, %s37
      %p39 = scmp.eq.s32.totalorder %s38, 0
      %s41 = sadd.s32 %s40, 1
      %s42 = scalar_select %p39, %s40, %s41
      %p45 = pneg %p39
      %p46 = scmp.eq.s32.totalorder %s16, 1
      %p47 = por %p45, %p46
      %p48 = scmp.ne.s32.totalorder %s40, %s43
      %p49 = scmp.eq.s32.totalorder %s16, 0
      %p50 = por %p48, %p49
      %p51 = scmp.ne.s32.totalorder %s40, %s43
      %p52 = scmp.eq.s32.totalorder %s21, 1
      %p53 = por %p51, %p52
      %p54 = scmp.ne.s32.totalorder %s43, %s44
      %p55 = scmp.eq.s32.totalorder %s21, 0
      %p56 = por %p54, %p55
      %p57 = scmp.ne.s32.totalorder %s43, %s44
      %p58 = scmp.eq.s32.totalorder %s22, 1
      %p59 = por %p57, %p58
      %p61 = scmp.ne.s32.totalorder %s44, %s60
      %p62 = scmp.eq.s32.totalorder %s22, 0
      %p63 = por %p61, %p62
      %s65 = sadd.s32 %s64, 1
      %p68 = scmp.eq.s32.totalorder %s16, 1
      %p69 = scmp.ne.s32.totalorder %s64, %s66
      %p70 = scmp.eq.s32.totalorder %s16, 0
      %p71 = por %p69, %p70
      %p72 = scmp.ne.s32.totalorder %s64, %s66
      %p73 = scmp.eq.s32.totalorder %s21, 1
      %p74 = por %p72, %p73
      %p75 = scmp.ne.s32.totalorder %s66, %s67
      %p76 = scmp.eq.s32.totalorder %s21, 0
      %p77 = por %p75, %p76
      %p78 = scmp.ne.s32.totalorder %s66, %s67
      %p79 = scmp.eq.s32.totalorder %s22, 1
      %p80 = por %p78, %p79
      %p82 = scmp.ne.s32.totalorder %s67, %s81
      %p83 = scmp.eq.s32.totalorder %s22, 0
      %p84 = por %p82, %p83
      %s86 = sadd.s32 %s85, 1
      %p89 = scmp.eq.s32.totalorder %s16, 1
      %p90 = scmp.ne.s32.totalorder %s85, %s87
      %p91 = scmp.eq.s32.totalorder %s16, 0
      %p92 = por %p90, %p91
      %p93 = scmp.ne.s32.totalorder %s85, %s87
      %p94 = scmp.eq.s32.totalorder %s21, 1
      %p95 = por %p93, %p94
      %p96 = scmp.ne.s32.totalorder %s87, %s88
      %p97 = scmp.eq.s32.totalorder %s21, 0
      %p98 = por %p96, %p97
      %p99 = scmp.ne.s32.totalorder %s87, %s88
      %p100 = scmp.eq.s32.totalorder %s22, 1
      %p101 = por %p99, %p100
      %p103 = scmp.ne.s32.totalorder %s88, %s102
      %p104 = scmp.eq.s32.totalorder %s22, 0
      %p105 = por %p103, %p104
      %s106 = ssub.s32 %s23, %s35
      %s107 = ssub.s32 %s24, %s31
      %s108 = sor.u32 %s106, %s107
      %p109 = scmp.eq.s32.totalorder %s108, 0
      %s111 = sadd.s32 %s110, 1
      %s112 = scalar_select %p109, %s110, %s111
      %p115 = pneg %p109
      %p116 = scmp.eq.s32.totalorder %s16, 1
      %p117 = por %p115, %p116
      %p118 = scmp.ne.s32.totalorder %s110, %s113
      %p119 = scmp.eq.s32.totalorder %s16, 0
      %p120 = por %p118, %p119
      %p121 = scmp.ne.s32.totalorder %s110, %s113
      %p122 = scmp.eq.s32.totalorder %s21, 1
      %p123 = por %p121, %p122
      %p124 = scmp.ne.s32.totalorder %s113, %s114
      %p125 = scmp.eq.s32.totalorder %s21, 0
      %p126 = por %p124, %p125
      %p127 = scmp.ne.s32.totalorder %s113, %s114
      %p128 = scmp.eq.s32.totalorder %s22, 1
      %p129 = por %p127, %p128
      %p131 = scmp.ne.s32.totalorder %s114, %s130
      %p132 = scmp.eq.s32.totalorder %s22, 0
      %p133 = por %p131, %p132
      %p134 = scmp.le.s32.totalorder 1, %s16
      %p135 = scmp.lt.s32.totalorder %s16, 3
      %p136 = pnand %p134, %p135
      %p137 = pneg %p136
      // Predicated region
      $region9: #{_lambda_.1} parent=5 // pred_check
        _
      $region10: #{_lambda_.1} parent=5 // pred_check_branch
        %139 = sbr.rel (%p136) target = $region12
      $region11: #{_lambda_.1} parent=5 // pred_region
        %s140 = ssub.s32 %s16, 1
        // Predicated region
        $region13: #{_lambda_.1} parent=11 // pred_check
          %p141 = pneg %p77
        $region14: #{_lambda_.1} parent=11 // pred_check_branch
          %143 = sbr.rel (%p141) target = $region16
        $region15: #{_lambda_.1} parent=11 // pred_region
          %s145 = ssub.s32 2048, 2048
          %146 = vsyncadd [#allocation6], %s145
          %s147 = sshll.u32 [#allocation5], 4
          %s148 = int_to_ptr.vmem [resolvable:$true] %s147
          %153 = dma.hbm_to_vmem [thread:$0]  %s1, 2048, %s148, [#allocation6], 64, 64, 4
        $region16: #{_lambda_.1} parent=11 // pred_fallthru
          _
        // Predicated region
        $region17: #{_lambda_.1} parent=11 // pred_check
          %p154 = pneg %p98
        $region18: #{_lambda_.1} parent=11 // pred_check_branch
          %156 = sbr.rel (%p154) target = $region20
        $region19: #{_lambda_.1} parent=11 // pred_region
          _
        $region20: #{_lambda_.1} parent=11 // pred_fallthru
          _
      $region12: #{_lambda_.1} parent=5 // pred_fallthru
        _
      %p157 = scmp.lt.s32.totalorder %s16, 2
      // Predicated region
      $region21: #{_lambda_.1} parent=5 // pred_check
        %p158 = pneg %p157
      $region22: #{_lambda_.1} parent=5 // pred_check_branch
        %160 = sbr.rel (%p158) target = $region24
      $region23: #{_lambda_.1} parent=5 // pred_region
        // Predicated region
        $region25: #{_lambda_.1} parent=23 // pred_check
          %p161 = pneg %p50
        $region26: #{_lambda_.1} parent=23 // pred_check_branch
          %163 = sbr.rel (%p161) target = $region28
        $region27: #{_lambda_.1} parent=23 // pred_region
          %s164 = sand.u32 %s40, 1
          %s165 = scalar_lea.sflag [#allocation3], %s164
          %s166 = sand.u32 %s40, 1
          %s167 = smul.addr %s166, 64
          %s168 = scalar_lea.vmem [#allocation2], %s167
          %s169 = smul.u32 2, %s24
          %s171 = ssub.s32 1024, 1024
          %172 = vsyncadd %s165, %s171
          %s173 = smul.addr %s23, 8
          %s174 = sadd.s32 %s169, %s173
          %s175 = smul.addr %s174, 128
          %s176 = scalar_lea.hbm %s0, %s175
          %s177 = sshll.u32 %s168, 4
          %s178 = int_to_ptr.vmem [resolvable:$true] %s177
          %183 = dma.hbm_to_vmem [thread:$0]  %s176, 1024, %s178, %s165, 128, 128, 8
        $region28: #{_lambda_.1} parent=23 // pred_fallthru
          _
      $region24: #{_lambda_.1} parent=5 // pred_fallthru
        _
      %p184 = scmp.le.s32.totalorder 1, %s16
      %p185 = scmp.lt.s32.totalorder %s16, 3
      %p186 = pnand %p184, %p185
      %p187 = pneg %p186
      // Predicated region
      $region29: #{_lambda_.1} parent=5 // pred_check
        _
      $region30: #{_lambda_.1} parent=5 // pred_check_branch
        %189 = sbr.rel (%p186) target = $region32
      $region31: #{_lambda_.1} parent=5 // pred_region
        %s190 = ssub.s32 %s16, 1
        %s191 = sand.u32 %s43, 1
        %s192 = scalar_lea.sflag [#allocation3], %s191
        %s193 = sand.u32 %s43, 1
        %s194 = smul.addr %s193, 64
        %s195 = scalar_lea.vmem [#allocation2], %s194
        // Predicated region
        $region33: #{_lambda_.1} parent=31 // pred_check
          %p196 = pneg %p56
        $region34: #{_lambda_.1} parent=31 // pred_check_branch
          %198 = sbr.rel (%p196) target = $region36
        $region35: #{_lambda_.1} parent=31 // pred_region
          %199 = dma.done %s192, 1024
        $region36: #{_lambda_.1} parent=31 // pred_fallthru
          _
        // Predicated region
        $region37: #{_lambda_.1} parent=31 // pred_check
          %p200 = pneg %p77
        $region38: #{_lambda_.1} parent=31 // pred_check_branch
          %202 = sbr.rel (%p200) target = $region40
        $region39: #{_lambda_.1} parent=31 // pred_region
          %203 = dma.done [#allocation6], 2048
        $region40: #{_lambda_.1} parent=31 // pred_fallthru
          _
        %s204 = sand.u32 %s43, 1
        %s205 = scalar_lea.sflag [#allocation3], %s204
        %s206 = sand.u32 %s43, 1
        %s207 = smul.addr %s206, 64
        %s208 = scalar_lea.vmem [#allocation2], %s207
        %p209 = pneg %p56
        %p210 = pneg %p53
        %p211 = pneg %p77
        %p212 = pneg %p74
        %p213 = pneg %p98
        %p214 = pneg %p95
        %p215 = pneg %p126
        %p216 = pneg %p123
        %s217 = sand.u32 %s113, 1
        %s218 = scalar_lea.sflag [#allocation4], %s217
        %s219 = sand.u32 %s113, 1
        %s220 = smul.addr %s219, 2
        %s221 = scalar_lea.vmem [#allocation7], %s220
        %s222 = smul.u32 2, %s26
        %v224 = vld [vmem:[%s2] sm:$0x1]
        %v225 = vld [vmem:[%s195] sm:$0xff]
        %v226 = vld [vmem:[%s195 + $0x10] sm:$0xff]
        %v227 = vld [vmem:[%s195 + $0x20] sm:$0xff]
        %v228 = vld [vmem:[%s195 + $0x30] sm:$0xff]
        %229 = vxpose.xlu0.b32.start [1/16] %v225, 128
        %230 = vxpose.xlu0.b32.cont [2/16] %v226, 128
        %231 = vxpose.xlu0.b32.cont [3/16] %v227, 128
        %232 = vxpose.xlu0.b32.cont [4/16] %v228, 128
        %233 = vxpose.xlu0.b32.cont [5/16] 0.0, 128
        %234 = vxpose.xlu0.b32.cont [6/16] 0.0, 128
        %235 = vxpose.xlu0.b32.cont [7/16] 0.0, 128
        %236 = vxpose.xlu0.b32.cont [8/16] 0.0, 128
        %237 = vxpose.xlu0.b32.cont [9/16] 0.0, 128
        %238 = vxpose.xlu0.b32.cont [10/16] 0.0, 128
        %239 = vxpose.xlu0.b32.cont [11/16] 0.0, 128
        %240 = vxpose.xlu0.b32.cont [12/16] 0.0, 128
        %241 = vxpose.xlu0.b32.cont [13/16] 0.0, 128
        %242 = vxpose.xlu0.b32.cont [14/16] 0.0, 128
        %243 = vxpose.xlu0.b32.cont [15/16] 0.0, 128
        %244 = vxpose.xlu0.b32.end [16/16] 0.0, 128
        %v245 = vpop.trf.xlu0
        %v246 = vpop.trf.xlu0
        %v247 = vpop.trf.xlu0
        %v248 = vpop.trf.xlu0
        %v249 = vpop.trf.xlu0
        %v250 = vpop.trf.xlu0
        %v251 = vpop.trf.xlu0
        %v252 = vpop.trf.xlu0
        %v253 = vpop.trf.xlu0
        %v254 = vpop.trf.xlu0
        %v255 = vpop.trf.xlu0
        %v256 = vpop.trf.xlu0
        %v257 = vpop.trf.xlu0
        %v258 = vpop.trf.xlu0
        %v259 = vpop.trf.xlu0
        %v260 = vpop.trf.xlu0
        %v261 = vpack.c.bf16 %v245, %v245
        %v262 = vpack.c.bf16 %v246, %v246
        %v263 = vld [vmem:[#allocation5] sm:$0xf]
        %v264 = vld [vmem:[#allocation5 + $0x4] sm:$0xf]
        %v265 = vld [vmem:[#allocation5 + $0x8] sm:$0xf]
        %v266 = vld [vmem:[#allocation5 + $0xc] sm:$0xf]
        %s267 = scalar_lea.vmem [#allocation5], 16
        %v268 = vld [vmem:[%s267] sm:$0xf]
        %v269 = vld [vmem:[%s267 + $0x4] sm:$0xf]
        %v270 = vld [vmem:[%s267 + $0x8] sm:$0xf]
        %v271 = vld [vmem:[%s267 + $0xc] sm:$0xf]
        %v274 = vunpack.c.l.b16 %v261
        %v275 = vunpack.c.l.b16 %v262
        %v276 = vrot.slane %v274, 1
        %vm277 = vcmask 1041409
        %v278 = vsel %vm277, %v275, %v276
        %v279 = vpack.c.b16 %v278, %v278
        %v284 = vunpack.c.l.b16 %v268
        %v285 = vunpack.c.l.b16 %v269
        %v286 = vunpack.c.l.b16 %v270
        %v287 = vunpack.c.l.b16 %v271
        %v288 = vpack.c.b16 %v285, %v284
        %v289 = vpack.c.b16 %v287, %v286
        %vm292 = vcmask 261120
        %v294 = vsel %vm292, %v279, 0
        %296 = vmatprep.subr.bf16.mxu0 0
        %297 = vmatpush1.bf16.msra.mxu0 %v288
        %298 = vmatprep.subr.bf16.mxu0 0
        %299 = vmatpush1.bf16.msra.mxu0 %v289
        %300 = vmatprep.subr.bf16.mxu0 0
        %301 = vmatpush1.bf16.msra.mxu0 0
        %302 = vmatprep.subr.bf16.mxu0 0
        %303 = vmatpush1.bf16.msra.mxu0 0
        %304 = vmatprep.subr.bf16.mxu0 0
        %305 = vmatpush1.bf16.msra.mxu0 0
        %306 = vmatprep.subr.bf16.mxu0 0
        %307 = vmatpush1.bf16.msra.mxu0 0
        %308 = vmatprep.subr.bf16.mxu0 0
        %309 = vmatpush1.bf16.msra.mxu0 0
        %310 = vmatprep.subr.bf16.mxu0 0
        %311 = vmatpush1.bf16.msra.mxu0 0
        %312 = vmatprep.subr.bf16.mxu0 0
        %313 = vmatpush1.bf16.msra.mxu0 0
        %314 = vmatprep.subr.bf16.mxu0 0
        %315 = vmatpush1.bf16.msra.mxu0 0
        %316 = vmatprep.subr.bf16.mxu0 0
        %317 = vmatpush1.bf16.msra.mxu0 0
        %318 = vmatprep.subr.bf16.mxu0 0
        %319 = vmatpush1.bf16.msra.mxu0 0
        %320 = vmatprep.subr.bf16.mxu0 0
        %321 = vmatpush1.bf16.msra.mxu0 0
        %322 = vmatprep.subr.bf16.mxu0 0
        %323 = vmatpush1.bf16.msra.mxu0 0
        %324 = vmatprep.subr.bf16.mxu0 0
        %325 = vmatpush1.bf16.msra.mxu0 0
        %326 = vmatprep.subr.bf16.mxu0 0
        %327 = vmatpush1.bf16.msra.mxu0 0
        %328 = vmatprep.mubr.bf16.mxu0 0
        %329 = vmatmul.mubr.bf16.gmra.mrb[0].mxu0 %v294
        %v330 = vpop.f32.mrb[0].mxu0
        %v331 = vadd.f32 0.0, %v330
        %v332 = vpop.f32.mrb[0].mxu0
        %v333 = vpop.f32.mrb[0].mxu0
        %v334 = vpop.f32.mrb[0].mxu0
        %335 = vdwg.mxu0
        %v336 = vrot.slane %v275, 7
        %v337 = vsel %vm277, %v336, %v274
        %v338 = vpack.c.b16 %v337, %v337
        %v343 = vunpack.c.l.b16 %v263
        %v344 = vunpack.c.l.b16 %v264
        %v345 = vunpack.c.l.b16 %v265
        %v346 = vunpack.c.l.b16 %v266
        %v347 = vpack.c.b16 %v344, %v343
        %v348 = vpack.c.b16 %v346, %v345
        %v352 = vsel %vm292, %v338, 0
        %354 = vmatprep.subr.bf16.mxu0 0
        %355 = vmatpush1.bf16.msra.mxu0 %v347
        %356 = vmatprep.subr.bf16.mxu0 0
        %357 = vmatpush1.bf16.msra.mxu0 %v348
        %358 = vmatprep.subr.bf16.mxu0 0
        %359 = vmatpush1.bf16.msra.mxu0 0
        %360 = vmatprep.subr.bf16.mxu0 0
        %361 = vmatpush1.bf16.msra.mxu0 0
        %362 = vmatprep.subr.bf16.mxu0 0
        %363 = vmatpush1.bf16.msra.mxu0 0
        %364 = vmatprep.subr.bf16.mxu0 0
        %365 = vmatpush1.bf16.msra.mxu0 0
        %366 = vmatprep.subr.bf16.mxu0 0
        %367 = vmatpush1.bf16.msra.mxu0 0
        %368 = vmatprep.subr.bf16.mxu0 0
        %369 = vmatpush1.bf16.msra.mxu0 0
        %370 = vmatprep.subr.bf16.mxu0 0
        %371 = vmatpush1.bf16.msra.mxu0 0
        %372 = vmatprep.subr.bf16.mxu0 0
        %373 = vmatpush1.bf16.msra.mxu0 0
        %374 = vmatprep.subr.bf16.mxu0 0
        %375 = vmatpush1.bf16.msra.mxu0 0
        %376 = vmatprep.subr.bf16.mxu0 0
        %377 = vmatpush1.bf16.msra.mxu0 0
        %378 = vmatprep.subr.bf16.mxu0 0
        %379 = vmatpush1.bf16.msra.mxu0 0
        %380 = vmatprep.subr.bf16.mxu0 0
        %381 = vmatpush1.bf16.msra.mxu0 0
        %382 = vmatprep.subr.bf16.mxu0 0
        %383 = vmatpush1.bf16.msra.mxu0 0
        %384 = vmatprep.subr.bf16.mxu0 0
        %385 = vmatpush1.bf16.msra.mxu0 0
        %386 = vmatprep.mubr.bf16.mxu0 0
        %387 = vmatmul.mubr.bf16.gmra.mrb[0].mxu0 %v352
        %v388 = vpop.f32.mrb[0].mxu0
        %v389 = vadd.f32 %v331, %v388
        %v390 = vpop.f32.mrb[0].mxu0
        %v391 = vpop.f32.mrb[0].mxu0
        %v392 = vpop.f32.mrb[0].mxu0
        %393 = vdwg.mxu0
        %s394 = scalar_lea.vmem [#allocation5], 32
        %v395 = vld [vmem:[%s394] sm:$0xf]
        %v396 = vld [vmem:[%s394 + $0x4] sm:$0xf]
        %v397 = vld [vmem:[%s394 + $0x8] sm:$0xf]
        %v398 = vld [vmem:[%s394 + $0xc] sm:$0xf]
        %v399 = vrot.slane %v274, 2
        %v400 = vrot.slane %v275, 1
        %v401 = vsel %vm277, %v400, %v399
        %v402 = vpack.c.b16 %v401, %v401
        %v407 = vunpack.c.l.b16 %v395
        %v408 = vunpack.c.l.b16 %v396
        %v409 = vunpack.c.l.b16 %v397
        %v410 = vunpack.c.l.b16 %v398
        %v411 = vpack.c.b16 %v408, %v407
        %v412 = vpack.c.b16 %v410, %v409
        %v416 = vsel %vm292, %v402, 0
        %418 = vmatprep.subr.bf16.mxu0 0
        %419 = vmatpush1.bf16.msra.mxu0 %v411
        %420 = vmatprep.subr.bf16.mxu0 0
        %421 = vmatpush1.bf16.msra.mxu0 %v412
        %422 = vmatprep.subr.bf16.mxu0 0
        %423 = vmatpush1.bf16.msra.mxu0 0
        %424 = vmatprep.subr.bf16.mxu0 0
        %425 = vmatpush1.bf16.msra.mxu0 0
        %426 = vmatprep.subr.bf16.mxu0 0
        %427 = vmatpush1.bf16.msra.mxu0 0
        %428 = vmatprep.subr.bf16.mxu0 0
        %429 = vmatpush1.bf16.msra.mxu0 0
        %430 = vmatprep.subr.bf16.mxu0 0
        %431 = vmatpush1.bf16.msra.mxu0 0
        %432 = vmatprep.subr.bf16.mxu0 0
        %433 = vmatpush1.bf16.msra.mxu0 0
        %434 = vmatprep.subr.bf16.mxu0 0
        %435 = vmatpush1.bf16.msra.mxu0 0
        %436 = vmatprep.subr.bf16.mxu0 0
        %437 = vmatpush1.bf16.msra.mxu0 0
        %438 = vmatprep.subr.bf16.mxu0 0
        %439 = vmatpush1.bf16.msra.mxu0 0
        %440 = vmatprep.subr.bf16.mxu0 0
        %441 = vmatpush1.bf16.msra.mxu0 0
        %442 = vmatprep.subr.bf16.mxu0 0
        %443 = vmatpush1.bf16.msra.mxu0 0
        %444 = vmatprep.subr.bf16.mxu0 0
        %445 = vmatpush1.bf16.msra.mxu0 0
        %446 = vmatprep.subr.bf16.mxu0 0
        %447 = vmatpush1.bf16.msra.mxu0 0
        %448 = vmatprep.subr.bf16.mxu0 0
        %449 = vmatpush1.bf16.msra.mxu0 0
        %450 = vmatprep.mubr.bf16.mxu0 0
        %451 = vmatmul.mubr.bf16.gmra.mrb[0].mxu0 %v416
        %v452 = vpop.f32.mrb[0].mxu0
        %v453 = vadd.f32 0.0, %v452
        %v454 = vpop.f32.mrb[0].mxu0
        %v455 = vpop.f32.mrb[0].mxu0
        %v456 = vpop.f32.mrb[0].mxu0
        %457 = vdwg.mxu0
        %v458 = vadd.f32 %v389, %v453
        %s459 = scalar_lea.vmem [#allocation5], 48
        %v460 = vld [vmem:[%s459] sm:$0xf]
        %v461 = vld [vmem:[%s459 + $0x4] sm:$0xf]
        %v462 = vld [vmem:[%s459 + $0x8] sm:$0xf]
        %v463 = vld [vmem:[%s459 + $0xc] sm:$0xf]
        %v464 = vrot.slane %v274, 3
        %v465 = vrot.slane %v275, 2
        %v466 = vsel %vm277, %v465, %v464
        %v467 = vpack.c.b16 %v466, %v466
        %v472 = vunpack.c.l.b16 %v460
        %v473 = vunpack.c.l.b16 %v461
        %v474 = vunpack.c.l.b16 %v462
        %v475 = vunpack.c.l.b16 %v463
        %v476 = vpack.c.b16 %v473, %v472
        %v477 = vpack.c.b16 %v475, %v474
        %v481 = vsel %vm292, %v467, 0
        %483 = vmatprep.subr.bf16.mxu0 0
        %484 = vmatpush1.bf16.msra.mxu0 %v476
        %485 = vmatprep.subr.bf16.mxu0 0
        %486 = vmatpush1.bf16.msra.mxu0 %v477
        %487 = vmatprep.subr.bf16.mxu0 0
        %488 = vmatpush1.bf16.msra.mxu0 0
        %489 = vmatprep.subr.bf16.mxu0 0
        %490 = vmatpush1.bf16.msra.mxu0 0
        %491 = vmatprep.subr.bf16.mxu0 0
        %492 = vmatpush1.bf16.msra.mxu0 0
        %493 = vmatprep.subr.bf16.mxu0 0
        %494 = vmatpush1.bf16.msra.mxu0 0
        %495 = vmatprep.subr.bf16.mxu0 0
        %496 = vmatpush1.bf16.msra.mxu0 0
        %497 = vmatprep.subr.bf16.mxu0 0
        %498 = vmatpush1.bf16.msra.mxu0 0
        %499 = vmatprep.subr.bf16.mxu0 0
        %500 = vmatpush1.bf16.msra.mxu0 0
        %501 = vmatprep.subr.bf16.mxu0 0
        %502 = vmatpush1.bf16.msra.mxu0 0
        %503 = vmatprep.subr.bf16.mxu0 0
        %504 = vmatpush1.bf16.msra.mxu0 0
        %505 = vmatprep.subr.bf16.mxu0 0
        %506 = vmatpush1.bf16.msra.mxu0 0
        %507 = vmatprep.subr.bf16.mxu0 0
        %508 = vmatpush1.bf16.msra.mxu0 0
        %509 = vmatprep.subr.bf16.mxu0 0
        %510 = vmatpush1.bf16.msra.mxu0 0
        %511 = vmatprep.subr.bf16.mxu0 0
        %512 = vmatpush1.bf16.msra.mxu0 0
        %513 = vmatprep.subr.bf16.mxu0 0
        %514 = vmatpush1.bf16.msra.mxu0 0
        %515 = vmatprep.mubr.bf16.mxu0 0
        %516 = vmatmul.mubr.bf16.gmra.mrb[0].mxu0 %v481
        %v517 = vpop.f32.mrb[0].mxu0
        %v518 = vadd.f32 0.0, %v517
        %v519 = vpop.f32.mrb[0].mxu0
        %v520 = vpop.f32.mrb[0].mxu0
        %v521 = vpop.f32.mrb[0].mxu0
        %522 = vdwg.mxu0
        %v523 = vadd.f32 %v458, %v518
        %s524 = scalar_lea.vmem [#allocation5], 64
        %v525 = vld [vmem:[%s524] sm:$0xf]
        %v526 = vld [vmem:[%s524 + $0x4] sm:$0xf]
        %v527 = vld [vmem:[%s524 + $0x8] sm:$0xf]
        %v528 = vld [vmem:[%s524 + $0xc] sm:$0xf]
        %v529 = vrot.slane %v274, 4
        %v530 = vrot.slane %v275, 3
        %v531 = vsel %vm277, %v530, %v529
        %v532 = vpack.c.b16 %v531, %v531
        %v537 = vunpack.c.l.b16 %v525
        %v538 = vunpack.c.l.b16 %v526
        %v539 = vunpack.c.l.b16 %v527
        %v540 = vunpack.c.l.b16 %v528
        %v541 = vpack.c.b16 %v538, %v537
        %v542 = vpack.c.b16 %v540, %v539
        %v546 = vsel %vm292, %v532, 0
        %548 = vmatprep.subr.bf16.mxu0 0
        %549 = vmatpush1.bf16.msra.mxu0 %v541
        %550 = vmatprep.subr.bf16.mxu0 0
        %551 = vmatpush1.bf16.msra.mxu0 %v542
        %552 = vmatprep.subr.bf16.mxu0 0
        %553 = vmatpush1.bf16.msra.mxu0 0
        %554 = vmatprep.subr.bf16.mxu0 0
        %555 = vmatpush1.bf16.msra.mxu0 0
        %556 = vmatprep.subr.bf16.mxu0 0
        %557 = vmatpush1.bf16.msra.mxu0 0
        %558 = vmatprep.subr.bf16.mxu0 0
        %559 = vmatpush1.bf16.msra.mxu0 0
        %560 = vmatprep.subr.bf16.mxu0 0
        %561 = vmatpush1.bf16.msra.mxu0 0
        %562 = vmatprep.subr.bf16.mxu0 0
        %563 = vmatpush1.bf16.msra.mxu0 0
        %564 = vmatprep.subr.bf16.mxu0 0
        %565 = vmatpush1.bf16.msra.mxu0 0
        %566 = vmatprep.subr.bf16.mxu0 0
        %567 = vmatpush1.bf16.msra.mxu0 0
        %568 = vmatprep.subr.bf16.mxu0 0
        %569 = vmatpush1.bf16.msra.mxu0 0
        %570 = vmatprep.subr.bf16.mxu0 0
        %571 = vmatpush1.bf16.msra.mxu0 0
        %572 = vmatprep.subr.bf16.mxu0 0
        %573 = vmatpush1.bf16.msra.mxu0 0
        %574 = vmatprep.subr.bf16.mxu0 0
        %575 = vmatpush1.bf16.msra.mxu0 0
        %576 = vmatprep.subr.bf16.mxu0 0
        %577 = vmatpush1.bf16.msra.mxu0 0
        %578 = vmatprep.subr.bf16.mxu0 0
        %579 = vmatpush1.bf16.msra.mxu0 0
        %580 = vmatprep.mubr.bf16.mxu0 0
        %581 = vmatmul.mubr.bf16.gmra.mrb[0].mxu0 %v546
        %v582 = vpop.f32.mrb[0].mxu0
        %v583 = vadd.f32 0.0, %v582
        %v584 = vpop.f32.mrb[0].mxu0
        %v585 = vpop.f32.mrb[0].mxu0
        %v586 = vpop.f32.mrb[0].mxu0
        %587 = vdwg.mxu0
        %v588 = vadd.f32 %v523, %v583
        %s589 = scalar_lea.vmem [#allocation5], 80
        %v590 = vld [vmem:[%s589] sm:$0xf]
        %v591 = vld [vmem:[%s589 + $0x4] sm:$0xf]
        %v592 = vld [vmem:[%s589 + $0x8] sm:$0xf]
        %v593 = vld [vmem:[%s589 + $0xc] sm:$0xf]
        %v594 = vrot.slane %v274, 5
        %v595 = vrot.slane %v275, 4
        %v596 = vsel %vm277, %v595, %v594
        %v597 = vpack.c.b16 %v596, %v596
        %v602 = vunpack.c.l.b16 %v590
        %v603 = vunpack.c.l.b16 %v591
        %v604 = vunpack.c.l.b16 %v592
        %v605 = vunpack.c.l.b16 %v593
        %v606 = vpack.c.b16 %v603, %v602
        %v607 = vpack.c.b16 %v605, %v604
        %v611 = vsel %vm292, %v597, 0
        %613 = vmatprep.subr.bf16.mxu0 0
        %614 = vmatpush1.bf16.msra.mxu0 %v606
        %615 = vmatprep.subr.bf16.mxu0 0
        %616 = vmatpush1.bf16.msra.mxu0 %v607
        %617 = vmatprep.subr.bf16.mxu0 0
        %618 = vmatpush1.bf16.msra.mxu0 0
        %619 = vmatprep.subr.bf16.mxu0 0
        %620 = vmatpush1.bf16.msra.mxu0 0
        %621 = vmatprep.subr.bf16.mxu0 0
        %622 = vmatpush1.bf16.msra.mxu0 0
        %623 = vmatprep.subr.bf16.mxu0 0
        %624 = vmatpush1.bf16.msra.mxu0 0
        %625 = vmatprep.subr.bf16.mxu0 0
        %626 = vmatpush1.bf16.msra.mxu0 0
        %627 = vmatprep.subr.bf16.mxu0 0
        %628 = vmatpush1.bf16.msra.mxu0 0
        %629 = vmatprep.subr.bf16.mxu0 0
        %630 = vmatpush1.bf16.msra.mxu0 0
        %631 = vmatprep.subr.bf16.mxu0 0
        %632 = vmatpush1.bf16.msra.mxu0 0
        %633 = vmatprep.subr.bf16.mxu0 0
        %634 = vmatpush1.bf16.msra.mxu0 0
        %635 = vmatprep.subr.bf16.mxu0 0
        %636 = vmatpush1.bf16.msra.mxu0 0
        %637 = vmatprep.subr.bf16.mxu0 0
        %638 = vmatpush1.bf16.msra.mxu0 0
        %639 = vmatprep.subr.bf16.mxu0 0
        %640 = vmatpush1.bf16.msra.mxu0 0
        %641 = vmatprep.subr.bf16.mxu0 0
        %642 = vmatpush1.bf16.msra.mxu0 0
        %643 = vmatprep.subr.bf16.mxu0 0
        %644 = vmatpush1.bf16.msra.mxu0 0
        %645 = vmatprep.mubr.bf16.mxu0 0
        %646 = vmatmul.mubr.bf16.gmra.mrb[0].mxu0 %v611
        %v647 = vpop.f32.mrb[0].mxu0
        %v648 = vadd.f32 0.0, %v647
        %v649 = vpop.f32.mrb[0].mxu0
        %v650 = vpop.f32.mrb[0].mxu0
        %v651 = vpop.f32.mrb[0].mxu0
        %652 = vdwg.mxu0
        %v653 = vadd.f32 %v588, %v648
        %s654 = scalar_lea.vmem [#allocation5], 96
        %v655 = vld [vmem:[%s654] sm:$0xf]
        %v656 = vld [vmem:[%s654 + $0x4] sm:$0xf]
        %v657 = vld [vmem:[%s654 + $0x8] sm:$0xf]
        %v658 = vld [vmem:[%s654 + $0xc] sm:$0xf]
        %v659 = vrot.slane %v274, 6
        %v660 = vrot.slane %v275, 5
        %v661 = vsel %vm277, %v660, %v659
        %v662 = vpack.c.b16 %v661, %v661
        %v667 = vunpack.c.l.b16 %v655
        %v668 = vunpack.c.l.b16 %v656
        %v669 = vunpack.c.l.b16 %v657
        %v670 = vunpack.c.l.b16 %v658
        %v671 = vpack.c.b16 %v668, %v667
        %v672 = vpack.c.b16 %v670, %v669
        %v676 = vsel %vm292, %v662, 0
        %678 = vmatprep.subr.bf16.mxu0 0
        %679 = vmatpush1.bf16.msra.mxu0 %v671
        %680 = vmatprep.subr.bf16.mxu0 0
        %681 = vmatpush1.bf16.msra.mxu0 %v672
        %682 = vmatprep.subr.bf16.mxu0 0
        %683 = vmatpush1.bf16.msra.mxu0 0
        %684 = vmatprep.subr.bf16.mxu0 0
        %685 = vmatpush1.bf16.msra.mxu0 0
        %686 = vmatprep.subr.bf16.mxu0 0
        %687 = vmatpush1.bf16.msra.mxu0 0
        %688 = vmatprep.subr.bf16.mxu0 0
        %689 = vmatpush1.bf16.msra.mxu0 0
        %690 = vmatprep.subr.bf16.mxu0 0
        %691 = vmatpush1.bf16.msra.mxu0 0
        %692 = vmatprep.subr.bf16.mxu0 0
        %693 = vmatpush1.bf16.msra.mxu0 0
        %694 = vmatprep.subr.bf16.mxu0 0
        %695 = vmatpush1.bf16.msra.mxu0 0
        %696 = vmatprep.subr.bf16.mxu0 0
        %697 = vmatpush1.bf16.msra.mxu0 0
        %698 = vmatprep.subr.bf16.mxu0 0
        %699 = vmatpush1.bf16.msra.mxu0 0
        %700 = vmatprep.subr.bf16.mxu0 0
        %701 = vmatpush1.bf16.msra.mxu0 0
        %702 = vmatprep.subr.bf16.mxu0 0
        %703 = vmatpush1.bf16.msra.mxu0 0
        %704 = vmatprep.subr.bf16.mxu0 0
        %705 = vmatpush1.bf16.msra.mxu0 0
        %706 = vmatprep.subr.bf16.mxu0 0
        %707 = vmatpush1.bf16.msra.mxu0 0
        %708 = vmatprep.subr.bf16.mxu0 0
        %709 = vmatpush1.bf16.msra.mxu0 0
        %710 = vmatprep.mubr.bf16.mxu0 0
        %711 = vmatmul.mubr.bf16.gmra.mrb[0].mxu0 %v676
        %v712 = vpop.f32.mrb[0].mxu0
        %v713 = vadd.f32 0.0, %v712
        %v714 = vpop.f32.mrb[0].mxu0
        %v715 = vpop.f32.mrb[0].mxu0
        %v716 = vpop.f32.mrb[0].mxu0
        %717 = vdwg.mxu0
        %v718 = vadd.f32 %v653, %v713
        %s719 = scalar_lea.vmem [#allocation5], 112
        %v720 = vld [vmem:[%s719] sm:$0xf]
        %v721 = vld [vmem:[%s719 + $0x4] sm:$0xf]
        %v722 = vld [vmem:[%s719 + $0x8] sm:$0xf]
        %v723 = vld [vmem:[%s719 + $0xc] sm:$0xf]
        %v724 = vrot.slane %v274, 7
        %v725 = vrot.slane %v275, 6
        %v726 = vsel %vm277, %v725, %v724
        %v727 = vpack.c.b16 %v726, %v726
        %v732 = vunpack.c.l.b16 %v720
        %v733 = vunpack.c.l.b16 %v721
        %v734 = vunpack.c.l.b16 %v722
        %v735 = vunpack.c.l.b16 %v723
        %v736 = vpack.c.b16 %v733, %v732
        %v737 = vpack.c.b16 %v735, %v734
        %v741 = vsel %vm292, %v727, 0
        %743 = vmatprep.subr.bf16.mxu0 0
        %744 = vmatpush1.bf16.msra.mxu0 %v736
        %745 = vmatprep.subr.bf16.mxu0 0
        %746 = vmatpush1.bf16.msra.mxu0 %v737
        %747 = vmatprep.subr.bf16.mxu0 0
        %748 = vmatpush1.bf16.msra.mxu0 0
        %749 = vmatprep.subr.bf16.mxu0 0
        %750 = vmatpush1.bf16.msra.mxu0 0
        %751 = vmatprep.subr.bf16.mxu0 0
        %752 = vmatpush1.bf16.msra.mxu0 0
        %753 = vmatprep.subr.bf16.mxu0 0
        %754 = vmatpush1.bf16.msra.mxu0 0
        %755 = vmatprep.subr.bf16.mxu0 0
        %756 = vmatpush1.bf16.msra.mxu0 0
        %757 = vmatprep.subr.bf16.mxu0 0
        %758 = vmatpush1.bf16.msra.mxu0 0
        %759 = vmatprep.subr.bf16.mxu0 0
        %760 = vmatpush1.bf16.msra.mxu0 0
        %761 = vmatprep.subr.bf16.mxu0 0
        %762 = vmatpush1.bf16.msra.mxu0 0
        %763 = vmatprep.subr.bf16.mxu0 0
        %764 = vmatpush1.bf16.msra.mxu0 0
        %765 = vmatprep.subr.bf16.mxu0 0
        %766 = vmatpush1.bf16.msra.mxu0 0
        %767 = vmatprep.subr.bf16.mxu0 0
        %768 = vmatpush1.bf16.msra.mxu0 0
        %769 = vmatprep.subr.bf16.mxu0 0
        %770 = vmatpush1.bf16.msra.mxu0 0
        %771 = vmatprep.subr.bf16.mxu0 0
        %772 = vmatpush1.bf16.msra.mxu0 0
        %773 = vmatprep.subr.bf16.mxu0 0
        %774 = vmatpush1.bf16.msra.mxu0 0
        %775 = vmatprep.mubr.bf16.mxu0 0
        %776 = vmatmul.mubr.bf16.gmra.mrb[0].mxu0 %v741
        %v777 = vpop.f32.mrb[0].mxu0
        %v778 = vadd.f32 0.0, %v777
        %v779 = vpop.f32.mrb[0].mxu0
        %v780 = vpop.f32.mrb[0].mxu0
        %v781 = vpop.f32.mrb[0].mxu0
        %782 = vdwg.mxu0
        %v783 = vadd.f32 %v718, %v778
        %v785 = vlaneseq
        %v786 = vshrl.u32 %v785, 7
        %v787 = vsub.s32 0, %v786
        %v788 = vrot.slane %v224, %v787
        %v790 = vadd.f32 %v783, %v788
        %v791 = vpack.c.bf16 %v790, %v790
        %792 = vst [vmem:[%s221] sm:$0x1] %v791
        %v793 = vld [vmem:[%s195 + $0x8] sm:$0xff]
        %v794 = vld [vmem:[%s195 + $0x18] sm:$0xff]
        %v795 = vld [vmem:[%s195 + $0x28] sm:$0xff]
        %v796 = vld [vmem:[%s195 + $0x38] sm:$0xff]
        %797 = vxpose.xlu0.b32.start [1/16] %v793, 128
        %798 = vxpose.xlu0.b32.cont [2/16] %v794, 128
        %799 = vxpose.xlu0.b32.cont [3/16] %v795, 128
        %800 = vxpose.xlu0.b32.cont [4/16] %v796, 128
        %801 = vxpose.xlu0.b32.cont [5/16] 0.0, 128
        %802 = vxpose.xlu0.b32.cont [6/16] 0.0, 128
        %803 = vxpose.xlu0.b32.cont [7/16] 0.0, 128
        %804 = vxpose.xlu0.b32.cont [8/16] 0.0, 128
        %805 = vxpose.xlu0.b32.cont [9/16] 0.0, 128
        %806 = vxpose.xlu0.b32.cont [10/16] 0.0, 128
        %807 = vxpose.xlu0.b32.cont [11/16] 0.0, 128
        %808 = vxpose.xlu0.b32.cont [12/16] 0.0, 128
        %809 = vxpose.xlu0.b32.cont [13/16] 0.0, 128
        %810 = vxpose.xlu0.b32.cont [14/16] 0.0, 128
        %811 = vxpose.xlu0.b32.cont [15/16] 0.0, 128
        %812 = vxpose.xlu0.b32.end [16/16] 0.0, 128
        %v813 = vpop.trf.xlu0
        %v814 = vpop.trf.xlu0
        %v815 = vpop.trf.xlu0
        %v816 = vpop.trf.xlu0
        %v817 = vpop.trf.xlu0
        %v818 = vpop.trf.xlu0
        %v819 = vpop.trf.xlu0
        %v820 = vpop.trf.xlu0
        %v821 = vpop.trf.xlu0
        %v822 = vpop.trf.xlu0
        %v823 = vpop.trf.xlu0
        %v824 = vpop.trf.xlu0
        %v825 = vpop.trf.xlu0
        %v826 = vpop.trf.xlu0
        %v827 = vpop.trf.xlu0
        %v828 = vpop.trf.xlu0
        %v829 = vpack.c.bf16 %v813, %v813
        %v830 = vpack.c.bf16 %v814, %v814
        %v831 = vld [vmem:[#allocation5] sm:$0xf]
        %v832 = vld [vmem:[#allocation5 + $0x4] sm:$0xf]
        %v833 = vld [vmem:[#allocation5 + $0x8] sm:$0xf]
        %v834 = vld [vmem:[#allocation5 + $0xc] sm:$0xf]
        %v835 = vld [vmem:[%s267] sm:$0xf]
        %v836 = vld [vmem:[%s267 + $0x4] sm:$0xf]
        %v837 = vld [vmem:[%s267 + $0x8] sm:$0xf]
        %v838 = vld [vmem:[%s267 + $0xc] sm:$0xf]
        %v841 = vunpack.c.l.b16 %v829
        %v842 = vunpack.c.l.b16 %v830
        %v843 = vrot.slane %v841, 1
        %v844 = vsel %vm277, %v842, %v843
        %v845 = vpack.c.b16 %v844, %v844
        %v850 = vunpack.c.l.b16 %v835
        %v851 = vunpack.c.l.b16 %v836
        %v852 = vunpack.c.l.b16 %v837
        %v853 = vunpack.c.l.b16 %v838
        %v854 = vpack.c.b16 %v851, %v850
        %v855 = vpack.c.b16 %v853, %v852
        %v859 = vsel %vm292, %v845, 0
        %861 = vmatprep.subr.bf16.mxu0 0
        %862 = vmatpush1.bf16.msra.mxu0 %v854
        %863 = vmatprep.subr.bf16.mxu0 0
        %864 = vmatpush1.bf16.msra.mxu0 %v855
        %865 = vmatprep.subr.bf16.mxu0 0
        %866 = vmatpush1.bf16.msra.mxu0 0
        %867 = vmatprep.subr.bf16.mxu0 0
        %868 = vmatpush1.bf16.msra.mxu0 0
        %869 = vmatprep.subr.bf16.mxu0 0
        %870 = vmatpush1.bf16.msra.mxu0 0
        %871 = vmatprep.subr.bf16.mxu0 0
        %872 = vmatpush1.bf16.msra.mxu0 0
        %873 = vmatprep.subr.bf16.mxu0 0
        %874 = vmatpush1.bf16.msra.mxu0 0
        %875 = vmatprep.subr.bf16.mxu0 0
        %876 = vmatpush1.bf16.msra.mxu0 0
        %877 = vmatprep.subr.bf16.mxu0 0
        %878 = vmatpush1.bf16.msra.mxu0 0
        %879 = vmatprep.subr.bf16.mxu0 0
        %880 = vmatpush1.bf16.msra.mxu0 0
        %881 = vmatprep.subr.bf16.mxu0 0
        %882 = vmatpush1.bf16.msra.mxu0 0
        %883 = vmatprep.subr.bf16.mxu0 0
        %884 = vmatpush1.bf16.msra.mxu0 0
        %885 = vmatprep.subr.bf16.mxu0 0
        %886 = vmatpush1.bf16.msra.mxu0 0
        %887 = vmatprep.subr.bf16.mxu0 0
        %888 = vmatpush1.bf16.msra.mxu0 0
        %889 = vmatprep.subr.bf16.mxu0 0
        %890 = vmatpush1.bf16.msra.mxu0 0
        %891 = vmatprep.subr.bf16.mxu0 0
        %892 = vmatpush1.bf16.msra.mxu0 0
        %893 = vmatprep.mubr.bf16.mxu0 0
        %894 = vmatmul.mubr.bf16.gmra.mrb[0].mxu0 %v859
        %v895 = vpop.f32.mrb[0].mxu0
        %v896 = vadd.f32 0.0, %v895
        %v897 = vpop.f32.mrb[0].mxu0
        %v898 = vpop.f32.mrb[0].mxu0
        %v899 = vpop.f32.mrb[0].mxu0
        %900 = vdwg.mxu0
        %v901 = vrot.slane %v842, 7
        %v902 = vsel %vm277, %v901, %v841
        %v903 = vpack.c.b16 %v902, %v902
        %v908 = vunpack.c.l.b16 %v831
        %v909 = vunpack.c.l.b16 %v832
        %v910 = vunpack.c.l.b16 %v833
        %v911 = vunpack.c.l.b16 %v834
        %v912 = vpack.c.b16 %v909, %v908
        %v913 = vpack.c.b16 %v911, %v910
        %v917 = vsel %vm292, %v903, 0
        %919 = vmatprep.subr.bf16.mxu0 0
        %920 = vmatpush1.bf16.msra.mxu0 %v912
        %921 = vmatprep.subr.bf16.mxu0 0
        %922 = vmatpush1.bf16.msra.mxu0 %v913
        %923 = vmatprep.subr.bf16.mxu0 0
        %924 = vmatpush1.bf16.msra.mxu0 0
        %925 = vmatprep.subr.bf16.mxu0 0
        %926 = vmatpush1.bf16.msra.mxu0 0
        %927 = vmatprep.subr.bf16.mxu0 0
        %928 = vmatpush1.bf16.msra.mxu0 0
        %929 = vmatprep.subr.bf16.mxu0 0
        %930 = vmatpush1.bf16.msra.mxu0 0
        %931 = vmatprep.subr.bf16.mxu0 0
        %932 = vmatpush1.bf16.msra.mxu0 0
        %933 = vmatprep.subr.bf16.mxu0 0
        %934 = vmatpush1.bf16.msra.mxu0 0
        %935 = vmatprep.subr.bf16.mxu0 0
        %936 = vmatpush1.bf16.msra.mxu0 0
        %937 = vmatprep.subr.bf16.mxu0 0
        %938 = vmatpush1.bf16.msra.mxu0 0
        %939 = vmatprep.subr.bf16.mxu0 0
        %940 = vmatpush1.bf16.msra.mxu0 0
        %941 = vmatprep.subr.bf16.mxu0 0
        %942 = vmatpush1.bf16.msra.mxu0 0
        %943 = vmatprep.subr.bf16.mxu0 0
        %944 = vmatpush1.bf16.msra.mxu0 0
        %945 = vmatprep.subr.bf16.mxu0 0
        %946 = vmatpush1.bf16.msra.mxu0 0
        %947 = vmatprep.subr.bf16.mxu0 0
        %948 = vmatpush1.bf16.msra.mxu0 0
        %949 = vmatprep.subr.bf16.mxu0 0
        %950 = vmatpush1.bf16.msra.mxu0 0
        %951 = vmatprep.mubr.bf16.mxu0 0
        %952 = vmatmul.mubr.bf16.gmra.mrb[0].mxu0 %v917
        %v953 = vpop.f32.mrb[0].mxu0
        %v954 = vadd.f32 %v896, %v953
        %v955 = vpop.f32.mrb[0].mxu0
        %v956 = vpop.f32.mrb[0].mxu0
        %v957 = vpop.f32.mrb[0].mxu0
        %958 = vdwg.mxu0
        %v959 = vld [vmem:[%s394] sm:$0xf]
        %v960 = vld [vmem:[%s394 + $0x4] sm:$0xf]
        %v961 = vld [vmem:[%s394 + $0x8] sm:$0xf]
        %v962 = vld [vmem:[%s394 + $0xc] sm:$0xf]
        %v963 = vrot.slane %v841, 2
        %v964 = vrot.slane %v842, 1
        %v965 = vsel %vm277, %v964, %v963
        %v966 = vpack.c.b16 %v965, %v965
        %v971 = vunpack.c.l.b16 %v959
        %v972 = vunpack.c.l.b16 %v960
        %v973 = vunpack.c.l.b16 %v961
        %v974 = vunpack.c.l.b16 %v962
        %v975 = vpack.c.b16 %v972, %v971
        %v976 = vpack.c.b16 %v974, %v973
        %v980 = vsel %vm292, %v966, 0
        %982 = vmatprep.subr.bf16.mxu0 0
        %983 = vmatpush1.bf16.msra.mxu0 %v975
        %984 = vmatprep.subr.bf16.mxu0 0
        %985 = vmatpush1.bf16.msra.mxu0 %v976
        %986 = vmatprep.subr.bf16.mxu0 0
        %987 = vmatpush1.bf16.msra.mxu0 0
        %988 = vmatprep.subr.bf16.mxu0 0
        %989 = vmatpush1.bf16.msra.mxu0 0
        %990 = vmatprep.subr.bf16.mxu0 0
        %991 = vmatpush1.bf16.msra.mxu0 0
        %992 = vmatprep.subr.bf16.mxu0 0
        %993 = vmatpush1.bf16.msra.mxu0 0
        %994 = vmatprep.subr.bf16.mxu0 0
        %995 = vmatpush1.bf16.msra.mxu0 0
        %996 = vmatprep.subr.bf16.mxu0 0
        %997 = vmatpush1.bf16.msra.mxu0 0
        %998 = vmatprep.subr.bf16.mxu0 0
        %999 = vmatpush1.bf16.msra.mxu0 0
        %1000 = vmatprep.subr.bf16.mxu0 0
        %1001 = vmatpush1.bf16.msra.mxu0 0
        %1002 = vmatprep.subr.bf16.mxu0 0
        %1003 = vmatpush1.bf16.msra.mxu0 0
        %1004 = vmatprep.subr.bf16.mxu0 0
        %1005 = vmatpush1.bf16.msra.mxu0 0
        %1006 = vmatprep.subr.bf16.mxu0 0
        %1007 = vmatpush1.bf16.msra.mxu0 0
        %1008 = vmatprep.subr.bf16.mxu0 0
        %1009 = vmatpush1.bf16.msra.mxu0 0
        %1010 = vmatprep.subr.bf16.mxu0 0
        %1011 = vmatpush1.bf16.msra.mxu0 0
        %1012 = vmatprep.subr.bf16.mxu0 0
        %1013 = vmatpush1.bf16.msra.mxu0 0
        %1014 = vmatprep.mubr.bf16.mxu0 0
        %1015 = vmatmul.mubr.bf16.gmra.mrb[0].mxu0 %v980
        %v1016 = vpop.f32.mrb[0].mxu0
        %v1017 = vadd.f32 0.0, %v1016
        %v1018 = vpop.f32.mrb[0].mxu0
        %v1019 = vpop.f32.mrb[0].mxu0
        %v1020 = vpop.f32.mrb[0].mxu0
        %1021 = vdwg.mxu0
        %v1022 = vadd.f32 %v954, %v1017
        %v1023 = vld [vmem:[%s459] sm:$0xf]
        %v1024 = vld [vmem:[%s459 + $0x4] sm:$0xf]
        %v1025 = vld [vmem:[%s459 + $0x8] sm:$0xf]
        %v1026 = vld [vmem:[%s459 + $0xc] sm:$0xf]
        %v1027 = vrot.slane %v841, 3
        %v1028 = vrot.slane %v842, 2
        %v1029 = vsel %vm277, %v1028, %v1027
        %v1030 = vpack.c.b16 %v1029, %v1029
        %v1035 = vunpack.c.l.b16 %v1023
        %v1036 = vunpack.c.l.b16 %v1024
        %v1037 = vunpack.c.l.b16 %v1025
        %v1038 = vunpack.c.l.b16 %v1026
        %v1039 = vpack.c.b16 %v1036, %v1035
        %v1040 = vpack.c.b16 %v1038, %v1037
        %v1044 = vsel %vm292, %v1030, 0
        %1046 = vmatprep.subr.bf16.mxu0 0
        %1047 = vmatpush1.bf16.msra.mxu0 %v1039
        %1048 = vmatprep.subr.bf16.mxu0 0
        %1049 = vmatpush1.bf16.msra.mxu0 %v1040
        %1050 = vmatprep.subr.bf16.mxu0 0
        %1051 = vmatpush1.bf16.msra.mxu0 0
        %1052 = vmatprep.subr.bf16.mxu0 0
        %1053 = vmatpush1.bf16.msra.mxu0 0
        %1054 = vmatprep.subr.bf16.mxu0 0
        %1055 = vmatpush1.bf16.msra.mxu0 0
        %1056 = vmatprep.subr.bf16.mxu0 0
        %1057 = vmatpush1.bf16.msra.mxu0 0
        %1058 = vmatprep.subr.bf16.mxu0 0
        %1059 = vmatpush1.bf16.msra.mxu0 0
        %1060 = vmatprep.subr.bf16.mxu0 0
        %1061 = vmatpush1.bf16.msra.mxu0 0
        %1062 = vmatprep.subr.bf16.mxu0 0
        %1063 = vmatpush1.bf16.msra.mxu0 0
        %1064 = vmatprep.subr.bf16.mxu0 0
        %1065 = vmatpush1.bf16.msra.mxu0 0
        %1066 = vmatprep.subr.bf16.mxu0 0
        %1067 = vmatpush1.bf16.msra.mxu0 0
        %1068 = vmatprep.subr.bf16.mxu0 0
        %1069 = vmatpush1.bf16.msra.mxu0 0
        %1070 = vmatprep.subr.bf16.mxu0 0
        %1071 = vmatpush1.bf16.msra.mxu0 0
        %1072 = vmatprep.subr.bf16.mxu0 0
        %1073 = vmatpush1.bf16.msra.mxu0 0
        %1074 = vmatprep.subr.bf16.mxu0 0
        %1075 = vmatpush1.bf16.msra.mxu0 0
        %1076 = vmatprep.subr.bf16.mxu0 0
        %1077 = vmatpush1.bf16.msra.mxu0 0
        %1078 = vmatprep.mubr.bf16.mxu0 0
        %1079 = vmatmul.mubr.bf16.gmra.mrb[0].mxu0 %v1044
        %v1080 = vpop.f32.mrb[0].mxu0
        %v1081 = vadd.f32 0.0, %v1080
        %v1082 = vpop.f32.mrb[0].mxu0
        %v1083 = vpop.f32.mrb[0].mxu0
        %v1084 = vpop.f32.mrb[0].mxu0
        %1085 = vdwg.mxu0
        %v1086 = vadd.f32 %v1022, %v1081
        %v1087 = vld [vmem:[%s524] sm:$0xf]
        %v1088 = vld [vmem:[%s524 + $0x4] sm:$0xf]
        %v1089 = vld [vmem:[%s524 + $0x8] sm:$0xf]
        %v1090 = vld [vmem:[%s524 + $0xc] sm:$0xf]
        %v1091 = vrot.slane %v841, 4
        %v1092 = vrot.slane %v842, 3
        %v1093 = vsel %vm277, %v1092, %v1091
        %v1094 = vpack.c.b16 %v1093, %v1093
        %v1099 = vunpack.c.l.b16 %v1087
        %v1100 = vunpack.c.l.b16 %v1088
        %v1101 = vunpack.c.l.b16 %v1089
        %v1102 = vunpack.c.l.b16 %v1090
        %v1103 = vpack.c.b16 %v1100, %v1099
        %v1104 = vpack.c.b16 %v1102, %v1101
        %v1108 = vsel %vm292, %v1094, 0
        %1110 = vmatprep.subr.bf16.mxu0 0
        %1111 = vmatpush1.bf16.msra.mxu0 %v1103
        %1112 = vmatprep.subr.bf16.mxu0 0
        %1113 = vmatpush1.bf16.msra.mxu0 %v1104
        %1114 = vmatprep.subr.bf16.mxu0 0
        %1115 = vmatpush1.bf16.msra.mxu0 0
        %1116 = vmatprep.subr.bf16.mxu0 0
        %1117 = vmatpush1.bf16.msra.mxu0 0
        %1118 = vmatprep.subr.bf16.mxu0 0
        %1119 = vmatpush1.bf16.msra.mxu0 0
        %1120 = vmatprep.subr.bf16.mxu0 0
        %1121 = vmatpush1.bf16.msra.mxu0 0
        %1122 = vmatprep.subr.bf16.mxu0 0
        %1123 = vmatpush1.bf16.msra.mxu0 0
        %1124 = vmatprep.subr.bf16.mxu0 0
        %1125 = vmatpush1.bf16.msra.mxu0 0
        %1126 = vmatprep.subr.bf16.mxu0 0
        %1127 = vmatpush1.bf16.msra.mxu0 0
        %1128 = vmatprep.subr.bf16.mxu0 0
        %1129 = vmatpush1.bf16.msra.mxu0 0
        %1130 = vmatprep.subr.bf16.mxu0 0
        %1131 = vmatpush1.bf16.msra.mxu0 0
        %1132 = vmatprep.subr.bf16.mxu0 0
        %1133 = vmatpush1.bf16.msra.mxu0 0
        %1134 = vmatprep.subr.bf16.mxu0 0
        %1135 = vmatpush1.bf16.msra.mxu0 0
        %1136 = vmatprep.subr.bf16.mxu0 0
        %1137 = vmatpush1.bf16.msra.mxu0 0
        %1138 = vmatprep.subr.bf16.mxu0 0
        %1139 = vmatpush1.bf16.msra.mxu0 0
        %1140 = vmatprep.subr.bf16.mxu0 0
        %1141 = vmatpush1.bf16.msra.mxu0 0
        %1142 = vmatprep.mubr.bf16.mxu0 0
        %1143 = vmatmul.mubr.bf16.gmra.mrb[0].mxu0 %v1108
        %v1144 = vpop.f32.mrb[0].mxu0
        %v1145 = vadd.f32 0.0, %v1144
        %v1146 = vpop.f32.mrb[0].mxu0
        %v1147 = vpop.f32.mrb[0].mxu0
        %v1148 = vpop.f32.mrb[0].mxu0
        %1149 = vdwg.mxu0
        %v1150 = vadd.f32 %v1086, %v1145
        %v1151 = vld [vmem:[%s589] sm:$0xf]
        %v1152 = vld [vmem:[%s589 + $0x4] sm:$0xf]
        %v1153 = vld [vmem:[%s589 + $0x8] sm:$0xf]
        %v1154 = vld [vmem:[%s589 + $0xc] sm:$0xf]
        %v1155 = vrot.slane %v841, 5
        %v1156 = vrot.slane %v842, 4
        %v1157 = vsel %vm277, %v1156, %v1155
        %v1158 = vpack.c.b16 %v1157, %v1157
        %v1163 = vunpack.c.l.b16 %v1151
        %v1164 = vunpack.c.l.b16 %v1152
        %v1165 = vunpack.c.l.b16 %v1153
        %v1166 = vunpack.c.l.b16 %v1154
        %v1167 = vpack.c.b16 %v1164, %v1163
        %v1168 = vpack.c.b16 %v1166, %v1165
        %v1172 = vsel %vm292, %v1158, 0
        %1174 = vmatprep.subr.bf16.mxu0 0
        %1175 = vmatpush1.bf16.msra.mxu0 %v1167
        %1176 = vmatprep.subr.bf16.mxu0 0
        %1177 = vmatpush1.bf16.msra.mxu0 %v1168
        %1178 = vmatprep.subr.bf16.mxu0 0
        %1179 = vmatpush1.bf16.msra.mxu0 0
        %1180 = vmatprep.subr.bf16.mxu0 0
        %1181 = vmatpush1.bf16.msra.mxu0 0
        %1182 = vmatprep.subr.bf16.mxu0 0
        %1183 = vmatpush1.bf16.msra.mxu0 0
        %1184 = vmatprep.subr.bf16.mxu0 0
        %1185 = vmatpush1.bf16.msra.mxu0 0
        %1186 = vmatprep.subr.bf16.mxu0 0
        %1187 = vmatpush1.bf16.msra.mxu0 0
        %1188 = vmatprep.subr.bf16.mxu0 0
        %1189 = vmatpush1.bf16.msra.mxu0 0
        %1190 = vmatprep.subr.bf16.mxu0 0
        %1191 = vmatpush1.bf16.msra.mxu0 0
        %1192 = vmatprep.subr.bf16.mxu0 0
        %1193 = vmatpush1.bf16.msra.mxu0 0
        %1194 = vmatprep.subr.bf16.mxu0 0
        %1195 = vmatpush1.bf16.msra.mxu0 0
        %1196 = vmatprep.subr.bf16.mxu0 0
        %1197 = vmatpush1.bf16.msra.mxu0 0
        %1198 = vmatprep.subr.bf16.mxu0 0
        %1199 = vmatpush1.bf16.msra.mxu0 0
        %1200 = vmatprep.subr.bf16.mxu0 0
        %1201 = vmatpush1.bf16.msra.mxu0 0
        %1202 = vmatprep.subr.bf16.mxu0 0
        %1203 = vmatpush1.bf16.msra.mxu0 0
        %1204 = vmatprep.subr.bf16.mxu0 0
        %1205 = vmatpush1.bf16.msra.mxu0 0
        %1206 = vmatprep.mubr.bf16.mxu0 0
        %1207 = vmatmul.mubr.bf16.gmra.mrb[0].mxu0 %v1172
        %v1208 = vpop.f32.mrb[0].mxu0
        %v1209 = vadd.f32 0.0, %v1208
        %v1210 = vpop.f32.mrb[0].mxu0
        %v1211 = vpop.f32.mrb[0].mxu0
        %v1212 = vpop.f32.mrb[0].mxu0
        %1213 = vdwg.mxu0
        %v1214 = vadd.f32 %v1150, %v1209
        %v1215 = vld [vmem:[%s654] sm:$0xf]
        %v1216 = vld [vmem:[%s654 + $0x4] sm:$0xf]
        %v1217 = vld [vmem:[%s654 + $0x8] sm:$0xf]
        %v1218 = vld [vmem:[%s654 + $0xc] sm:$0xf]
        %v1219 = vrot.slane %v841, 6
        %v1220 = vrot.slane %v842, 5
        %v1221 = vsel %vm277, %v1220, %v1219
        %v1222 = vpack.c.b16 %v1221, %v1221
        %v1227 = vunpack.c.l.b16 %v1215
        %v1228 = vunpack.c.l.b16 %v1216
        %v1229 = vunpack.c.l.b16 %v1217
        %v1230 = vunpack.c.l.b16 %v1218
        %v1231 = vpack.c.b16 %v1228, %v1227
        %v1232 = vpack.c.b16 %v1230, %v1229
        %v1236 = vsel %vm292, %v1222, 0
        %1238 = vmatprep.subr.bf16.mxu0 0
        %1239 = vmatpush1.bf16.msra.mxu0 %v1231
        %1240 = vmatprep.subr.bf16.mxu0 0
        %1241 = vmatpush1.bf16.msra.mxu0 %v1232
        %1242 = vmatprep.subr.bf16.mxu0 0
        %1243 = vmatpush1.bf16.msra.mxu0 0
        %1244 = vmatprep.subr.bf16.mxu0 0
        %1245 = vmatpush1.bf16.msra.mxu0 0
        %1246 = vmatprep.subr.bf16.mxu0 0
        %1247 = vmatpush1.bf16.msra.mxu0 0
        %1248 = vmatprep.subr.bf16.mxu0 0
        %1249 = vmatpush1.bf16.msra.mxu0 0
        %1250 = vmatprep.subr.bf16.mxu0 0
        %1251 = vmatpush1.bf16.msra.mxu0 0
        %1252 = vmatprep.subr.bf16.mxu0 0
        %1253 = vmatpush1.bf16.msra.mxu0 0
        %1254 = vmatprep.subr.bf16.mxu0 0
        %1255 = vmatpush1.bf16.msra.mxu0 0
        %1256 = vmatprep.subr.bf16.mxu0 0
        %1257 = vmatpush1.bf16.msra.mxu0 0
        %1258 = vmatprep.subr.bf16.mxu0 0
        %1259 = vmatpush1.bf16.msra.mxu0 0
        %1260 = vmatprep.subr.bf16.mxu0 0
        %1261 = vmatpush1.bf16.msra.mxu0 0
        %1262 = vmatprep.subr.bf16.mxu0 0
        %1263 = vmatpush1.bf16.msra.mxu0 0
        %1264 = vmatprep.subr.bf16.mxu0 0
        %1265 = vmatpush1.bf16.msra.mxu0 0
        %1266 = vmatprep.subr.bf16.mxu0 0
        %1267 = vmatpush1.bf16.msra.mxu0 0
        %1268 = vmatprep.subr.bf16.mxu0 0
        %1269 = vmatpush1.bf16.msra.mxu0 0
        %1270 = vmatprep.mubr.bf16.mxu0 0
        %1271 = vmatmul.mubr.bf16.gmra.mrb[0].mxu0 %v1236
        %v1272 = vpop.f32.mrb[0].mxu0
        %v1273 = vadd.f32 0.0, %v1272
        %v1274 = vpop.f32.mrb[0].mxu0
        %v1275 = vpop.f32.mrb[0].mxu0
        %v1276 = vpop.f32.mrb[0].mxu0
        %1277 = vdwg.mxu0
        %v1278 = vadd.f32 %v1214, %v1273
        %v1279 = vld [vmem:[%s719] sm:$0xf]
        %v1280 = vld [vmem:[%s719 + $0x4] sm:$0xf]
        %v1281 = vld [vmem:[%s719 + $0x8] sm:$0xf]
        %v1282 = vld [vmem:[%s719 + $0xc] sm:$0xf]
        %v1283 = vrot.slane %v841, 7
        %v1284 = vrot.slane %v842, 6
        %v1285 = vsel %vm277, %v1284, %v1283
        %v1286 = vpack.c.b16 %v1285, %v1285
        %v1291 = vunpack.c.l.b16 %v1279
        %v1292 = vunpack.c.l.b16 %v1280
        %v1293 = vunpack.c.l.b16 %v1281
        %v1294 = vunpack.c.l.b16 %v1282
        %v1295 = vpack.c.b16 %v1292, %v1291
        %v1296 = vpack.c.b16 %v1294, %v1293
        %v1300 = vsel %vm292, %v1286, 0
        %1302 = vmatprep.subr.bf16.mxu0 0
        %1303 = vmatpush1.bf16.msra.mxu0 %v1295
        %1304 = vmatprep.subr.bf16.mxu0 0
        %1305 = vmatpush1.bf16.msra.mxu0 %v1296
        %1306 = vmatprep.subr.bf16.mxu0 0
        %1307 = vmatpush1.bf16.msra.mxu0 0
        %1308 = vmatprep.subr.bf16.mxu0 0
        %1309 = vmatpush1.bf16.msra.mxu0 0
        %1310 = vmatprep.subr.bf16.mxu0 0
        %1311 = vmatpush1.bf16.msra.mxu0 0
        %1312 = vmatprep.subr.bf16.mxu0 0
        %1313 = vmatpush1.bf16.msra.mxu0 0
        %1314 = vmatprep.subr.bf16.mxu0 0
        %1315 = vmatpush1.bf16.msra.mxu0 0
        %1316 = vmatprep.subr.bf16.mxu0 0
        %1317 = vmatpush1.bf16.msra.mxu0 0
        %1318 = vmatprep.subr.bf16.mxu0 0
        %1319 = vmatpush1.bf16.msra.mxu0 0
        %1320 = vmatprep.subr.bf16.mxu0 0
        %1321 = vmatpush1.bf16.msra.mxu0 0
        %1322 = vmatprep.subr.bf16.mxu0 0
        %1323 = vmatpush1.bf16.msra.mxu0 0
        %1324 = vmatprep.subr.bf16.mxu0 0
        %1325 = vmatpush1.bf16.msra.mxu0 0
        %1326 = vmatprep.subr.bf16.mxu0 0
        %1327 = vmatpush1.bf16.msra.mxu0 0
        %1328 = vmatprep.subr.bf16.mxu0 0
        %1329 = vmatpush1.bf16.msra.mxu0 0
        %1330 = vmatprep.subr.bf16.mxu0 0
        %1331 = vmatpush1.bf16.msra.mxu0 0
        %1332 = vmatprep.subr.bf16.mxu0 0
        %1333 = vmatpush1.bf16.msra.mxu0 0
        %1334 = vmatprep.mubr.bf16.mxu0 0
        %1335 = vmatmul.mubr.bf16.gmra.mrb[0].mxu0 %v1300
        %v1336 = vpop.f32.mrb[0].mxu0
        %v1337 = vadd.f32 0.0, %v1336
        %v1338 = vpop.f32.mrb[0].mxu0
        %v1339 = vpop.f32.mrb[0].mxu0
        %v1340 = vpop.f32.mrb[0].mxu0
        %1341 = vdwg.mxu0
        %v1342 = vadd.f32 %v1278, %v1337
        %v1343 = vadd.f32 %v1342, %v788
        %v1344 = vpack.c.bf16 %v1343, %v1343
        %v1347 = vunpack.c.l.s4 1983009808
        %v1348 = vunpack.c.0.s8 %v1347
        %v1349 = vlaneseq
        %v1350 = vshrl.u32 %v1349, 7
        %v1351 = vsub.s32 %v1348, %v1350
        %v1352 = vrot.slane %v1344, %v1351
        %v1353 = vrot.slane %v1352, 7
        %1355 = vst [vmem:[%s221] sm:$0x2] %v1353
        %s1356 = sand.u32 %s113, 1
        %s1357 = scalar_lea.sflag [#allocation4], %s1356
        %s1358 = sand.u32 %s113, 1
        %s1359 = smul.addr %s1358, 2
        %s1360 = scalar_lea.vmem [#allocation7], %s1359
        // Predicated region
        $region41: #{_lambda_.1} parent=31 // pred_check
          %p1361 = pneg %p123
        $region42: #{_lambda_.1} parent=31 // pred_check_branch
          %1363 = sbr.rel (%p1361) target = $region44
        $region43: #{_lambda_.1} parent=31 // pred_region
          %s1365 = ssub.s32 32, 32
          %1366 = vsyncadd %s1357, %s1365
          %s1367 = sadd.s32 %s26, %s25
          %s1368 = smul.addr %s1367, 32
          %s1369 = scalar_lea.hbm %s3, %s1368
          %s1371 = sshll.u32 %s1360, 4
          %s1372 = int_to_ptr.vmem [resolvable:$true] %s1371
          %1374 = dma.vmem_to_hbm [thread:$0]  %s1372, 32, %s1369, %s1357
        $region44: #{_lambda_.1} parent=31 // pred_fallthru
          _
      $region32: #{_lambda_.1} parent=5 // pred_fallthru
        _
      %p1375 = scmp.le.s32.totalorder 2, %s16
      // Predicated region
      $region45: #{_lambda_.1} parent=5 // pred_check
        %p1376 = pneg %p1375
      $region46: #{_lambda_.1} parent=5 // pred_check_branch
        %1378 = sbr.rel (%p1376) target = $region48
      $region47: #{_lambda_.1} parent=5 // pred_region
        %s1379 = ssub.s32 %s16, 2
        // Predicated region
        $region49: #{_lambda_.1} parent=47 // pred_check
          %p1380 = pneg %p129
        $region50: #{_lambda_.1} parent=47 // pred_check_branch
          %1382 = sbr.rel (%p1380) target = $region52
        $region51: #{_lambda_.1} parent=47 // pred_region
          %s1383 = sand.u32 %s114, 1
          %s1384 = scalar_lea.sflag [#allocation4], %s1383
          %s1385 = sand.u32 %s114, 1
          %s1386 = smul.addr %s1385, 2
          %s1387 = scalar_lea.vmem [#allocation7], %s1386
          %1388 = dma.done %s1384, 32
        $region52: #{_lambda_.1} parent=47 // pred_fallthru
          _
      $region48: #{_lambda_.1} parent=5 // pred_fallthru
        _
    $region6: #{_lambda_.1} parent=1 // loop_footer
      %s20 = sadd.s32 1, %s16
    $region7: #{_lambda_.1} parent=1 // loop_footer_branch
      %15 = sbr.rel target = $region3
    $region8: #{_lambda_.1} parent=1 // loop_exit
      _
    %1389 = vsyncpa [#allocation3], 1
    %s1390 = scalar_lea.sflag [#allocation3], 1
    %1391 = vsyncpa %s1390, 1
    %1392 = vsyncpa [#allocation6], 1
    %1393 = vsyncpa [#allocation4], 1
    %s1394 = scalar_lea.sflag [#allocation4], 1
    %1395 = vsyncpa %s1394, 1

</llo_original>
